<compile_context>
chip_gen: v7x
topology: tpu7x:2x2x1
jax: 0.10.0
libtpu: 0.0.40
codegen_flags: <defaults>
</compile_context>

<pallas_src>
import functools

import jax
import jax.numpy as jnp
from jax import lax
from jax.experimental import pallas as pl
from jax.experimental.pallas import tpu as pltpu

N_CH1 = 40      # conv channel count fixed by the module (n_ch1)
K1 = 13         # temporal kernel width of conv1
POOL_W = 10     # avg_pool2d kernel (1, 10)
POOL_S = 2      # avg_pool2d stride (1, 2)
BN_EPS = 1e-5
LANE = 128
SUBL = 8


def _round_up(v, m):
    return ((v + m - 1) // m) * m


def _tpu_flavor():
    """Best-effort chip detection; fall back to the most conservative (v7x-like) settings."""
    try:
        kind = jax.devices()[0].device_kind.lower()
    except Exception:
        return "v7"
    if "v7" in kind or "7x" in kind:
        return "v7"                       # 2 TensorCores, 64 MiB VMEM
    if "v5p" in kind or "v4" in kind:
        return "mega"                     # 2 TensorCores, 128 MiB VMEM
    if "v5" in kind or "v6" in kind:
        return "single"                   # 1 TensorCore, 128 MiB VMEM
    return "v7"


def _feature_kernel(x_ref, w1_ref, w2_ref, scale_ref, shift_ref, out_ref,
                    *, bblk, hp, h, wc_k, wvalid):
    """conv(1x13) -> conv(hx1) -> BN(eval, conv1 bias folded) -> square ->
    width-10 stride-1 window sums (shift tree).

    Emits the raw window sums; the stride-2 selection, /POOL_W and log fuse into the single
    host-side XLA pass that also flattens the FC input (only kept positions get logged).
    """
    h2 = hp - h + 1                       # conv2 output height (== 13)
    xs = x_ref[...]                       # (bblk, hp, wp_k)  width on lanes
    w1 = w1_ref[...]                      # (K1, 40)
    w2 = w2_ref[...]                      # (h, 40, 40)
    wp_k = xs.shape[-1]

    # One width->sublane relayout + one 40-lane broadcast (instead of one of each per tap).
    xb = jnp.broadcast_to(xs[..., None], (bblk, hp, wp_k, N_CH1))

    # ---- conv1 (1x13): 13 sublane-offset slices of the VMEM slab + VPU FMAs ----
    out1 = xb[:, :, 0:wc_k, :] * w1[0]
    for k in range(1, K1):
        out1 = out1 + xb[:, :, k:k + wc_k, :] * w1[k]      # (bblk, hp, wc_k, 40)

    # ---- conv2 (hx1): h accumulated wide-M MXU matmuls (M = bblk*h2*wc_k, K = 40) ----
    # r-shifted LHS slabs are leading-dim slices + free reshapes (wc_k % 8 == 0): no scratch,
    # no copy loops, no inter-sample garbage rows.
    m = bblk * h2 * wc_k
    acc = jnp.zeros((m, N_CH1), jnp.float32)
    for r in range(h):
        lhs = out1[:, r:r + h2, :, :].reshape(m, N_CH1)
        acc = acc + jnp.dot(lhs, w2[r], preferred_element_type=jnp.float32)

    # ---- BatchNorm (eval, folded incl. conv1 bias) + square ----
    bn = acc * scale_ref[...] + shift_ref[...]
    sq = (bn * bn).reshape(bblk, h2, wc_k, N_CH1)          # free leading-dim split

    # ---- width-10 window sums via shift tree (4 adds, offsets 1/2/4/8) ----
    L = wc_k
    s2 = sq[:, :, 0:L - 1, :] + sq[:, :, 1:L, :]           # window 2
    s4 = s2[:, :, 0:L - 3, :] + s2[:, :, 2:L - 1, :]       # window 4
    s8 = s4[:, :, 0:L - 7, :] + s4[:, :, 4:L - 3, :]       # window 8
    s10 = s8[:, :, 0:L - 9, :] + s2[:, :, 8:L - 1, :]      # window 10
    out_ref[...] = s10[:, :, 0:wvalid, :]                  # (bblk, h2, wvalid, 40)


def _fc_kernel(x_ref, w_ref, b_ref, o_ref):
    """K-tiled FC; the lane-dense (B, 128) output block is resident across the K grid axis."""
    @pl.when(pl.program_id(0) == 0)
    def _():
        o_ref[...] = jnp.broadcast_to(b_ref[...], o_ref.shape)
    o_ref[...] += jnp.dot(x_ref[...], w_ref[...], preferred_element_type=jnp.float32)


def shallow_convnet_forward(x, p):
    """x: (B, input_ch, T, 1) float32 (same pre-permute layout as the torch module)."""
    B, H, T, _ = x.shape
    Hp = H + 12                       # conv1 output height (padding=(6, .))
    Wc = T + 2                        # conv1 output width  (T + 2*7 - 13 + 1)
    H2 = Hp - H + 1                   # conv2 output height == 13
    Wvalid = Wc - POOL_W + 1          # stride-1 pooling positions
    Wpool = (Wc - POOL_W) // POOL_S + 1
    Wc_k = _round_up(Wc, SUBL)        # sublane-pad conv width (extra cols never pooled)
    Wp_k = Wc_k + K1 - 1

    flavor = _tpu_flavor()
    n_tc = 2 if flavor in ("v7", "mega") else 1
    budget = (14 if flavor == "v7" else 28) * 1024 * 1024            # per-block activations
    vmem_limit = (48 if flavor == "v7" else 64) * 1024 * 1024        # <= physical VMEM

    # ---- per-sample VMEM bytes, including 40->128 lane padding, double-buffered I/O blocks
    # and the live activation temporaries ----
    in_blk = _round_up(Hp, SUBL) * _round_up(Wp_k, LANE) * 4
    xb_b = Hp * _round_up(Wp_k, SUBL) * LANE * 4                     # broadcast input slab
    out1_b = Hp * Wc_k * LANE * 4                                    # conv1 output
    acc_b = H2 * Wc_k * LANE * 4                                     # acc / bn / sq / tree
    out_blk = H2 * _round_up(Wvalid, SUBL) * LANE * 4
    per_sample = 2 * in_blk + xb_b + out1_b + 5 * acc_b + 2 * out_blk

    cap = max(1, budget // per_sample)
    min_prog = n_tc if B >= n_tc else 1   # no forced grid split on single-TC v5e/v6e
    nb = max(min_prog, pl.cdiv(B, cap))
    Bblk = pl.cdiv(B, nb)
    nb = pl.cdiv(B, Bblk)
    if n_tc > 1:
        nb = _round_up(nb, n_tc)          # even split across TensorCores
    B_pad = nb * Bblk

    # permute(0,3,1,2) -> (B,1,H,T); squeeze; conv1 padding (6, 7) + width pad to Wc_k.
    x0 = x[..., 0].astype(jnp.float32)
    x3 = jnp.pad(x0, ((0, B_pad - B), (6, 6), (7, 7 + (Wc_k - Wc))))  # (B_pad, Hp, Wp_k)

    # ---- fold torch-layout parameters for the kernel ----
    w1_k = jnp.transpose(p["w1"][:, 0, 0, :], (1, 0))                 # (13, 40)
    w2_k = jnp.transpose(p["w2"][:, :, :, 0], (2, 1, 0))              # (H, ci, co)
    scale = p["gamma"] / jnp.sqrt(p["run_var"] + BN_EPS)
    c2b = jnp.einsum("oir,i->o", p["w2"][:, :, :, 0], p["b1"])        # conv1 bias through conv2
    shift = p["beta"] - p["run_mean"] * scale + scale * c2b
    scale_k = scale.reshape(1, N_CH1)
    shift_k = shift.reshape(1, N_CH1)

    feat_flops = (2 * B_pad * Hp * Wc_k * N_CH1 * K1
                  + 2 * B_pad * H2 * Wc_k * N_CH1 * N_CH1 * H
                  + 8 * B_pad * H2 * Wc_k * N_CH1)
    feat = pl.pallas_call(
        functools.partial(_feature_kernel, bblk=Bblk, hp=Hp, h=H, wc_k=Wc_k, wvalid=Wvalid),
        out_shape=jax.ShapeDtypeStruct((B_pad, H2, Wvalid, N_CH1), jnp.float32),
        grid=(nb,),
        in_specs=[
            pl.BlockSpec((Bblk, Hp, Wp_k), lambda b: (b, 0, 0)),
            pl.BlockSpec((K1, N_CH1), lambda b: (0, 0)),
            pl.BlockSpec((H, N_CH1, N_CH1), lambda b: (0, 0, 0)),
            pl.BlockSpec((1, N_CH1), lambda b: (0, 0)),
            pl.BlockSpec((1, N_CH1), lambda b: (0, 0)),
        ],
        out_specs=pl.BlockSpec((Bblk, H2, Wvalid, N_CH1), lambda b: (b, 0, 0, 0)),
        compiler_params=pltpu.CompilerParams(
            dimension_semantics=("parallel",),
            vmem_limit_bytes=vmem_limit),
        cost_estimate=pl.CostEstimate(
            flops=feat_flops,
            transcendentals=0,
            bytes_accessed=(x3.size + B_pad * H2 * Wvalid * N_CH1
                            + K1 * N_CH1 + H * N_CH1 * N_CH1 + 2 * N_CH1) * 4),
    )(x3, w1_k, w2_k, scale_k, shift_k)

    # stride-2 selection, /POOL_W, log and FC-order flatten: one fused XLA pass over a tiny
    # tensor; padded batch rows are dropped before the log.
    sel = feat[:B, :, 0:POOL_S * Wpool:POOL_S, :]                     # (B, H2, Wpool, 40)
    flat = jnp.log(sel * (1.0 / POOL_W)).reshape(B, H2 * Wpool * N_CH1)

    # TODO(synk): F.dropout(p=0.5, training=True) is stochastic; identity (eval mode) used here.

    n_classes = p["wfc"].shape[0]
    fc_ch = H2 * Wpool * N_CH1
    NCP = 128                                   # lane-dense FC output, sliced back below
    K_TILE = min(4096, _round_up(fc_ch, LANE))  # K-tiled so the FC scales with T on v7x
    fc_ch_pad = _round_up(fc_ch, K_TILE)
    nk = fc_ch_pad // K_TILE

    # pre-permute the FC weight once: torch flatten order (c, i2, p) -> kernel order (i2, p, c)
    wfc_perm = jnp.transpose(
        p["wfc"].reshape(n_classes, N_CH1, H2, Wpool), (0, 2, 3, 1)).reshape(n_classes, fc_ch)
    wfc_pad = jnp.zeros((fc_ch_pad, NCP), jnp.float32).at[:fc_ch, :n_classes].set(wfc_perm.T)
    bfc_pad = jnp.zeros((1, NCP), jnp.float32).at[:, :n_classes].set(p["bfc"].reshape(1, -1))
    flat_pad = jnp.pad(flat, ((0, 0), (0, fc_ch_pad - fc_ch)))

    out = pl.pallas_call(
        _fc_kernel,
        out_shape=jax.ShapeDtypeStruct((B, NCP), jnp.float32),
        grid=(nk,),
        in_specs=[
            pl.BlockSpec((B, K_TILE), lambda k: (0, k)),
            pl.BlockSpec((K_TILE, NCP), lambda k: (k, 0)),
            pl.BlockSpec((1, NCP), lambda k: (0, 0)),
        ],
        out_specs=pl.BlockSpec((B, NCP), lambda k: (0, 0)),
        compiler_params=pltpu.CompilerParams(
            dimension_semantics=("arbitrary",),
            vmem_limit_bytes=vmem_limit),
        cost_estimate=pl.CostEstimate(
            flops=2 * B * fc_ch_pad * NCP, transcendentals=0,
            bytes_accessed=(B * fc_ch_pad + fc_ch_pad * NCP + B * NCP) * 4),
    )(flat_pad, wfc_pad, bfc_pad)
    return out[:, :n_classes]


def _reference_forward(x, p):
    """Pure-JAX (XLA) reference mirroring the torch forward (eval-mode BN, no dropout)."""
    dn = ("NCHW", "OIHW", "NCHW")
    h = jnp.transpose(x, (0, 3, 1, 2)).astype(jnp.float32)            # (B, 1, H, T)
    h = lax.conv_general_dilated(h, p["w1"], (1, 1), ((6, 6), (7, 7)),
                                 dimension_numbers=dn, precision=lax.Precision.HIGHEST)
    h = h + p["b1"].reshape(1, -1, 1, 1)
    h = lax.conv_general_dilated(h, p["w2"], (1, 1), "VALID",
                                 dimension_numbers=dn, precision=lax.Precision.HIGHEST)
    scale = p["gamma"] / jnp.sqrt(p["run_var"] + BN_EPS)
    shift = p["beta"] - p["run_mean"] * scale
    h = h * scale.reshape(1, -1, 1, 1) + shift.reshape(1, -1, 1, 1)
    h = h * h
    h = lax.reduce_window(h, 0.0, lax.add, (1, 1, 1, POOL_W),
                          (1, 1, 1, POOL_S), "VALID") / POOL_W
    h = jnp.log(h)
    flat = h.reshape(h.shape[0], -1)
    return jnp.dot(flat, p["wfc"].T, precision=lax.Precision.HIGHEST) + p["bfc"]


if __name__ == "__main__":
    B, input_ch, T, n_classes = 2, 4, 16, 3
    Wpool = ((T + 2) - POOL_W) // POOL_S + 1
    fc_ch = N_CH1 * 13 * Wpool          # 40 * 13 * 5 = 2600

    key = jax.random.PRNGKey(0)
    ks = jax.random.split(key, 10)
    params = {
        # torch layouts: conv weights OIHW, fc weight (out, in)
        "w1": 0.1 * jax.random.normal(ks[0], (N_CH1, 1, 1, K1), jnp.float32),
        "b1": 0.1 * jax.random.normal(ks[1], (N_CH1,), jnp.float32),
        "w2": 0.1 * jax.random.normal(ks[2], (N_CH1, N_CH1, input_ch, 1), jnp.float32),
        "gamma": 1.0 + 0.1 * jax.random.normal(ks[3], (N_CH1,), jnp.float32),
        "beta": 0.1 * jax.random.normal(ks[4], (N_CH1,), jnp.float32),
        "run_mean": 0.1 * jax.random.normal(ks[5], (N_CH1,), jnp.float32),
        "run_var": 1.0 + 0.5 * jax.random.uniform(ks[6], (N_CH1,), jnp.float32),
        "wfc": 0.05 * jax.random.normal(ks[7], (n_classes, fc_ch), jnp.float32),
        "bfc": 0.05 * jax.random.normal(ks[8], (n_classes,), jnp.float32),
    }
    x = jax.random.normal(ks[9], (B, input_ch, T, 1), jnp.float32)

    out = jax.block_until_ready(shallow_convnet_forward(x, params))
    ref = jax.block_until_ready(_reference_forward(x, params))

    assert out.shape == (B, n_classes)
    if not jnp.allclose(out, ref, rtol=5e-3, atol=5e-3):
        raise AssertionError(
            f"Pallas/reference mismatch, max abs diff = {jnp.max(jnp.abs(out - ref))}")
    print("KERNEL_OK")
</pallas_src>

<mosaic_0001>
module attributes {stable_mosaic.version = 11 : i64} {
  func.func @_feature_kernel(%arg0: i32, %arg1: memref<1x16x36xf32, #tpu.memory_space<vmem>>, %arg2: memref<13x40xf32, #tpu.memory_space<vmem>>, %arg3: memref<4x40x40xf32, #tpu.memory_space<vmem>>, %arg4: memref<1x40xf32, #tpu.memory_space<vmem>>, %arg5: memref<1x40xf32, #tpu.memory_space<vmem>>, %arg6: memref<1x13x9x40xf32, #tpu.memory_space<vmem>>) attributes {dimension_semantics = [#tpu.dimension_semantics<parallel>], iteration_bounds = array<i64: 2>, scalar_prefetch = 0 : i64, scratch_operands = 0 : i64, tpu.core_type = #tpu.core_type<tc>, window_params = [{transform_indices = @transform_0, window_bounds = array<i64: 1, 16, 36>}, {pipeline_mode = #tpu.pipeline_mode<synchronous>, transform_indices = @transform_1, window_bounds = array<i64: 13, 40>}, {pipeline_mode = #tpu.pipeline_mode<synchronous>, transform_indices = @transform_2, window_bounds = array<i64: 4, 40, 40>}, {pipeline_mode = #tpu.pipeline_mode<synchronous>, transform_indices = @transform_3, window_bounds = array<i64: 1, 40>}, {pipeline_mode = #tpu.pipeline_mode<synchronous>, transform_indices = @transform_4, window_bounds = array<i64: 1, 40>}, {transform_indices = @transform_5, window_bounds = array<i64: 1, 13, 9, 40>}]} {
    %c0 = arith.constant 0 : index
    %c0_0 = arith.constant 0 : index
    %c0_1 = arith.constant 0 : index
    %0 = vector.load %arg1[%c0, %c0_0, %c0_1] : memref<1x16x36xf32, #tpu.memory_space<vmem>>, vector<1x16x36xf32>
    %c0_2 = arith.constant 0 : index
    %c0_3 = arith.constant 0 : index
    %1 = vector.load %arg2[%c0_2, %c0_3] : memref<13x40xf32, #tpu.memory_space<vmem>>, vector<13x40xf32>
    %c0_4 = arith.constant 0 : index
    %c0_5 = arith.constant 0 : index
    %c0_6 = arith.constant 0 : index
    %2 = vector.load %arg3[%c0_4, %c0_5, %c0_6] : memref<4x40x40xf32, #tpu.memory_space<vmem>>, vector<4x40x40xf32>
    %3 = vector.shape_cast %0 : vector<1x16x36xf32> to vector<1x16x36x1xf32>
    %4 = vector.shape_cast %3 : vector<1x16x36x1xf32> to vector<1x16x36x1xf32>
    %5 = vector.broadcast %4 : vector<1x16x36x1xf32> to vector<1x16x36x40xf32>
    %6 = vector.extract_strided_slice %5 {offsets = [0, 0, 0, 0], sizes = [1, 16, 24, 40], strides = [1, 1, 1, 1]} : vector<1x16x36x40xf32> to vector<1x16x24x40xf32>
    %7 = vector.extract_strided_slice %1 {offsets = [0, 0], sizes = [1, 40], strides = [1, 1]} : vector<13x40xf32> to vector<1x40xf32>
    %8 = vector.shape_cast %7 : vector<1x40xf32> to vector<40xf32>
    %9 = vector.shape_cast %8 : vector<40xf32> to vector<1x1x1x40xf32>
    %10 = vector.broadcast %9 : vector<1x1x1x40xf32> to vector<1x16x24x40xf32>
    %11 = arith.mulf %6, %10 : vector<1x16x24x40xf32>
    %12 = vector.extract_strided_slice %5 {offsets = [0, 0, 1, 0], sizes = [1, 16, 24, 40], strides = [1, 1, 1, 1]} : vector<1x16x36x40xf32> to vector<1x16x24x40xf32>
    %13 = vector.extract_strided_slice %1 {offsets = [1, 0], sizes = [1, 40], strides = [1, 1]} : vector<13x40xf32> to vector<1x40xf32>
    %14 = vector.shape_cast %13 : vector<1x40xf32> to vector<40xf32>
    %15 = vector.shape_cast %14 : vector<40xf32> to vector<1x1x1x40xf32>
    %16 = vector.broadcast %15 : vector<1x1x1x40xf32> to vector<1x16x24x40xf32>
    %17 = arith.mulf %12, %16 : vector<1x16x24x40xf32>
    %18 = arith.addf %11, %17 : vector<1x16x24x40xf32>
    %19 = vector.extract_strided_slice %5 {offsets = [0, 0, 2, 0], sizes = [1, 16, 24, 40], strides = [1, 1, 1, 1]} : vector<1x16x36x40xf32> to vector<1x16x24x40xf32>
    %20 = vector.extract_strided_slice %1 {offsets = [2, 0], sizes = [1, 40], strides = [1, 1]} : vector<13x40xf32> to vector<1x40xf32>
    %21 = vector.shape_cast %20 : vector<1x40xf32> to vector<40xf32>
    %22 = vector.shape_cast %21 : vector<40xf32> to vector<1x1x1x40xf32>
    %23 = vector.broadcast %22 : vector<1x1x1x40xf32> to vector<1x16x24x40xf32>
    %24 = arith.mulf %19, %23 : vector<1x16x24x40xf32>
    %25 = arith.addf %18, %24 : vector<1x16x24x40xf32>
    %26 = vector.extract_strided_slice %5 {offsets = [0, 0, 3, 0], sizes = [1, 16, 24, 40], strides = [1, 1, 1, 1]} : vector<1x16x36x40xf32> to vector<1x16x24x40xf32>
    %27 = vector.extract_strided_slice %1 {offsets = [3, 0], sizes = [1, 40], strides = [1, 1]} : vector<13x40xf32> to vector<1x40xf32>
    %28 = vector.shape_cast %27 : vector<1x40xf32> to vector<40xf32>
    %29 = vector.shape_cast %28 : vector<40xf32> to vector<1x1x1x40xf32>
    %30 = vector.broadcast %29 : vector<1x1x1x40xf32> to vector<1x16x24x40xf32>
    %31 = arith.mulf %26, %30 : vector<1x16x24x40xf32>
    %32 = arith.addf %25, %31 : vector<1x16x24x40xf32>
    %33 = vector.extract_strided_slice %5 {offsets = [0, 0, 4, 0], sizes = [1, 16, 24, 40], strides = [1, 1, 1, 1]} : vector<1x16x36x40xf32> to vector<1x16x24x40xf32>
    %34 = vector.extract_strided_slice %1 {offsets = [4, 0], sizes = [1, 40], strides = [1, 1]} : vector<13x40xf32> to vector<1x40xf32>
    %35 = vector.shape_cast %34 : vector<1x40xf32> to vector<40xf32>
    %36 = vector.shape_cast %35 : vector<40xf32> to vector<1x1x1x40xf32>
    %37 = vector.broadcast %36 : vector<1x1x1x40xf32> to vector<1x16x24x40xf32>
    %38 = arith.mulf %33, %37 : vector<1x16x24x40xf32>
    %39 = arith.addf %32, %38 : vector<1x16x24x40xf32>
    %40 = vector.extract_strided_slice %5 {offsets = [0, 0, 5, 0], sizes = [1, 16, 24, 40], strides = [1, 1, 1, 1]} : vector<1x16x36x40xf32> to vector<1x16x24x40xf32>
    %41 = vector.extract_strided_slice %1 {offsets = [5, 0], sizes = [1, 40], strides = [1, 1]} : vector<13x40xf32> to vector<1x40xf32>
    %42 = vector.shape_cast %41 : vector<1x40xf32> to vector<40xf32>
    %43 = vector.shape_cast %42 : vector<40xf32> to vector<1x1x1x40xf32>
    %44 = vector.broadcast %43 : vector<1x1x1x40xf32> to vector<1x16x24x40xf32>
    %45 = arith.mulf %40, %44 : vector<1x16x24x40xf32>
    %46 = arith.addf %39, %45 : vector<1x16x24x40xf32>
    %47 = vector.extract_strided_slice %5 {offsets = [0, 0, 6, 0], sizes = [1, 16, 24, 40], strides = [1, 1, 1, 1]} : vector<1x16x36x40xf32> to vector<1x16x24x40xf32>
    %48 = vector.extract_strided_slice %1 {offsets = [6, 0], sizes = [1, 40], strides = [1, 1]} : vector<13x40xf32> to vector<1x40xf32>
    %49 = vector.shape_cast %48 : vector<1x40xf32> to vector<40xf32>
    %50 = vector.shape_cast %49 : vector<40xf32> to vector<1x1x1x40xf32>
    %51 = vector.broadcast %50 : vector<1x1x1x40xf32> to vector<1x16x24x40xf32>
    %52 = arith.mulf %47, %51 : vector<1x16x24x40xf32>
    %53 = arith.addf %46, %52 : vector<1x16x24x40xf32>
    %54 = vector.extract_strided_slice %5 {offsets = [0, 0, 7, 0], sizes = [1, 16, 24, 40], strides = [1, 1, 1, 1]} : vector<1x16x36x40xf32> to vector<1x16x24x40xf32>
    %55 = vector.extract_strided_slice %1 {offsets = [7, 0], sizes = [1, 40], strides = [1, 1]} : vector<13x40xf32> to vector<1x40xf32>
    %56 = vector.shape_cast %55 : vector<1x40xf32> to vector<40xf32>
    %57 = vector.shape_cast %56 : vector<40xf32> to vector<1x1x1x40xf32>
    %58 = vector.broadcast %57 : vector<1x1x1x40xf32> to vector<1x16x24x40xf32>
    %59 = arith.mulf %54, %58 : vector<1x16x24x40xf32>
    %60 = arith.addf %53, %59 : vector<1x16x24x40xf32>
    %61 = vector.extract_strided_slice %5 {offsets = [0, 0, 8, 0], sizes = [1, 16, 24, 40], strides = [1, 1, 1, 1]} : vector<1x16x36x40xf32> to vector<1x16x24x40xf32>
    %62 = vector.extract_strided_slice %1 {offsets = [8, 0], sizes = [1, 40], strides = [1, 1]} : vector<13x40xf32> to vector<1x40xf32>
    %63 = vector.shape_cast %62 : vector<1x40xf32> to vector<40xf32>
    %64 = vector.shape_cast %63 : vector<40xf32> to vector<1x1x1x40xf32>
    %65 = vector.broadcast %64 : vector<1x1x1x40xf32> to vector<1x16x24x40xf32>
    %66 = arith.mulf %61, %65 : vector<1x16x24x40xf32>
    %67 = arith.addf %60, %66 : vector<1x16x24x40xf32>
    %68 = vector.extract_strided_slice %5 {offsets = [0, 0, 9, 0], sizes = [1, 16, 24, 40], strides = [1, 1, 1, 1]} : vector<1x16x36x40xf32> to vector<1x16x24x40xf32>
    %69 = vector.extract_strided_slice %1 {offsets = [9, 0], sizes = [1, 40], strides = [1, 1]} : vector<13x40xf32> to vector<1x40xf32>
    %70 = vector.shape_cast %69 : vector<1x40xf32> to vector<40xf32>
    %71 = vector.shape_cast %70 : vector<40xf32> to vector<1x1x1x40xf32>
    %72 = vector.broadcast %71 : vector<1x1x1x40xf32> to vector<1x16x24x40xf32>
    %73 = arith.mulf %68, %72 : vector<1x16x24x40xf32>
    %74 = arith.addf %67, %73 : vector<1x16x24x40xf32>
    %75 = vector.extract_strided_slice %5 {offsets = [0, 0, 10, 0], sizes = [1, 16, 24, 40], strides = [1, 1, 1, 1]} : vector<1x16x36x40xf32> to vector<1x16x24x40xf32>
    %76 = vector.extract_strided_slice %1 {offsets = [10, 0], sizes = [1, 40], strides = [1, 1]} : vector<13x40xf32> to vector<1x40xf32>
    %77 = vector.shape_cast %76 : vector<1x40xf32> to vector<40xf32>
    %78 = vector.shape_cast %77 : vector<40xf32> to vector<1x1x1x40xf32>
    %79 = vector.broadcast %78 : vector<1x1x1x40xf32> to vector<1x16x24x40xf32>
    %80 = arith.mulf %75, %79 : vector<1x16x24x40xf32>
    %81 = arith.addf %74, %80 : vector<1x16x24x40xf32>
    %82 = vector.extract_strided_slice %5 {offsets = [0, 0, 11, 0], sizes = [1, 16, 24, 40], strides = [1, 1, 1, 1]} : vector<1x16x36x40xf32> to vector<1x16x24x40xf32>
    %83 = vector.extract_strided_slice %1 {offsets = [11, 0], sizes = [1, 40], strides = [1, 1]} : vector<13x40xf32> to vector<1x40xf32>
    %84 = vector.shape_cast %83 : vector<1x40xf32> to vector<40xf32>
    %85 = vector.shape_cast %84 : vector<40xf32> to vector<1x1x1x40xf32>
    %86 = vector.broadcast %85 : vector<1x1x1x40xf32> to vector<1x16x24x40xf32>
    %87 = arith.mulf %82, %86 : vector<1x16x24x40xf32>
    %88 = arith.addf %81, %87 : vector<1x16x24x40xf32>
    %89 = vector.extract_strided_slice %5 {offsets = [0, 0, 12, 0], sizes = [1, 16, 24, 40], strides = [1, 1, 1, 1]} : vector<1x16x36x40xf32> to vector<1x16x24x40xf32>
    %90 = vector.extract_strided_slice %1 {offsets = [12, 0], sizes = [1, 40], strides = [1, 1]} : vector<13x40xf32> to vector<1x40xf32>
    %91 = vector.shape_cast %90 : vector<1x40xf32> to vector<40xf32>
    %92 = vector.shape_cast %91 : vector<40xf32> to vector<1x1x1x40xf32>
    %93 = vector.broadcast %92 : vector<1x1x1x40xf32> to vector<1x16x24x40xf32>
    %94 = arith.mulf %89, %93 : vector<1x16x24x40xf32>
    %95 = arith.addf %88, %94 : vector<1x16x24x40xf32>
    %cst = arith.constant 0.000000e+00 : f32
    %96 = vector.broadcast %cst : f32 to vector<312x40xf32>
    %97 = vector.extract_strided_slice %95 {offsets = [0, 0, 0, 0], sizes = [1, 13, 24, 40], strides = [1, 1, 1, 1]} : vector<1x16x24x40xf32> to vector<1x13x24x40xf32>
    %98 = vector.shape_cast %97 : vector<1x13x24x40xf32> to vector<312x40xf32>
    %99 = vector.extract_strided_slice %2 {offsets = [0, 0, 0], sizes = [1, 40, 40], strides = [1, 1, 1]} : vector<4x40x40xf32> to vector<1x40x40xf32>
    %100 = vector.shape_cast %99 : vector<1x40x40xf32> to vector<40x40xf32>
    %cst_7 = arith.constant dense<0.000000e+00> : vector<312x40xf32>
    %101 = tpu.matmul %98, %100, %cst_7 {dimension_numbers = #tpu.dot_dimension_numbers<[1], [0], [0], [1], [0, 0, 1, 1], [], []>} : vector<312x40xf32>, vector<40x40xf32>, vector<312x40xf32> -> vector<312x40xf32>
    %102 = arith.addf %96, %101 : vector<312x40xf32>
    %103 = vector.extract_strided_slice %95 {offsets = [0, 1, 0, 0], sizes = [1, 13, 24, 40], strides = [1, 1, 1, 1]} : vector<1x16x24x40xf32> to vector<1x13x24x40xf32>
    %104 = vector.shape_cast %103 : vector<1x13x24x40xf32> to vector<312x40xf32>
    %105 = vector.extract_strided_slice %2 {offsets = [1, 0, 0], sizes = [1, 40, 40], strides = [1, 1, 1]} : vector<4x40x40xf32> to vector<1x40x40xf32>
    %106 = vector.shape_cast %105 : vector<1x40x40xf32> to vector<40x40xf32>
    %cst_8 = arith.constant dense<0.000000e+00> : vector<312x40xf32>
    %107 = tpu.matmul %104, %106, %cst_8 {dimension_numbers = #tpu.dot_dimension_numbers<[1], [0], [0], [1], [0, 0, 1, 1], [], []>} : vector<312x40xf32>, vector<40x40xf32>, vector<312x40xf32> -> vector<312x40xf32>
    %108 = arith.addf %102, %107 : vector<312x40xf32>
    %109 = vector.extract_strided_slice %95 {offsets = [0, 2, 0, 0], sizes = [1, 13, 24, 40], strides = [1, 1, 1, 1]} : vector<1x16x24x40xf32> to vector<1x13x24x40xf32>
    %110 = vector.shape_cast %109 : vector<1x13x24x40xf32> to vector<312x40xf32>
    %111 = vector.extract_strided_slice %2 {offsets = [2, 0, 0], sizes = [1, 40, 40], strides = [1, 1, 1]} : vector<4x40x40xf32> to vector<1x40x40xf32>
    %112 = vector.shape_cast %111 : vector<1x40x40xf32> to vector<40x40xf32>
    %cst_9 = arith.constant dense<0.000000e+00> : vector<312x40xf32>
    %113 = tpu.matmul %110, %112, %cst_9 {dimension_numbers = #tpu.dot_dimension_numbers<[1], [0], [0], [1], [0, 0, 1, 1], [], []>} : vector<312x40xf32>, vector<40x40xf32>, vector<312x40xf32> -> vector<312x40xf32>
    %114 = arith.addf %108, %113 : vector<312x40xf32>
    %115 = vector.extract_strided_slice %95 {offsets = [0, 3, 0, 0], sizes = [1, 13, 24, 40], strides = [1, 1, 1, 1]} : vector<1x16x24x40xf32> to vector<1x13x24x40xf32>
    %116 = vector.shape_cast %115 : vector<1x13x24x40xf32> to vector<312x40xf32>
    %117 = vector.extract_strided_slice %2 {offsets = [3, 0, 0], sizes = [1, 40, 40], strides = [1, 1, 1]} : vector<4x40x40xf32> to vector<1x40x40xf32>
    %118 = vector.shape_cast %117 : vector<1x40x40xf32> to vector<40x40xf32>
    %cst_10 = arith.constant dense<0.000000e+00> : vector<312x40xf32>
    %119 = tpu.matmul %116, %118, %cst_10 {dimension_numbers = #tpu.dot_dimension_numbers<[1], [0], [0], [1], [0, 0, 1, 1], [], []>} : vector<312x40xf32>, vector<40x40xf32>, vector<312x40xf32> -> vector<312x40xf32>
    %120 = arith.addf %114, %119 : vector<312x40xf32>
    %c0_11 = arith.constant 0 : index
    %c0_12 = arith.constant 0 : index
    %121 = vector.load %arg4[%c0_11, %c0_12] : memref<1x40xf32, #tpu.memory_space<vmem>>, vector<1x40xf32>
    %122 = vector.broadcast %121 : vector<1x40xf32> to vector<312x40xf32>
    %123 = arith.mulf %120, %122 : vector<312x40xf32>
    %c0_13 = arith.constant 0 : index
    %c0_14 = arith.constant 0 : index
    %124 = vector.load %arg5[%c0_13, %c0_14] : memref<1x40xf32, #tpu.memory_space<vmem>>, vector<1x40xf32>
    %125 = vector.broadcast %124 : vector<1x40xf32> to vector<312x40xf32>
    %126 = arith.addf %123, %125 : vector<312x40xf32>
    %127 = arith.mulf %126, %126 : vector<312x40xf32>
    %128 = vector.shape_cast %127 : vector<312x40xf32> to vector<1x13x24x40xf32>
    %129 = vector.extract_strided_slice %128 {offsets = [0, 0, 0, 0], sizes = [1, 13, 23, 40], strides = [1, 1, 1, 1]} : vector<1x13x24x40xf32> to vector<1x13x23x40xf32>
    %130 = vector.extract_strided_slice %128 {offsets = [0, 0, 1, 0], sizes = [1, 13, 23, 40], strides = [1, 1, 1, 1]} : vector<1x13x24x40xf32> to vector<1x13x23x40xf32>
    %131 = arith.addf %129, %130 : vector<1x13x23x40xf32>
    %132 = vector.extract_strided_slice %131 {offsets = [0, 0, 0, 0], sizes = [1, 13, 21, 40], strides = [1, 1, 1, 1]} : vector<1x13x23x40xf32> to vector<1x13x21x40xf32>
    %133 = vector.extract_strided_slice %131 {offsets = [0, 0, 2, 0], sizes = [1, 13, 21, 40], strides = [1, 1, 1, 1]} : vector<1x13x23x40xf32> to vector<1x13x21x40xf32>
    %134 = arith.addf %132, %133 : vector<1x13x21x40xf32>
    %135 = vector.extract_strided_slice %134 {offsets = [0, 0, 0, 0], sizes = [1, 13, 17, 40], strides = [1, 1, 1, 1]} : vector<1x13x21x40xf32> to vector<1x13x17x40xf32>
    %136 = vector.extract_strided_slice %134 {offsets = [0, 0, 4, 0], sizes = [1, 13, 17, 40], strides = [1, 1, 1, 1]} : vector<1x13x21x40xf32> to vector<1x13x17x40xf32>
    %137 = arith.addf %135, %136 : vector<1x13x17x40xf32>
    %138 = vector.extract_strided_slice %137 {offsets = [0, 0, 0, 0], sizes = [1, 13, 15, 40], strides = [1, 1, 1, 1]} : vector<1x13x17x40xf32> to vector<1x13x15x40xf32>
    %139 = vector.extract_strided_slice %131 {offsets = [0, 0, 8, 0], sizes = [1, 13, 15, 40], strides = [1, 1, 1, 1]} : vector<1x13x23x40xf32> to vector<1x13x15x40xf32>
    %140 = arith.addf %138, %139 : vector<1x13x15x40xf32>
    %141 = vector.extract_strided_slice %140 {offsets = [0, 0, 0, 0], sizes = [1, 13, 9, 40], strides = [1, 1, 1, 1]} : vector<1x13x15x40xf32> to vector<1x13x9x40xf32>
    %c0_15 = arith.constant 0 : index
    %c0_16 = arith.constant 0 : index
    %c0_17 = arith.constant 0 : index
    %c0_18 = arith.constant 0 : index
    %142 = vector.load %arg6[%c0_15, %c0_16, %c0_17, %c0_18] : memref<1x13x9x40xf32, #tpu.memory_space<vmem>>, vector<1x13x9x40xf32>
    tpu.vector_store %arg6[%c0_15, %c0_16, %c0_17, %c0_18], %141 {strides = array<i32>} : memref<1x13x9x40xf32, #tpu.memory_space<vmem>>, vector<1x13x9x40xf32>,
    return
  }
  func.func @transform_0(%arg0: i32) -> (i32, i32, i32) {
    %c0_i32 = arith.constant 0 : i32
    %c0_i32_0 = arith.constant 0 : i32
    %c0_i32_1 = arith.constant 0 : i32
    return %arg0, %c0_i32, %c0_i32_0 : i32, i32, i32
  }
  func.func @transform_1(%arg0: i32) -> (i32, i32) {
    %c0_i32 = arith.constant 0 : i32
    %c0_i32_0 = arith.constant 0 : i32
    %c0_i32_1 = arith.constant 0 : i32
    return %c0_i32, %c0_i32_0 : i32, i32
  }
  func.func @transform_2(%arg0: i32) -> (i32, i32, i32) {
    %c0_i32 = arith.constant 0 : i32
    %c0_i32_0 = arith.constant 0 : i32
    %c0_i32_1 = arith.constant 0 : i32
    %c0_i32_2 = arith.constant 0 : i32
    return %c0_i32, %c0_i32_0, %c0_i32_1 : i32, i32, i32
  }
  func.func @transform_3(%arg0: i32) -> (i32, i32) {
    %c0_i32 = arith.constant 0 : i32
    %c0_i32_0 = arith.constant 0 : i32
    %c0_i32_1 = arith.constant 0 : i32
    return %c0_i32, %c0_i32_0 : i32, i32
  }
  func.func @transform_4(%arg0: i32) -> (i32, i32) {
    %c0_i32 = arith.constant 0 : i32
    %c0_i32_0 = arith.constant 0 : i32
    %c0_i32_1 = arith.constant 0 : i32
    return %c0_i32, %c0_i32_0 : i32, i32
  }
  func.func @transform_5(%arg0: i32) -> (i32, i32, i32, i32) {
    %c0_i32 = arith.constant 0 : i32
    %c0_i32_0 = arith.constant 0 : i32
    %c0_i32_1 = arith.constant 0 : i32
    %c0_i32_2 = arith.constant 0 : i32
    return %arg0, %c0_i32, %c0_i32_0, %c0_i32_1 : i32, i32, i32, i32
  }
}

</mosaic_0001>

<llo_original>
// kernel: tpu_custom_call.1
$region0: #{tpu_custom_call.1}
  #allocation0 [shape = 'u32[]', space=smem, size = 0x4, offset = 0x4, fixed_abs, tag = 'smem constant byte address 0x4 - core index']
  #allocation1 [shape = 'u32[144,128]{1,0:T(1,128)}', space=vmem, size = 0x12000, scoped, tag = 'internal scratch']
  %s0 = inlined_call_operand.hbm [shape: f32[2,16,36], index: 0, kind: input, shape index: {}]
  %s1 = inlined_call_operand.hbm [shape: f32[13,40], index: 1, kind: input, shape index: {}]
  %s2 = inlined_call_operand.hbm [shape: f32[4,40,40], index: 2, kind: input, shape index: {}]
  %s3 = inlined_call_operand.vmem [shape: f32[1,40], index: 3, kind: input, shape index: {}]
  %s4 = inlined_call_operand.vmem [shape: f32[1,40], index: 4, kind: input, shape index: {}]
  %s5 = inlined_call_operand.vmem [shape: f32[2,13,9,40], index: 5, kind: output, shape index: {}]
  %s6 = sld [smem:[#allocation0]]
  $region65: #{tpu_custom_call.1} parent=0
    _
  %s8 = ssub.s32 1, %s6
  %s9 = scalar_select 0, %s8, %s6
  $region1: #{tpu_custom_call.1} parent=0
    #allocation2 [shape = 'u8[16384]{0}', space=vmem, size = 0x4000, scoped, tag = 'input window, operand 0']
    #allocation3 [shape = 's32[2]{0}', space=sflag, size = 0x8, scoped, tag = 'scoped memory for tpu_custom_call.1']
    #allocation4 [shape = 'u8[8192]{0}', space=vmem, size = 0x2000, scoped, tag = 'input window, operand 1, single buffered']
    #allocation5 [shape = 's32[1]{0}', space=sflag, size = 0x4, scoped, tag = 'scoped memory for tpu_custom_call.1']
    #allocation6 [shape = 'u8[81920]{0}', space=vmem, size = 0x14000, scoped, tag = 'input window, operand 2, single buffered']
    %10 = vsyncpa [#allocation3], 0
    %s11 = scalar_lea.sflag [#allocation3], 1
    %12 = vsyncpa %s11, 0
    %13 = vsyncpa [#allocation5], 0
    loop: start=0, step=1, limit=4
    $region2: #{tpu_custom_call.1} parent=1 // loop_pre_header
      _
    $region3: #{tpu_custom_call.1} parent=1 // loop_header
      %s15 = sphi 0, %s19
      %p16 = scmp.ge.s32.totalorder %s15, 4
      %s25 = sphi 0, %s27
      %s28 = sphi 0, %s25
      %s29 = sphi 0, %s28
      %s45 = sphi 0, %s29
      %s49 = sphi 0, %s49
      %s51 = sphi 0, %s49
      %s52 = sphi 0, %s51
      %s66 = sphi 0, %s52
      %s70 = sphi 0, %s70
      %s72 = sphi 0, %s70
      %s73 = sphi 0, %s72
      %s87 = sphi 0, %s73
      %s91 = sphi 0, %s91
      %s93 = sphi 0, %s91
      %s94 = sphi 0, %s93
      %s108 = sphi 0, %s94
      %s112 = sphi 0, %s112
      %s114 = sphi 0, %s112
      %s115 = sphi 0, %s114
      %s129 = sphi 0, %s115
      %s135 = sphi 0, %s137
      %s138 = sphi 0, %s135
      %s139 = sphi 0, %s138
      %s155 = sphi 0, %s139
    $region4: #{tpu_custom_call.1} parent=1 // loop_header_branch
      %18 = sbr.rel (%p16) target = $region8
    $region5: #{tpu_custom_call.1} parent=1 // loop_body
      %s20 = ssub.s32 %s15, 1
      %s21 = ssub.s32 %s15, 2
      %s22 = sadd.s32 %s15, 1
      %s23 = ssub.s32 %s15, %s22
      %p24 = scmp.eq.s32.totalorder %s23, 0
      %s26 = sadd.s32 %s25, 1
      %s27 = scalar_select %p24, %s25, %s26
      %p30 = pneg %p24
      %p31 = scmp.eq.s32.totalorder %s15, 1
      %p32 = por %p30, %p31
      %p33 = scmp.ne.s32.totalorder %s25, %s28
      %p34 = scmp.eq.s32.totalorder %s15, 0
      %p35 = por %p33, %p34
      %p36 = scmp.ne.s32.totalorder %s25, %s28
      %p37 = scmp.eq.s32.totalorder %s20, 1
      %p38 = por %p36, %p37
      %p39 = scmp.ne.s32.totalorder %s28, %s29
      %p40 = scmp.eq.s32.totalorder %s20, 0
      %p41 = por %p39, %p40
      %p42 = scmp.ne.s32.totalorder %s28, %s29
      %p43 = scmp.eq.s32.totalorder %s21, 1
      %p44 = por %p42, %p43
      %p46 = scmp.ne.s32.totalorder %s29, %s45
      %p47 = scmp.eq.s32.totalorder %s21, 0
      %p48 = por %p46, %p47
      %s50 = sadd.s32 %s49, 1
      %p53 = scmp.eq.s32.totalorder %s15, 1
      %p54 = scmp.ne.s32.totalorder %s49, %s51
      %p55 = scmp.eq.s32.totalorder %s15, 0
      %p56 = por %p54, %p55
      %p57 = scmp.ne.s32.totalorder %s49, %s51
      %p58 = scmp.eq.s32.totalorder %s20, 1
      %p59 = por %p57, %p58
      %p60 = scmp.ne.s32.totalorder %s51, %s52
      %p61 = scmp.eq.s32.totalorder %s20, 0
      %p62 = por %p60, %p61
      %p63 = scmp.ne.s32.totalorder %s51, %s52
      %p64 = scmp.eq.s32.totalorder %s21, 1
      %p65 = por %p63, %p64
      %p67 = scmp.ne.s32.totalorder %s52, %s66
      %p68 = scmp.eq.s32.totalorder %s21, 0
      %p69 = por %p67, %p68
      %s71 = sadd.s32 %s70, 1
      %p74 = scmp.eq.s32.totalorder %s15, 1
      %p75 = scmp.ne.s32.totalorder %s70, %s72
      %p76 = scmp.eq.s32.totalorder %s15, 0
      %p77 = por %p75, %p76
      %p78 = scmp.ne.s32.totalorder %s70, %s72
      %p79 = scmp.eq.s32.totalorder %s20, 1
      %p80 = por %p78, %p79
      %p81 = scmp.ne.s32.totalorder %s72, %s73
      %p82 = scmp.eq.s32.totalorder %s20, 0
      %p83 = por %p81, %p82
      %p84 = scmp.ne.s32.totalorder %s72, %s73
      %p85 = scmp.eq.s32.totalorder %s21, 1
      %p86 = por %p84, %p85
      %p88 = scmp.ne.s32.totalorder %s73, %s87
      %p89 = scmp.eq.s32.totalorder %s21, 0
      %p90 = por %p88, %p89
      %s92 = sadd.s32 %s91, 1
      %p95 = scmp.eq.s32.totalorder %s15, 1
      %p96 = scmp.ne.s32.totalorder %s91, %s93
      %p97 = scmp.eq.s32.totalorder %s15, 0
      %p98 = por %p96, %p97
      %p99 = scmp.ne.s32.totalorder %s91, %s93
      %p100 = scmp.eq.s32.totalorder %s20, 1
      %p101 = por %p99, %p100
      %p102 = scmp.ne.s32.totalorder %s93, %s94
      %p103 = scmp.eq.s32.totalorder %s20, 0
      %p104 = por %p102, %p103
      %p105 = scmp.ne.s32.totalorder %s93, %s94
      %p106 = scmp.eq.s32.totalorder %s21, 1
      %p107 = por %p105, %p106
      %p109 = scmp.ne.s32.totalorder %s94, %s108
      %p110 = scmp.eq.s32.totalorder %s21, 0
      %p111 = por %p109, %p110
      %s113 = sadd.s32 %s112, 1
      %p116 = scmp.eq.s32.totalorder %s15, 1
      %p117 = scmp.ne.s32.totalorder %s112, %s114
      %p118 = scmp.eq.s32.totalorder %s15, 0
      %p119 = por %p117, %p118
      %p120 = scmp.ne.s32.totalorder %s112, %s114
      %p121 = scmp.eq.s32.totalorder %s20, 1
      %p122 = por %p120, %p121
      %p123 = scmp.ne.s32.totalorder %s114, %s115
      %p124 = scmp.eq.s32.totalorder %s20, 0
      %p125 = por %p123, %p124
      %p126 = scmp.ne.s32.totalorder %s114, %s115
      %p127 = scmp.eq.s32.totalorder %s21, 1
      %p128 = por %p126, %p127
      %p130 = scmp.ne.s32.totalorder %s115, %s129
      %p131 = scmp.eq.s32.totalorder %s21, 0
      %p132 = por %p130, %p131
      %s133 = ssub.s32 %s15, %s22
      %p134 = scmp.eq.s32.totalorder %s133, 0
      %s136 = sadd.s32 %s135, 1
      %s137 = scalar_select %p134, %s135, %s136
      %p140 = pneg %p134
      %p141 = scmp.eq.s32.totalorder %s15, 1
      %p142 = por %p140, %p141
      %p143 = scmp.ne.s32.totalorder %s135, %s138
      %p144 = scmp.eq.s32.totalorder %s15, 0
      %p145 = por %p143, %p144
      %p146 = scmp.ne.s32.totalorder %s135, %s138
      %p147 = scmp.eq.s32.totalorder %s20, 1
      %p148 = por %p146, %p147
      %p149 = scmp.ne.s32.totalorder %s138, %s139
      %p150 = scmp.eq.s32.totalorder %s20, 0
      %p151 = por %p149, %p150
      %p152 = scmp.ne.s32.totalorder %s138, %s139
      %p153 = scmp.eq.s32.totalorder %s21, 1
      %p154 = por %p152, %p153
      %p156 = scmp.ne.s32.totalorder %s139, %s155
      %p157 = scmp.eq.s32.totalorder %s21, 0
      %p158 = por %p156, %p157
      %p159 = scmp.le.s32.totalorder 1, %s15
      %p160 = scmp.lt.s32.totalorder %s15, 3
      %p161 = pnand %p159, %p160
      %p162 = pneg %p161
      // Predicated region
      $region9: #{tpu_custom_call.1} parent=5 // pred_check
        _
      $region10: #{tpu_custom_call.1} parent=5 // pred_check_branch
        %164 = sbr.rel (%p161) target = $region12
      $region11: #{tpu_custom_call.1} parent=5 // pred_region
        %s165 = ssub.s32 %s15, 1
        // Predicated region
        $region13: #{tpu_custom_call.1} parent=11 // pred_check
          %p166 = pneg %p62
        $region14: #{tpu_custom_call.1} parent=11 // pred_check_branch
          %168 = sbr.rel (%p166) target = $region16
        $region15: #{tpu_custom_call.1} parent=11 // pred_region
          %s170 = ssub.s32 256, 256
          %171 = vsyncadd [#allocation5], %s170
          %s172 = sshll.u32 [#allocation4], 4
          %s173 = int_to_ptr.vmem [resolvable:$true] %s172
          %178 = dma.hbm_to_vmem [thread:$0]  %s1, 256, %s173, [#allocation5], 128, 128, 8
        $region16: #{tpu_custom_call.1} parent=11 // pred_fallthru
          _
        // Predicated region
        $region17: #{tpu_custom_call.1} parent=11 // pred_check
          %p179 = pneg %p83
        $region18: #{tpu_custom_call.1} parent=11 // pred_check_branch
          %181 = sbr.rel (%p179) target = $region20
        $region19: #{tpu_custom_call.1} parent=11 // pred_region
          %s183 = ssub.s32 2560, 2560
          %184 = vsyncadd [#allocation5], %s183
          %s185 = sshll.u32 [#allocation6], 4
          %s186 = int_to_ptr.vmem [resolvable:$true] %s185
          %191 = dma.hbm_to_vmem [thread:$0]  %s2, 2560, %s186, [#allocation5], 128, 128, 8
        $region20: #{tpu_custom_call.1} parent=11 // pred_fallthru
          _
        // Predicated region
        $region21: #{tpu_custom_call.1} parent=11 // pred_check
          %p192 = pneg %p104
        $region22: #{tpu_custom_call.1} parent=11 // pred_check_branch
          %194 = sbr.rel (%p192) target = $region24
        $region23: #{tpu_custom_call.1} parent=11 // pred_region
          _
        $region24: #{tpu_custom_call.1} parent=11 // pred_fallthru
          _
        // Predicated region
        $region25: #{tpu_custom_call.1} parent=11 // pred_check
          %p195 = pneg %p125
        $region26: #{tpu_custom_call.1} parent=11 // pred_check_branch
          %197 = sbr.rel (%p195) target = $region28
        $region27: #{tpu_custom_call.1} parent=11 // pred_region
          _
        $region28: #{tpu_custom_call.1} parent=11 // pred_fallthru
          _
      $region12: #{tpu_custom_call.1} parent=5 // pred_fallthru
        _
      %p198 = scmp.lt.s32.totalorder %s15, 2
      // Predicated region
      $region29: #{tpu_custom_call.1} parent=5 // pred_check
        %p199 = pneg %p198
      $region30: #{tpu_custom_call.1} parent=5 // pred_check_branch
        %201 = sbr.rel (%p199) target = $region32
      $region31: #{tpu_custom_call.1} parent=5 // pred_region
        // Predicated region
        $region33: #{tpu_custom_call.1} parent=31 // pred_check
          %p202 = pneg %p35
        $region34: #{tpu_custom_call.1} parent=31 // pred_check_branch
          %204 = sbr.rel (%p202) target = $region36
        $region35: #{tpu_custom_call.1} parent=31 // pred_region
          %s205 = sand.u32 %s25, 1
          %s206 = scalar_lea.sflag [#allocation3], %s205
          %s207 = sand.u32 %s25, 1
          %s208 = smul.addr %s207, 16
          %s209 = scalar_lea.vmem [#allocation2], %s208
          %s211 = ssub.s32 256, 256
          %212 = vsyncadd %s206, %s211
          %s213 = smul.addr %s15, 2
          %s214 = smul.addr %s213, 128
          %s215 = scalar_lea.hbm %s0, %s214
          %s216 = sshll.u32 %s209, 4
          %s217 = int_to_ptr.vmem [resolvable:$true] %s216
          %222 = dma.hbm_to_vmem [thread:$0]  %s215, 256, %s217, %s206, 128, 128, 8
        $region36: #{tpu_custom_call.1} parent=31 // pred_fallthru
          _
      $region32: #{tpu_custom_call.1} parent=5 // pred_fallthru
        _
      %p223 = scmp.le.s32.totalorder 1, %s15
      %p224 = scmp.lt.s32.totalorder %s15, 3
      %p225 = pnand %p223, %p224
      %p226 = pneg %p225
      // Predicated region
      $region37: #{tpu_custom_call.1} parent=5 // pred_check
        _
      $region38: #{tpu_custom_call.1} parent=5 // pred_check_branch
        %228 = sbr.rel (%p225) target = $region40
      $region39: #{tpu_custom_call.1} parent=5 // pred_region
        %s229 = ssub.s32 %s15, 1
        %s230 = sand.u32 %s28, 1
        %s231 = scalar_lea.sflag [#allocation3], %s230
        %s232 = sand.u32 %s28, 1
        %s233 = smul.addr %s232, 16
        %s234 = scalar_lea.vmem [#allocation2], %s233
        // Predicated region
        $region41: #{tpu_custom_call.1} parent=39 // pred_check
          %p235 = pneg %p41
        $region42: #{tpu_custom_call.1} parent=39 // pred_check_branch
          %237 = sbr.rel (%p235) target = $region44
        $region43: #{tpu_custom_call.1} parent=39 // pred_region
          %238 = dma.done %s231, 256
        $region44: #{tpu_custom_call.1} parent=39 // pred_fallthru
          _
        // Predicated region
        $region45: #{tpu_custom_call.1} parent=39 // pred_check
          %p239 = pneg %p62
        $region46: #{tpu_custom_call.1} parent=39 // pred_check_branch
          %241 = sbr.rel (%p239) target = $region48
        $region47: #{tpu_custom_call.1} parent=39 // pred_region
          %242 = dma.done [#allocation5], 256
        $region48: #{tpu_custom_call.1} parent=39 // pred_fallthru
          _
        // Predicated region
        $region49: #{tpu_custom_call.1} parent=39 // pred_check
          %p243 = pneg %p83
        $region50: #{tpu_custom_call.1} parent=39 // pred_check_branch
          %245 = sbr.rel (%p243) target = $region52
        $region51: #{tpu_custom_call.1} parent=39 // pred_region
          %246 = dma.done [#allocation5], 2560
        $region52: #{tpu_custom_call.1} parent=39 // pred_fallthru
          _
        %s247 = sand.u32 %s28, 1
        %s248 = scalar_lea.sflag [#allocation3], %s247
        %s249 = sand.u32 %s28, 1
        %s250 = smul.addr %s249, 16
        %s251 = scalar_lea.vmem [#allocation2], %s250
        %p252 = pneg %p41
        %p253 = pneg %p38
        %p254 = pneg %p62
        %p255 = pneg %p59
        %p256 = pneg %p83
        %p257 = pneg %p80
        %p258 = pneg %p104
        %p259 = pneg %p101
        %p260 = pneg %p125
        %p261 = pneg %p122
        %p262 = pneg %p151
        %p263 = pneg %p148
        %p264 = scmp.lt.s32.totalorder %s20, 1
        %s265 = scalar_select %p264, %s20, 1
        %s266 = smul.addr %s265, 26
        %s267 = smul.addr %s266, 8
        %s268 = scalar_lea.vmem %s5, %s267
        %p269 = scmp.lt.s32.totalorder %s20, 1
        %s270 = scalar_select %p269, %s20, 1
        %s271 = smul.addr %s270, 26
        %s272 = smul.addr %s271, 8
        %s273 = scalar_lea.vmem %s5, %s272
        %v274 = vld [vmem:[%s234] sm:$0xff]
        %v275 = vld [vmem:[%s234 + $0x8] sm:$0xff]
        %v276 = vld [vmem:[#allocation4] sm:$0xff]
        %v277 = vld [vmem:[#allocation4 + $0x8] sm:$0x1f]
        %v278 = vld [vmem:[#allocation6] sm:$0xff]
        %v279 = vld [vmem:[#allocation6 + $0x8] sm:$0xff]
        %v280 = vld [vmem:[#allocation6 + $0x10] sm:$0xff]
        %v281 = vld [vmem:[#allocation6 + $0x18] sm:$0xff]
        %v282 = vld [vmem:[#allocation6 + $0x20] sm:$0xff]
        %v283 = vld [vmem:[#allocation6 + $0x28] sm:$0xff]
        %v284 = vld [vmem:[#allocation6 + $0x30] sm:$0xff]
        %v285 = vld [vmem:[#allocation6 + $0x38] sm:$0xff]
        %v286 = vld [vmem:[#allocation6 + $0x40] sm:$0xff]
        %v287 = vld [vmem:[#allocation6 + $0x48] sm:$0xff]
        %v288 = vld [vmem:[#allocation6 + $0x50] sm:$0xff]
        %v289 = vld [vmem:[#allocation6 + $0x58] sm:$0xff]
        %v290 = vld [vmem:[#allocation6 + $0x60] sm:$0xff]
        %v291 = vld [vmem:[#allocation6 + $0x68] sm:$0xff]
        %v292 = vld [vmem:[#allocation6 + $0x70] sm:$0xff]
        %v293 = vld [vmem:[#allocation6 + $0x78] sm:$0xff]
        %v294 = vld [vmem:[#allocation6 + $0x80] sm:$0xff]
        %v295 = vld [vmem:[#allocation6 + $0x88] sm:$0xff]
        %v296 = vld [vmem:[#allocation6 + $0x90] sm:$0xff]
        %v297 = vld [vmem:[#allocation6 + $0x98] sm:$0xff]
        %v298 = vlaneseq
        %v299 = vshrl.u32 %v298, 7
        %v300 = vsub.s32 0, %v299
        %v301 = vrot.slane %v274, %v300
        %303 = vbcast.lane.b32.xlu0 %v301, 256
        %v304 = vpop.permute.xlu0 %303
        %s306 = sor.u32 256, 8
        %307 = vbcast.lane.b32.xlu0 %v301, %s306
        %v308 = vpop.permute.xlu0 %307
        %s310 = sor.u32 256, 16
        %311 = vbcast.lane.b32.xlu0 %v301, %s310
        %v312 = vpop.permute.xlu0 %311
        %s314 = sor.u32 256, 24
        %315 = vbcast.lane.b32.xlu0 %v301, %s314
        %v316 = vpop.permute.xlu0 %315
        %s318 = sor.u32 256, 32
        %319 = vbcast.lane.b32.xlu0 %v301, %s318
        %v320 = vpop.permute.xlu0 %319
        %v321 = vlaneseq
        %v322 = vshrl.u32 %v321, 7
        %v323 = vsub.s32 1, %v322
        %v324 = vrot.slane %v274, %v323
        %326 = vbcast.lane.b32.xlu0 %v324, 256
        %v327 = vpop.permute.xlu0 %326
        %s329 = sor.u32 256, 8
        %330 = vbcast.lane.b32.xlu0 %v324, %s329
        %v331 = vpop.permute.xlu0 %330
        %s333 = sor.u32 256, 16
        %334 = vbcast.lane.b32.xlu0 %v324, %s333
        %v335 = vpop.permute.xlu0 %334
        %s337 = sor.u32 256, 24
        %338 = vbcast.lane.b32.xlu0 %v324, %s337
        %v339 = vpop.permute.xlu0 %338
        %s341 = sor.u32 256, 32
        %342 = vbcast.lane.b32.xlu0 %v324, %s341
        %v343 = vpop.permute.xlu0 %342
        %v344 = vlaneseq
        %v345 = vshrl.u32 %v344, 7
        %v346 = vsub.s32 2, %v345
        %v347 = vrot.slane %v274, %v346
        %349 = vbcast.lane.b32.xlu0 %v347, 256
        %v350 = vpop.permute.xlu0 %349
        %s352 = sor.u32 256, 8
        %353 = vbcast.lane.b32.xlu0 %v347, %s352
        %v354 = vpop.permute.xlu0 %353
        %s356 = sor.u32 256, 16
        %357 = vbcast.lane.b32.xlu0 %v347, %s356
        %v358 = vpop.permute.xlu0 %357
        %s360 = sor.u32 256, 24
        %361 = vbcast.lane.b32.xlu0 %v347, %s360
        %v362 = vpop.permute.xlu0 %361
        %s364 = sor.u32 256, 32
        %365 = vbcast.lane.b32.xlu0 %v347, %s364
        %v366 = vpop.permute.xlu0 %365
        %v367 = vlaneseq
        %v368 = vshrl.u32 %v367, 7
        %v369 = vsub.s32 3, %v368
        %v370 = vrot.slane %v274, %v369
        %372 = vbcast.lane.b32.xlu0 %v370, 256
        %v373 = vpop.permute.xlu0 %372
        %s375 = sor.u32 256, 8
        %376 = vbcast.lane.b32.xlu0 %v370, %s375
        %v377 = vpop.permute.xlu0 %376
        %s379 = sor.u32 256, 16
        %380 = vbcast.lane.b32.xlu0 %v370, %s379
        %v381 = vpop.permute.xlu0 %380
        %s383 = sor.u32 256, 24
        %384 = vbcast.lane.b32.xlu0 %v370, %s383
        %v385 = vpop.permute.xlu0 %384
        %s387 = sor.u32 256, 32
        %388 = vbcast.lane.b32.xlu0 %v370, %s387
        %v389 = vpop.permute.xlu0 %388
        %v390 = vlaneseq
        %v391 = vshrl.u32 %v390, 7
        %v392 = vsub.s32 4, %v391
        %v393 = vrot.slane %v274, %v392
        %395 = vbcast.lane.b32.xlu0 %v393, 256
        %v396 = vpop.permute.xlu0 %395
        %s398 = sor.u32 256, 8
        %399 = vbcast.lane.b32.xlu0 %v393, %s398
        %v400 = vpop.permute.xlu0 %399
        %s402 = sor.u32 256, 16
        %403 = vbcast.lane.b32.xlu0 %v393, %s402
        %v404 = vpop.permute.xlu0 %403
        %s406 = sor.u32 256, 24
        %407 = vbcast.lane.b32.xlu0 %v393, %s406
        %v408 = vpop.permute.xlu0 %407
        %s410 = sor.u32 256, 32
        %411 = vbcast.lane.b32.xlu0 %v393, %s410
        %v412 = vpop.permute.xlu0 %411
        %v413 = vlaneseq
        %v414 = vshrl.u32 %v413, 7
        %v415 = vsub.s32 5, %v414
        %v416 = vrot.slane %v274, %v415
        %418 = vbcast.lane.b32.xlu0 %v416, 256
        %v419 = vpop.permute.xlu0 %418
        %s421 = sor.u32 256, 8
        %422 = vbcast.lane.b32.xlu0 %v416, %s421
        %v423 = vpop.permute.xlu0 %422
        %s425 = sor.u32 256, 16
        %426 = vbcast.lane.b32.xlu0 %v416, %s425
        %v427 = vpop.permute.xlu0 %426
        %s429 = sor.u32 256, 24
        %430 = vbcast.lane.b32.xlu0 %v416, %s429
        %v431 = vpop.permute.xlu0 %430
        %s433 = sor.u32 256, 32
        %434 = vbcast.lane.b32.xlu0 %v416, %s433
        %v435 = vpop.permute.xlu0 %434
        %v436 = vlaneseq
        %v437 = vshrl.u32 %v436, 7
        %v438 = vsub.s32 6, %v437
        %v439 = vrot.slane %v274, %v438
        %441 = vbcast.lane.b32.xlu0 %v439, 256
        %v442 = vpop.permute.xlu0 %441
        %s444 = sor.u32 256, 8
        %445 = vbcast.lane.b32.xlu0 %v439, %s444
        %v446 = vpop.permute.xlu0 %445
        %s448 = sor.u32 256, 16
        %449 = vbcast.lane.b32.xlu0 %v439, %s448
        %v450 = vpop.permute.xlu0 %449
        %s452 = sor.u32 256, 24
        %453 = vbcast.lane.b32.xlu0 %v439, %s452
        %v454 = vpop.permute.xlu0 %453
        %s456 = sor.u32 256, 32
        %457 = vbcast.lane.b32.xlu0 %v439, %s456
        %v458 = vpop.permute.xlu0 %457
        %v459 = vlaneseq
        %v460 = vshrl.u32 %v459, 7
        %v461 = vsub.s32 7, %v460
        %v462 = vrot.slane %v274, %v461
        %464 = vbcast.lane.b32.xlu0 %v462, 256
        %v465 = vpop.permute.xlu0 %464
        %s467 = sor.u32 256, 8
        %468 = vbcast.lane.b32.xlu0 %v462, %s467
        %v469 = vpop.permute.xlu0 %468
        %s471 = sor.u32 256, 16
        %472 = vbcast.lane.b32.xlu0 %v462, %s471
        %v473 = vpop.permute.xlu0 %472
        %s475 = sor.u32 256, 24
        %476 = vbcast.lane.b32.xlu0 %v462, %s475
        %v477 = vpop.permute.xlu0 %476
        %s479 = sor.u32 256, 32
        %480 = vbcast.lane.b32.xlu0 %v462, %s479
        %v481 = vpop.permute.xlu0 %480
        %v482 = vlaneseq
        %v483 = vshrl.u32 %v482, 7
        %v484 = vsub.s32 0, %v483
        %v485 = vrot.slane %v275, %v484
        %487 = vbcast.lane.b32.xlu0 %v485, 256
        %v488 = vpop.permute.xlu0 %487
        %s490 = sor.u32 256, 8
        %491 = vbcast.lane.b32.xlu0 %v485, %s490
        %v492 = vpop.permute.xlu0 %491
        %s494 = sor.u32 256, 16
        %495 = vbcast.lane.b32.xlu0 %v485, %s494
        %v496 = vpop.permute.xlu0 %495
        %s498 = sor.u32 256, 24
        %499 = vbcast.lane.b32.xlu0 %v485, %s498
        %v500 = vpop.permute.xlu0 %499
        %s502 = sor.u32 256, 32
        %503 = vbcast.lane.b32.xlu0 %v485, %s502
        %v504 = vpop.permute.xlu0 %503
        %v505 = vlaneseq
        %v506 = vshrl.u32 %v505, 7
        %v507 = vsub.s32 1, %v506
        %v508 = vrot.slane %v275, %v507
        %510 = vbcast.lane.b32.xlu0 %v508, 256
        %v511 = vpop.permute.xlu0 %510
        %s513 = sor.u32 256, 8
        %514 = vbcast.lane.b32.xlu0 %v508, %s513
        %v515 = vpop.permute.xlu0 %514
        %s517 = sor.u32 256, 16
        %518 = vbcast.lane.b32.xlu0 %v508, %s517
        %v519 = vpop.permute.xlu0 %518
        %s521 = sor.u32 256, 24
        %522 = vbcast.lane.b32.xlu0 %v508, %s521
        %v523 = vpop.permute.xlu0 %522
        %s525 = sor.u32 256, 32
        %526 = vbcast.lane.b32.xlu0 %v508, %s525
        %v527 = vpop.permute.xlu0 %526
        %v528 = vlaneseq
        %v529 = vshrl.u32 %v528, 7
        %v530 = vsub.s32 2, %v529
        %v531 = vrot.slane %v275, %v530
        %533 = vbcast.lane.b32.xlu0 %v531, 256
        %v534 = vpop.permute.xlu0 %533
        %s536 = sor.u32 256, 8
        %537 = vbcast.lane.b32.xlu0 %v531, %s536
        %v538 = vpop.permute.xlu0 %537
        %s540 = sor.u32 256, 16
        %541 = vbcast.lane.b32.xlu0 %v531, %s540
        %v542 = vpop.permute.xlu0 %541
        %s544 = sor.u32 256, 24
        %545 = vbcast.lane.b32.xlu0 %v531, %s544
        %v546 = vpop.permute.xlu0 %545
        %s548 = sor.u32 256, 32
        %549 = vbcast.lane.b32.xlu0 %v531, %s548
        %v550 = vpop.permute.xlu0 %549
        %v551 = vlaneseq
        %v552 = vshrl.u32 %v551, 7
        %v553 = vsub.s32 3, %v552
        %v554 = vrot.slane %v275, %v553
        %556 = vbcast.lane.b32.xlu0 %v554, 256
        %v557 = vpop.permute.xlu0 %556
        %s559 = sor.u32 256, 8
        %560 = vbcast.lane.b32.xlu0 %v554, %s559
        %v561 = vpop.permute.xlu0 %560
        %s563 = sor.u32 256, 16
        %564 = vbcast.lane.b32.xlu0 %v554, %s563
        %v565 = vpop.permute.xlu0 %564
        %s567 = sor.u32 256, 24
        %568 = vbcast.lane.b32.xlu0 %v554, %s567
        %v569 = vpop.permute.xlu0 %568
        %s571 = sor.u32 256, 32
        %572 = vbcast.lane.b32.xlu0 %v554, %s571
        %v573 = vpop.permute.xlu0 %572
        %v574 = vlaneseq
        %v575 = vshrl.u32 %v574, 7
        %v576 = vsub.s32 4, %v575
        %v577 = vrot.slane %v275, %v576
        %579 = vbcast.lane.b32.xlu0 %v577, 256
        %v580 = vpop.permute.xlu0 %579
        %s582 = sor.u32 256, 8
        %583 = vbcast.lane.b32.xlu0 %v577, %s582
        %v584 = vpop.permute.xlu0 %583
        %s586 = sor.u32 256, 16
        %587 = vbcast.lane.b32.xlu0 %v577, %s586
        %v588 = vpop.permute.xlu0 %587
        %s590 = sor.u32 256, 24
        %591 = vbcast.lane.b32.xlu0 %v577, %s590
        %v592 = vpop.permute.xlu0 %591
        %s594 = sor.u32 256, 32
        %595 = vbcast.lane.b32.xlu0 %v577, %s594
        %v596 = vpop.permute.xlu0 %595
        %v597 = vlaneseq
        %v598 = vshrl.u32 %v597, 7
        %v599 = vsub.s32 5, %v598
        %v600 = vrot.slane %v275, %v599
        %602 = vbcast.lane.b32.xlu0 %v600, 256
        %v603 = vpop.permute.xlu0 %602
        %s605 = sor.u32 256, 8
        %606 = vbcast.lane.b32.xlu0 %v600, %s605
        %v607 = vpop.permute.xlu0 %606
        %s609 = sor.u32 256, 16
        %610 = vbcast.lane.b32.xlu0 %v600, %s609
        %v611 = vpop.permute.xlu0 %610
        %s613 = sor.u32 256, 24
        %614 = vbcast.lane.b32.xlu0 %v600, %s613
        %v615 = vpop.permute.xlu0 %614
        %s617 = sor.u32 256, 32
        %618 = vbcast.lane.b32.xlu0 %v600, %s617
        %v619 = vpop.permute.xlu0 %618
        %v620 = vlaneseq
        %v621 = vshrl.u32 %v620, 7
        %v622 = vsub.s32 6, %v621
        %v623 = vrot.slane %v275, %v622
        %625 = vbcast.lane.b32.xlu0 %v623, 256
        %v626 = vpop.permute.xlu0 %625
        %s628 = sor.u32 256, 8
        %629 = vbcast.lane.b32.xlu0 %v623, %s628
        %v630 = vpop.permute.xlu0 %629
        %s632 = sor.u32 256, 16
        %633 = vbcast.lane.b32.xlu0 %v623, %s632
        %v634 = vpop.permute.xlu0 %633
        %s636 = sor.u32 256, 24
        %637 = vbcast.lane.b32.xlu0 %v623, %s636
        %v638 = vpop.permute.xlu0 %637
        %s640 = sor.u32 256, 32
        %641 = vbcast.lane.b32.xlu0 %v623, %s640
        %v642 = vpop.permute.xlu0 %641
        %v643 = vlaneseq
        %v644 = vshrl.u32 %v643, 7
        %v645 = vsub.s32 7, %v644
        %v646 = vrot.slane %v275, %v645
        %648 = vbcast.lane.b32.xlu0 %v646, 256
        %v649 = vpop.permute.xlu0 %648
        %s651 = sor.u32 256, 8
        %652 = vbcast.lane.b32.xlu0 %v646, %s651
        %v653 = vpop.permute.xlu0 %652
        %s655 = sor.u32 256, 16
        %656 = vbcast.lane.b32.xlu0 %v646, %s655
        %v657 = vpop.permute.xlu0 %656
        %s659 = sor.u32 256, 24
        %660 = vbcast.lane.b32.xlu0 %v646, %s659
        %v661 = vpop.permute.xlu0 %660
        %s663 = sor.u32 256, 32
        %664 = vbcast.lane.b32.xlu0 %v646, %s663
        %v665 = vpop.permute.xlu0 %664
        %v666 = vlaneseq
        %v667 = vshrl.u32 %v666, 7
        %v668 = vsub.s32 0, %v667
        %v669 = vrot.slane %v276, %v668
        %v670 = vmul.f32 %v304, %v669
        %v671 = vmul.f32 %v308, %v669
        %v672 = vmul.f32 %v312, %v669
        %v673 = vmul.f32 %v327, %v669
        %v674 = vmul.f32 %v331, %v669
        %v675 = vmul.f32 %v335, %v669
        %v676 = vmul.f32 %v350, %v669
        %v677 = vmul.f32 %v354, %v669
        %v678 = vmul.f32 %v358, %v669
        %v679 = vmul.f32 %v373, %v669
        %v680 = vmul.f32 %v377, %v669
        %v681 = vmul.f32 %v381, %v669
        %v682 = vmul.f32 %v396, %v669
        %v683 = vmul.f32 %v400, %v669
        %v684 = vmul.f32 %v404, %v669
        %v685 = vmul.f32 %v419, %v669
        %v686 = vmul.f32 %v423, %v669
        %v687 = vmul.f32 %v427, %v669
        %v688 = vmul.f32 %v442, %v669
        %v689 = vmul.f32 %v446, %v669
        %v690 = vmul.f32 %v450, %v669
        %v691 = vmul.f32 %v465, %v669
        %v692 = vmul.f32 %v469, %v669
        %v693 = vmul.f32 %v473, %v669
        %v694 = vmul.f32 %v488, %v669
        %v695 = vmul.f32 %v492, %v669
        %v696 = vmul.f32 %v496, %v669
        %v697 = vmul.f32 %v511, %v669
        %v698 = vmul.f32 %v515, %v669
        %v699 = vmul.f32 %v519, %v669
        %v700 = vmul.f32 %v534, %v669
        %v701 = vmul.f32 %v538, %v669
        %v702 = vmul.f32 %v542, %v669
        %v703 = vmul.f32 %v557, %v669
        %v704 = vmul.f32 %v561, %v669
        %v705 = vmul.f32 %v565, %v669
        %v706 = vmul.f32 %v580, %v669
        %v707 = vmul.f32 %v584, %v669
        %v708 = vmul.f32 %v588, %v669
        %v709 = vmul.f32 %v603, %v669
        %v710 = vmul.f32 %v607, %v669
        %v711 = vmul.f32 %v611, %v669
        %v712 = vmul.f32 %v626, %v669
        %v713 = vmul.f32 %v630, %v669
        %v714 = vmul.f32 %v634, %v669
        %v715 = vmul.f32 %v649, %v669
        %v716 = vmul.f32 %v653, %v669
        %v717 = vmul.f32 %v657, %v669
        %v718 = vlaneseq
        %v719 = vshrl.u32 %v718, 7
        %v720 = vsub.s32 1, %v719
        %v721 = vrot.slane %v276, %v720
        %v722 = vmul.f32 %v304, %v721
        %v723 = vmul.f32 %v308, %v721
        %v724 = vmul.f32 %v312, %v721
        %v725 = vmul.f32 %v316, %v721
        %v726 = vmul.f32 %v327, %v721
        %v727 = vmul.f32 %v331, %v721
        %v728 = vmul.f32 %v335, %v721
        %v729 = vmul.f32 %v339, %v721
        %v730 = vmul.f32 %v350, %v721
        %v731 = vmul.f32 %v354, %v721
        %v732 = vmul.f32 %v358, %v721
        %v733 = vmul.f32 %v362, %v721
        %v734 = vmul.f32 %v373, %v721
        %v735 = vmul.f32 %v377, %v721
        %v736 = vmul.f32 %v381, %v721
        %v737 = vmul.f32 %v385, %v721
        %v738 = vmul.f32 %v396, %v721
        %v739 = vmul.f32 %v400, %v721
        %v740 = vmul.f32 %v404, %v721
        %v741 = vmul.f32 %v408, %v721
        %v742 = vmul.f32 %v419, %v721
        %v743 = vmul.f32 %v423, %v721
        %v744 = vmul.f32 %v427, %v721
        %v745 = vmul.f32 %v431, %v721
        %v746 = vmul.f32 %v442, %v721
        %v747 = vmul.f32 %v446, %v721
        %v748 = vmul.f32 %v450, %v721
        %v749 = vmul.f32 %v454, %v721
        %v750 = vmul.f32 %v465, %v721
        %v751 = vmul.f32 %v469, %v721
        %v752 = vmul.f32 %v473, %v721
        %v753 = vmul.f32 %v477, %v721
        %v754 = vmul.f32 %v488, %v721
        %v755 = vmul.f32 %v492, %v721
        %v756 = vmul.f32 %v496, %v721
        %v757 = vmul.f32 %v500, %v721
        %v758 = vmul.f32 %v511, %v721
        %v759 = vmul.f32 %v515, %v721
        %v760 = vmul.f32 %v519, %v721
        %v761 = vmul.f32 %v523, %v721
        %v762 = vmul.f32 %v534, %v721
        %v763 = vmul.f32 %v538, %v721
        %v764 = vmul.f32 %v542, %v721
        %v765 = vmul.f32 %v546, %v721
        %v766 = vmul.f32 %v557, %v721
        %v767 = vmul.f32 %v561, %v721
        %v768 = vmul.f32 %v565, %v721
        %v769 = vmul.f32 %v569, %v721
        %v770 = vmul.f32 %v580, %v721
        %v771 = vmul.f32 %v584, %v721
        %v772 = vmul.f32 %v588, %v721
        %v773 = vmul.f32 %v592, %v721
        %v774 = vmul.f32 %v603, %v721
        %v775 = vmul.f32 %v607, %v721
        %v776 = vmul.f32 %v611, %v721
        %v777 = vmul.f32 %v615, %v721
        %v778 = vmul.f32 %v626, %v721
        %v779 = vmul.f32 %v630, %v721
        %v780 = vmul.f32 %v634, %v721
        %v781 = vmul.f32 %v638, %v721
        %v782 = vmul.f32 %v649, %v721
        %v783 = vmul.f32 %v653, %v721
        %v784 = vmul.f32 %v657, %v721
        %v785 = vmul.f32 %v661, %v721
        %vm850 = vcmask 1046528
        %v851 = vrot.slane %v722, 1
        %v852 = vrot.slane %v723, 1
        %v853 = vsel %vm850, %v851, %v852
        %v854 = vrot.slane %v724, 1
        %v855 = vsel %vm850, %v852, %v854
        %v856 = vrot.slane %v725, 1
        %v857 = vsel %vm850, %v854, %v856
        %v858 = vrot.slane %v726, 1
        %v859 = vrot.slane %v727, 1
        %v860 = vsel %vm850, %v858, %v859
        %v861 = vrot.slane %v728, 1
        %v862 = vsel %vm850, %v859, %v861
        %v863 = vrot.slane %v729, 1
        %v864 = vsel %vm850, %v861, %v863
        %v865 = vrot.slane %v730, 1
        %v866 = vrot.slane %v731, 1
        %v867 = vsel %vm850, %v865, %v866
        %v868 = vrot.slane %v732, 1
        %v869 = vsel %vm850, %v866, %v868
        %v870 = vrot.slane %v733, 1
        %v871 = vsel %vm850, %v868, %v870
        %v872 = vrot.slane %v734, 1
        %v873 = vrot.slane %v735, 1
        %v874 = vsel %vm850, %v872, %v873
        %v875 = vrot.slane %v736, 1
        %v876 = vsel %vm850, %v873, %v875
        %v877 = vrot.slane %v737, 1
        %v878 = vsel %vm850, %v875, %v877
        %v879 = vrot.slane %v738, 1
        %v880 = vrot.slane %v739, 1
        %v881 = vsel %vm850, %v879, %v880
        %v882 = vrot.slane %v740, 1
        %v883 = vsel %vm850, %v880, %v882
        %v884 = vrot.slane %v741, 1
        %v885 = vsel %vm850, %v882, %v884
        %v886 = vrot.slane %v742, 1
        %v887 = vrot.slane %v743, 1
        %v888 = vsel %vm850, %v886, %v887
        %v889 = vrot.slane %v744, 1
        %v890 = vsel %vm850, %v887, %v889
        %v891 = vrot.slane %v745, 1
        %v892 = vsel %vm850, %v889, %v891
        %v893 = vrot.slane %v746, 1
        %v894 = vrot.slane %v747, 1
        %v895 = vsel %vm850, %v893, %v894
        %v896 = vrot.slane %v748, 1
        %v897 = vsel %vm850, %v894, %v896
        %v898 = vrot.slane %v749, 1
        %v899 = vsel %vm850, %v896, %v898
        %v900 = vrot.slane %v750, 1
        %v901 = vrot.slane %v751, 1
        %v902 = vsel %vm850, %v900, %v901
        %v903 = vrot.slane %v752, 1
        %v904 = vsel %vm850, %v901, %v903
        %v905 = vrot.slane %v753, 1
        %v906 = vsel %vm850, %v903, %v905
        %v907 = vrot.slane %v754, 1
        %v908 = vrot.slane %v755, 1
        %v909 = vsel %vm850, %v907, %v908
        %v910 = vrot.slane %v756, 1
        %v911 = vsel %vm850, %v908, %v910
        %v912 = vrot.slane %v757, 1
        %v913 = vsel %vm850, %v910, %v912
        %v914 = vrot.slane %v758, 1
        %v915 = vrot.slane %v759, 1
        %v916 = vsel %vm850, %v914, %v915
        %v917 = vrot.slane %v760, 1
        %v918 = vsel %vm850, %v915, %v917
        %v919 = vrot.slane %v761, 1
        %v920 = vsel %vm850, %v917, %v919
        %v921 = vrot.slane %v762, 1
        %v922 = vrot.slane %v763, 1
        %v923 = vsel %vm850, %v921, %v922
        %v924 = vrot.slane %v764, 1
        %v925 = vsel %vm850, %v922, %v924
        %v926 = vrot.slane %v765, 1
        %v927 = vsel %vm850, %v924, %v926
        %v928 = vrot.slane %v766, 1
        %v929 = vrot.slane %v767, 1
        %v930 = vsel %vm850, %v928, %v929
        %v931 = vrot.slane %v768, 1
        %v932 = vsel %vm850, %v929, %v931
        %v933 = vrot.slane %v769, 1
        %v934 = vsel %vm850, %v931, %v933
        %v935 = vrot.slane %v770, 1
        %v936 = vrot.slane %v771, 1
        %v937 = vsel %vm850, %v935, %v936
        %v938 = vrot.slane %v772, 1
        %v939 = vsel %vm850, %v936, %v938
        %v940 = vrot.slane %v773, 1
        %v941 = vsel %vm850, %v938, %v940
        %v942 = vrot.slane %v774, 1
        %v943 = vrot.slane %v775, 1
        %v944 = vsel %vm850, %v942, %v943
        %v945 = vrot.slane %v776, 1
        %v946 = vsel %vm850, %v943, %v945
        %v947 = vrot.slane %v777, 1
        %v948 = vsel %vm850, %v945, %v947
        %v949 = vrot.slane %v778, 1
        %v950 = vrot.slane %v779, 1
        %v951 = vsel %vm850, %v949, %v950
        %v952 = vrot.slane %v780, 1
        %v953 = vsel %vm850, %v950, %v952
        %v954 = vrot.slane %v781, 1
        %v955 = vsel %vm850, %v952, %v954
        %v956 = vrot.slane %v782, 1
        %v957 = vrot.slane %v783, 1
        %v958 = vsel %vm850, %v956, %v957
        %v959 = vrot.slane %v784, 1
        %v960 = vsel %vm850, %v957, %v959
        %v961 = vrot.slane %v785, 1
        %v962 = vsel %vm850, %v959, %v961
        %v1011 = vadd.f32 %v670, %v853
        %v1012 = vadd.f32 %v671, %v855
        %v1013 = vadd.f32 %v672, %v857
        %v1014 = vadd.f32 %v673, %v860
        %v1015 = vadd.f32 %v674, %v862
        %v1016 = vadd.f32 %v675, %v864
        %v1017 = vadd.f32 %v676, %v867
        %v1018 = vadd.f32 %v677, %v869
        %v1019 = vadd.f32 %v678, %v871
        %v1020 = vadd.f32 %v679, %v874
        %v1021 = vadd.f32 %v680, %v876
        %v1022 = vadd.f32 %v681, %v878
        %v1023 = vadd.f32 %v682, %v881
        %v1024 = vadd.f32 %v683, %v883
        %v1025 = vadd.f32 %v684, %v885
        %v1026 = vadd.f32 %v685, %v888
        %v1027 = vadd.f32 %v686, %v890
        %v1028 = vadd.f32 %v687, %v892
        %v1029 = vadd.f32 %v688, %v895
        %v1030 = vadd.f32 %v689, %v897
        %v1031 = vadd.f32 %v690, %v899
        %v1032 = vadd.f32 %v691, %v902
        %v1033 = vadd.f32 %v692, %v904
        %v1034 = vadd.f32 %v693, %v906
        %v1035 = vadd.f32 %v694, %v909
        %v1036 = vadd.f32 %v695, %v911
        %v1037 = vadd.f32 %v696, %v913
        %v1038 = vadd.f32 %v697, %v916
        %v1039 = vadd.f32 %v698, %v918
        %v1040 = vadd.f32 %v699, %v920
        %v1041 = vadd.f32 %v700, %v923
        %v1042 = vadd.f32 %v701, %v925
        %v1043 = vadd.f32 %v702, %v927
        %v1044 = vadd.f32 %v703, %v930
        %v1045 = vadd.f32 %v704, %v932
        %v1046 = vadd.f32 %v705, %v934
        %v1047 = vadd.f32 %v706, %v937
        %v1048 = vadd.f32 %v707, %v939
        %v1049 = vadd.f32 %v708, %v941
        %v1050 = vadd.f32 %v709, %v944
        %v1051 = vadd.f32 %v710, %v946
        %v1052 = vadd.f32 %v711, %v948
        %v1053 = vadd.f32 %v712, %v951
        %v1054 = vadd.f32 %v713, %v953
        %v1055 = vadd.f32 %v714, %v955
        %v1056 = vadd.f32 %v715, %v958
        %v1057 = vadd.f32 %v716, %v960
        %v1058 = vadd.f32 %v717, %v962
        %v1059 = vlaneseq
        %v1060 = vshrl.u32 %v1059, 7
        %v1061 = vsub.s32 2, %v1060
        %v1062 = vrot.slane %v276, %v1061
        %v1063 = vmul.f32 %v304, %v1062
        %v1064 = vmul.f32 %v308, %v1062
        %v1065 = vmul.f32 %v312, %v1062
        %v1066 = vmul.f32 %v316, %v1062
        %v1067 = vmul.f32 %v327, %v1062
        %v1068 = vmul.f32 %v331, %v1062
        %v1069 = vmul.f32 %v335, %v1062
        %v1070 = vmul.f32 %v339, %v1062
        %v1071 = vmul.f32 %v350, %v1062
        %v1072 = vmul.f32 %v354, %v1062
        %v1073 = vmul.f32 %v358, %v1062
        %v1074 = vmul.f32 %v362, %v1062
        %v1075 = vmul.f32 %v373, %v1062
        %v1076 = vmul.f32 %v377, %v1062
        %v1077 = vmul.f32 %v381, %v1062
        %v1078 = vmul.f32 %v385, %v1062
        %v1079 = vmul.f32 %v396, %v1062
        %v1080 = vmul.f32 %v400, %v1062
        %v1081 = vmul.f32 %v404, %v1062
        %v1082 = vmul.f32 %v408, %v1062
        %v1083 = vmul.f32 %v419, %v1062
        %v1084 = vmul.f32 %v423, %v1062
        %v1085 = vmul.f32 %v427, %v1062
        %v1086 = vmul.f32 %v431, %v1062
        %v1087 = vmul.f32 %v442, %v1062
        %v1088 = vmul.f32 %v446, %v1062
        %v1089 = vmul.f32 %v450, %v1062
        %v1090 = vmul.f32 %v454, %v1062
        %v1091 = vmul.f32 %v465, %v1062
        %v1092 = vmul.f32 %v469, %v1062
        %v1093 = vmul.f32 %v473, %v1062
        %v1094 = vmul.f32 %v477, %v1062
        %v1095 = vmul.f32 %v488, %v1062
        %v1096 = vmul.f32 %v492, %v1062
        %v1097 = vmul.f32 %v496, %v1062
        %v1098 = vmul.f32 %v500, %v1062
        %v1099 = vmul.f32 %v511, %v1062
        %v1100 = vmul.f32 %v515, %v1062
        %v1101 = vmul.f32 %v519, %v1062
        %v1102 = vmul.f32 %v523, %v1062
        %v1103 = vmul.f32 %v534, %v1062
        %v1104 = vmul.f32 %v538, %v1062
        %v1105 = vmul.f32 %v542, %v1062
        %v1106 = vmul.f32 %v546, %v1062
        %v1107 = vmul.f32 %v557, %v1062
        %v1108 = vmul.f32 %v561, %v1062
        %v1109 = vmul.f32 %v565, %v1062
        %v1110 = vmul.f32 %v569, %v1062
        %v1111 = vmul.f32 %v580, %v1062
        %v1112 = vmul.f32 %v584, %v1062
        %v1113 = vmul.f32 %v588, %v1062
        %v1114 = vmul.f32 %v592, %v1062
        %v1115 = vmul.f32 %v603, %v1062
        %v1116 = vmul.f32 %v607, %v1062
        %v1117 = vmul.f32 %v611, %v1062
        %v1118 = vmul.f32 %v615, %v1062
        %v1119 = vmul.f32 %v626, %v1062
        %v1120 = vmul.f32 %v630, %v1062
        %v1121 = vmul.f32 %v634, %v1062
        %v1122 = vmul.f32 %v638, %v1062
        %v1123 = vmul.f32 %v649, %v1062
        %v1124 = vmul.f32 %v653, %v1062
        %v1125 = vmul.f32 %v657, %v1062
        %v1126 = vmul.f32 %v661, %v1062
        %vm1191 = vcmask 1045504
        %v1192 = vrot.slane %v1063, 2
        %v1193 = vrot.slane %v1064, 2
        %v1194 = vsel %vm1191, %v1192, %v1193
        %v1195 = vrot.slane %v1065, 2
        %v1196 = vsel %vm1191, %v1193, %v1195
        %v1197 = vrot.slane %v1066, 2
        %v1198 = vsel %vm1191, %v1195, %v1197
        %v1199 = vrot.slane %v1067, 2
        %v1200 = vrot.slane %v1068, 2
        %v1201 = vsel %vm1191, %v1199, %v1200
        %v1202 = vrot.slane %v1069, 2
        %v1203 = vsel %vm1191, %v1200, %v1202
        %v1204 = vrot.slane %v1070, 2
        %v1205 = vsel %vm1191, %v1202, %v1204
        %v1206 = vrot.slane %v1071, 2
        %v1207 = vrot.slane %v1072, 2
        %v1208 = vsel %vm1191, %v1206, %v1207
        %v1209 = vrot.slane %v1073, 2
        %v1210 = vsel %vm1191, %v1207, %v1209
        %v1211 = vrot.slane %v1074, 2
        %v1212 = vsel %vm1191, %v1209, %v1211
        %v1213 = vrot.slane %v1075, 2
        %v1214 = vrot.slane %v1076, 2
        %v1215 = vsel %vm1191, %v1213, %v1214
        %v1216 = vrot.slane %v1077, 2
        %v1217 = vsel %vm1191, %v1214, %v1216
        %v1218 = vrot.slane %v1078, 2
        %v1219 = vsel %vm1191, %v1216, %v1218
        %v1220 = vrot.slane %v1079, 2
        %v1221 = vrot.slane %v1080, 2
        %v1222 = vsel %vm1191, %v1220, %v1221
        %v1223 = vrot.slane %v1081, 2
        %v1224 = vsel %vm1191, %v1221, %v1223
        %v1225 = vrot.slane %v1082, 2
        %v1226 = vsel %vm1191, %v1223, %v1225
        %v1227 = vrot.slane %v1083, 2
        %v1228 = vrot.slane %v1084, 2
        %v1229 = vsel %vm1191, %v1227, %v1228
        %v1230 = vrot.slane %v1085, 2
        %v1231 = vsel %vm1191, %v1228, %v1230
        %v1232 = vrot.slane %v1086, 2
        %v1233 = vsel %vm1191, %v1230, %v1232
        %v1234 = vrot.slane %v1087, 2
        %v1235 = vrot.slane %v1088, 2
        %v1236 = vsel %vm1191, %v1234, %v1235
        %v1237 = vrot.slane %v1089, 2
        %v1238 = vsel %vm1191, %v1235, %v1237
        %v1239 = vrot.slane %v1090, 2
        %v1240 = vsel %vm1191, %v1237, %v1239
        %v1241 = vrot.slane %v1091, 2
        %v1242 = vrot.slane %v1092, 2
        %v1243 = vsel %vm1191, %v1241, %v1242
        %v1244 = vrot.slane %v1093, 2
        %v1245 = vsel %vm1191, %v1242, %v1244
        %v1246 = vrot.slane %v1094, 2
        %v1247 = vsel %vm1191, %v1244, %v1246
        %v1248 = vrot.slane %v1095, 2
        %v1249 = vrot.slane %v1096, 2
        %v1250 = vsel %vm1191, %v1248, %v1249
        %v1251 = vrot.slane %v1097, 2
        %v1252 = vsel %vm1191, %v1249, %v1251
        %v1253 = vrot.slane %v1098, 2
        %v1254 = vsel %vm1191, %v1251, %v1253
        %v1255 = vrot.slane %v1099, 2
        %v1256 = vrot.slane %v1100, 2
        %v1257 = vsel %vm1191, %v1255, %v1256
        %v1258 = vrot.slane %v1101, 2
        %v1259 = vsel %vm1191, %v1256, %v1258
        %v1260 = vrot.slane %v1102, 2
        %v1261 = vsel %vm1191, %v1258, %v1260
        %v1262 = vrot.slane %v1103, 2
        %v1263 = vrot.slane %v1104, 2
        %v1264 = vsel %vm1191, %v1262, %v1263
        %v1265 = vrot.slane %v1105, 2
        %v1266 = vsel %vm1191, %v1263, %v1265
        %v1267 = vrot.slane %v1106, 2
        %v1268 = vsel %vm1191, %v1265, %v1267
        %v1269 = vrot.slane %v1107, 2
        %v1270 = vrot.slane %v1108, 2
        %v1271 = vsel %vm1191, %v1269, %v1270
        %v1272 = vrot.slane %v1109, 2
        %v1273 = vsel %vm1191, %v1270, %v1272
        %v1274 = vrot.slane %v1110, 2
        %v1275 = vsel %vm1191, %v1272, %v1274
        %v1276 = vrot.slane %v1111, 2
        %v1277 = vrot.slane %v1112, 2
        %v1278 = vsel %vm1191, %v1276, %v1277
        %v1279 = vrot.slane %v1113, 2
        %v1280 = vsel %vm1191, %v1277, %v1279
        %v1281 = vrot.slane %v1114, 2
        %v1282 = vsel %vm1191, %v1279, %v1281
        %v1283 = vrot.slane %v1115, 2
        %v1284 = vrot.slane %v1116, 2
        %v1285 = vsel %vm1191, %v1283, %v1284
        %v1286 = vrot.slane %v1117, 2
        %v1287 = vsel %vm1191, %v1284, %v1286
        %v1288 = vrot.slane %v1118, 2
        %v1289 = vsel %vm1191, %v1286, %v1288
        %v1290 = vrot.slane %v1119, 2
        %v1291 = vrot.slane %v1120, 2
        %v1292 = vsel %vm1191, %v1290, %v1291
        %v1293 = vrot.slane %v1121, 2
        %v1294 = vsel %vm1191, %v1291, %v1293
        %v1295 = vrot.slane %v1122, 2
        %v1296 = vsel %vm1191, %v1293, %v1295
        %v1297 = vrot.slane %v1123, 2
        %v1298 = vrot.slane %v1124, 2
        %v1299 = vsel %vm1191, %v1297, %v1298
        %v1300 = vrot.slane %v1125, 2
        %v1301 = vsel %vm1191, %v1298, %v1300
        %v1302 = vrot.slane %v1126, 2
        %v1303 = vsel %vm1191, %v1300, %v1302
        %v1352 = vadd.f32 %v1011, %v1194
        %v1353 = vadd.f32 %v1012, %v1196
        %v1354 = vadd.f32 %v1013, %v1198
        %v1355 = vadd.f32 %v1014, %v1201
        %v1356 = vadd.f32 %v1015, %v1203
        %v1357 = vadd.f32 %v1016, %v1205
        %v1358 = vadd.f32 %v1017, %v1208
        %v1359 = vadd.f32 %v1018, %v1210
        %v1360 = vadd.f32 %v1019, %v1212
        %v1361 = vadd.f32 %v1020, %v1215
        %v1362 = vadd.f32 %v1021, %v1217
        %v1363 = vadd.f32 %v1022, %v1219
        %v1364 = vadd.f32 %v1023, %v1222
        %v1365 = vadd.f32 %v1024, %v1224
        %v1366 = vadd.f32 %v1025, %v1226
        %v1367 = vadd.f32 %v1026, %v1229
        %v1368 = vadd.f32 %v1027, %v1231
        %v1369 = vadd.f32 %v1028, %v1233
        %v1370 = vadd.f32 %v1029, %v1236
        %v1371 = vadd.f32 %v1030, %v1238
        %v1372 = vadd.f32 %v1031, %v1240
        %v1373 = vadd.f32 %v1032, %v1243
        %v1374 = vadd.f32 %v1033, %v1245
        %v1375 = vadd.f32 %v1034, %v1247
        %v1376 = vadd.f32 %v1035, %v1250
        %v1377 = vadd.f32 %v1036, %v1252
        %v1378 = vadd.f32 %v1037, %v1254
        %v1379 = vadd.f32 %v1038, %v1257
        %v1380 = vadd.f32 %v1039, %v1259
        %v1381 = vadd.f32 %v1040, %v1261
        %v1382 = vadd.f32 %v1041, %v1264
        %v1383 = vadd.f32 %v1042, %v1266
        %v1384 = vadd.f32 %v1043, %v1268
        %v1385 = vadd.f32 %v1044, %v1271
        %v1386 = vadd.f32 %v1045, %v1273
        %v1387 = vadd.f32 %v1046, %v1275
        %v1388 = vadd.f32 %v1047, %v1278
        %v1389 = vadd.f32 %v1048, %v1280
        %v1390 = vadd.f32 %v1049, %v1282
        %v1391 = vadd.f32 %v1050, %v1285
        %v1392 = vadd.f32 %v1051, %v1287
        %v1393 = vadd.f32 %v1052, %v1289
        %v1394 = vadd.f32 %v1053, %v1292
        %v1395 = vadd.f32 %v1054, %v1294
        %v1396 = vadd.f32 %v1055, %v1296
        %v1397 = vadd.f32 %v1056, %v1299
        %v1398 = vadd.f32 %v1057, %v1301
        %v1399 = vadd.f32 %v1058, %v1303
        %v1400 = vlaneseq
        %v1401 = vshrl.u32 %v1400, 7
        %v1402 = vsub.s32 3, %v1401
        %v1403 = vrot.slane %v276, %v1402
        %v1404 = vmul.f32 %v304, %v1403
        %v1405 = vmul.f32 %v308, %v1403
        %v1406 = vmul.f32 %v312, %v1403
        %v1407 = vmul.f32 %v316, %v1403
        %v1408 = vmul.f32 %v327, %v1403
        %v1409 = vmul.f32 %v331, %v1403
        %v1410 = vmul.f32 %v335, %v1403
        %v1411 = vmul.f32 %v339, %v1403
        %v1412 = vmul.f32 %v350, %v1403
        %v1413 = vmul.f32 %v354, %v1403
        %v1414 = vmul.f32 %v358, %v1403
        %v1415 = vmul.f32 %v362, %v1403
        %v1416 = vmul.f32 %v373, %v1403
        %v1417 = vmul.f32 %v377, %v1403
        %v1418 = vmul.f32 %v381, %v1403
        %v1419 = vmul.f32 %v385, %v1403
        %v1420 = vmul.f32 %v396, %v1403
        %v1421 = vmul.f32 %v400, %v1403
        %v1422 = vmul.f32 %v404, %v1403
        %v1423 = vmul.f32 %v408, %v1403
        %v1424 = vmul.f32 %v419, %v1403
        %v1425 = vmul.f32 %v423, %v1403
        %v1426 = vmul.f32 %v427, %v1403
        %v1427 = vmul.f32 %v431, %v1403
        %v1428 = vmul.f32 %v442, %v1403
        %v1429 = vmul.f32 %v446, %v1403
        %v1430 = vmul.f32 %v450, %v1403
        %v1431 = vmul.f32 %v454, %v1403
        %v1432 = vmul.f32 %v465, %v1403
        %v1433 = vmul.f32 %v469, %v1403
        %v1434 = vmul.f32 %v473, %v1403
        %v1435 = vmul.f32 %v477, %v1403
        %v1436 = vmul.f32 %v488, %v1403
        %v1437 = vmul.f32 %v492, %v1403
        %v1438 = vmul.f32 %v496, %v1403
        %v1439 = vmul.f32 %v500, %v1403
        %v1440 = vmul.f32 %v511, %v1403
        %v1441 = vmul.f32 %v515, %v1403
        %v1442 = vmul.f32 %v519, %v1403
        %v1443 = vmul.f32 %v523, %v1403
        %v1444 = vmul.f32 %v534, %v1403
        %v1445 = vmul.f32 %v538, %v1403
        %v1446 = vmul.f32 %v542, %v1403
        %v1447 = vmul.f32 %v546, %v1403
        %v1448 = vmul.f32 %v557, %v1403
        %v1449 = vmul.f32 %v561, %v1403
        %v1450 = vmul.f32 %v565, %v1403
        %v1451 = vmul.f32 %v569, %v1403
        %v1452 = vmul.f32 %v580, %v1403
        %v1453 = vmul.f32 %v584, %v1403
        %v1454 = vmul.f32 %v588, %v1403
        %v1455 = vmul.f32 %v592, %v1403
        %v1456 = vmul.f32 %v603, %v1403
        %v1457 = vmul.f32 %v607, %v1403
        %v1458 = vmul.f32 %v611, %v1403
        %v1459 = vmul.f32 %v615, %v1403
        %v1460 = vmul.f32 %v626, %v1403
        %v1461 = vmul.f32 %v630, %v1403
        %v1462 = vmul.f32 %v634, %v1403
        %v1463 = vmul.f32 %v638, %v1403
        %v1464 = vmul.f32 %v649, %v1403
        %v1465 = vmul.f32 %v653, %v1403
        %v1466 = vmul.f32 %v657, %v1403
        %v1467 = vmul.f32 %v661, %v1403
        %vm1532 = vcmask 1044480
        %v1533 = vrot.slane %v1404, 3
        %v1534 = vrot.slane %v1405, 3
        %v1535 = vsel %vm1532, %v1533, %v1534
        %v1536 = vrot.slane %v1406, 3
        %v1537 = vsel %vm1532, %v1534, %v1536
        %v1538 = vrot.slane %v1407, 3
        %v1539 = vsel %vm1532, %v1536, %v1538
        %v1540 = vrot.slane %v1408, 3
        %v1541 = vrot.slane %v1409, 3
        %v1542 = vsel %vm1532, %v1540, %v1541
        %v1543 = vrot.slane %v1410, 3
        %v1544 = vsel %vm1532, %v1541, %v1543
        %v1545 = vrot.slane %v1411, 3
        %v1546 = vsel %vm1532, %v1543, %v1545
        %v1547 = vrot.slane %v1412, 3
        %v1548 = vrot.slane %v1413, 3
        %v1549 = vsel %vm1532, %v1547, %v1548
        %v1550 = vrot.slane %v1414, 3
        %v1551 = vsel %vm1532, %v1548, %v1550
        %v1552 = vrot.slane %v1415, 3
        %v1553 = vsel %vm1532, %v1550, %v1552
        %v1554 = vrot.slane %v1416, 3
        %v1555 = vrot.slane %v1417, 3
        %v1556 = vsel %vm1532, %v1554, %v1555
        %v1557 = vrot.slane %v1418, 3
        %v1558 = vsel %vm1532, %v1555, %v1557
        %v1559 = vrot.slane %v1419, 3
        %v1560 = vsel %vm1532, %v1557, %v1559
        %v1561 = vrot.slane %v1420, 3
        %v1562 = vrot.slane %v1421, 3
        %v1563 = vsel %vm1532, %v1561, %v1562
        %v1564 = vrot.slane %v1422, 3
        %v1565 = vsel %vm1532, %v1562, %v1564
        %v1566 = vrot.slane %v1423, 3
        %v1567 = vsel %vm1532, %v1564, %v1566
        %v1568 = vrot.slane %v1424, 3
        %v1569 = vrot.slane %v1425, 3
        %v1570 = vsel %vm1532, %v1568, %v1569
        %v1571 = vrot.slane %v1426, 3
        %v1572 = vsel %vm1532, %v1569, %v1571
        %v1573 = vrot.slane %v1427, 3
        %v1574 = vsel %vm1532, %v1571, %v1573
        %v1575 = vrot.slane %v1428, 3
        %v1576 = vrot.slane %v1429, 3
        %v1577 = vsel %vm1532, %v1575, %v1576
        %v1578 = vrot.slane %v1430, 3
        %v1579 = vsel %vm1532, %v1576, %v1578
        %v1580 = vrot.slane %v1431, 3
        %v1581 = vsel %vm1532, %v1578, %v1580
        %v1582 = vrot.slane %v1432, 3
        %v1583 = vrot.slane %v1433, 3
        %v1584 = vsel %vm1532, %v1582, %v1583
        %v1585 = vrot.slane %v1434, 3
        %v1586 = vsel %vm1532, %v1583, %v1585
        %v1587 = vrot.slane %v1435, 3
        %v1588 = vsel %vm1532, %v1585, %v1587
        %v1589 = vrot.slane %v1436, 3
        %v1590 = vrot.slane %v1437, 3
        %v1591 = vsel %vm1532, %v1589, %v1590
        %v1592 = vrot.slane %v1438, 3
        %v1593 = vsel %vm1532, %v1590, %v1592
        %v1594 = vrot.slane %v1439, 3
        %v1595 = vsel %vm1532, %v1592, %v1594
        %v1596 = vrot.slane %v1440, 3
        %v1597 = vrot.slane %v1441, 3
        %v1598 = vsel %vm1532, %v1596, %v1597
        %v1599 = vrot.slane %v1442, 3
        %v1600 = vsel %vm1532, %v1597, %v1599
        %v1601 = vrot.slane %v1443, 3
        %v1602 = vsel %vm1532, %v1599, %v1601
        %v1603 = vrot.slane %v1444, 3
        %v1604 = vrot.slane %v1445, 3
        %v1605 = vsel %vm1532, %v1603, %v1604
        %v1606 = vrot.slane %v1446, 3
        %v1607 = vsel %vm1532, %v1604, %v1606
        %v1608 = vrot.slane %v1447, 3
        %v1609 = vsel %vm1532, %v1606, %v1608
        %v1610 = vrot.slane %v1448, 3
        %v1611 = vrot.slane %v1449, 3
        %v1612 = vsel %vm1532, %v1610, %v1611
        %v1613 = vrot.slane %v1450, 3
        %v1614 = vsel %vm1532, %v1611, %v1613
        %v1615 = vrot.slane %v1451, 3
        %v1616 = vsel %vm1532, %v1613, %v1615
        %v1617 = vrot.slane %v1452, 3
        %v1618 = vrot.slane %v1453, 3
        %v1619 = vsel %vm1532, %v1617, %v1618
        %v1620 = vrot.slane %v1454, 3
        %v1621 = vsel %vm1532, %v1618, %v1620
        %v1622 = vrot.slane %v1455, 3
        %v1623 = vsel %vm1532, %v1620, %v1622
        %v1624 = vrot.slane %v1456, 3
        %v1625 = vrot.slane %v1457, 3
        %v1626 = vsel %vm1532, %v1624, %v1625
        %v1627 = vrot.slane %v1458, 3
        %v1628 = vsel %vm1532, %v1625, %v1627
        %v1629 = vrot.slane %v1459, 3
        %v1630 = vsel %vm1532, %v1627, %v1629
        %v1631 = vrot.slane %v1460, 3
        %v1632 = vrot.slane %v1461, 3
        %v1633 = vsel %vm1532, %v1631, %v1632
        %v1634 = vrot.slane %v1462, 3
        %v1635 = vsel %vm1532, %v1632, %v1634
        %v1636 = vrot.slane %v1463, 3
        %v1637 = vsel %vm1532, %v1634, %v1636
        %v1638 = vrot.slane %v1464, 3
        %v1639 = vrot.slane %v1465, 3
        %v1640 = vsel %vm1532, %v1638, %v1639
        %v1641 = vrot.slane %v1466, 3
        %v1642 = vsel %vm1532, %v1639, %v1641
        %v1643 = vrot.slane %v1467, 3
        %v1644 = vsel %vm1532, %v1641, %v1643
        %v1693 = vadd.f32 %v1352, %v1535
        %v1694 = vadd.f32 %v1353, %v1537
        %v1695 = vadd.f32 %v1354, %v1539
        %v1696 = vadd.f32 %v1355, %v1542
        %v1697 = vadd.f32 %v1356, %v1544
        %v1698 = vadd.f32 %v1357, %v1546
        %v1699 = vadd.f32 %v1358, %v1549
        %v1700 = vadd.f32 %v1359, %v1551
        %v1701 = vadd.f32 %v1360, %v1553
        %v1702 = vadd.f32 %v1361, %v1556
        %v1703 = vadd.f32 %v1362, %v1558
        %v1704 = vadd.f32 %v1363, %v1560
        %v1705 = vadd.f32 %v1364, %v1563
        %v1706 = vadd.f32 %v1365, %v1565
        %v1707 = vadd.f32 %v1366, %v1567
        %v1708 = vadd.f32 %v1367, %v1570
        %v1709 = vadd.f32 %v1368, %v1572
        %v1710 = vadd.f32 %v1369, %v1574
        %v1711 = vadd.f32 %v1370, %v1577
        %v1712 = vadd.f32 %v1371, %v1579
        %v1713 = vadd.f32 %v1372, %v1581
        %v1714 = vadd.f32 %v1373, %v1584
        %v1715 = vadd.f32 %v1374, %v1586
        %v1716 = vadd.f32 %v1375, %v1588
        %v1717 = vadd.f32 %v1376, %v1591
        %v1718 = vadd.f32 %v1377, %v1593
        %v1719 = vadd.f32 %v1378, %v1595
        %v1720 = vadd.f32 %v1379, %v1598
        %v1721 = vadd.f32 %v1380, %v1600
        %v1722 = vadd.f32 %v1381, %v1602
        %v1723 = vadd.f32 %v1382, %v1605
        %v1724 = vadd.f32 %v1383, %v1607
        %v1725 = vadd.f32 %v1384, %v1609
        %v1726 = vadd.f32 %v1385, %v1612
        %v1727 = vadd.f32 %v1386, %v1614
        %v1728 = vadd.f32 %v1387, %v1616
        %v1729 = vadd.f32 %v1388, %v1619
        %v1730 = vadd.f32 %v1389, %v1621
        %v1731 = vadd.f32 %v1390, %v1623
        %v1732 = vadd.f32 %v1391, %v1626
        %v1733 = vadd.f32 %v1392, %v1628
        %v1734 = vadd.f32 %v1393, %v1630
        %v1735 = vadd.f32 %v1394, %v1633
        %v1736 = vadd.f32 %v1395, %v1635
        %v1737 = vadd.f32 %v1396, %v1637
        %v1738 = vadd.f32 %v1397, %v1640
        %v1739 = vadd.f32 %v1398, %v1642
        %v1740 = vadd.f32 %v1399, %v1644
        %v1741 = vlaneseq
        %v1742 = vshrl.u32 %v1741, 7
        %v1743 = vsub.s32 4, %v1742
        %v1744 = vrot.slane %v276, %v1743
        %v1745 = vmul.f32 %v304, %v1744
        %v1746 = vmul.f32 %v308, %v1744
        %v1747 = vmul.f32 %v312, %v1744
        %v1748 = vmul.f32 %v316, %v1744
        %v1749 = vmul.f32 %v327, %v1744
        %v1750 = vmul.f32 %v331, %v1744
        %v1751 = vmul.f32 %v335, %v1744
        %v1752 = vmul.f32 %v339, %v1744
        %v1753 = vmul.f32 %v350, %v1744
        %v1754 = vmul.f32 %v354, %v1744
        %v1755 = vmul.f32 %v358, %v1744
        %v1756 = vmul.f32 %v362, %v1744
        %v1757 = vmul.f32 %v373, %v1744
        %v1758 = vmul.f32 %v377, %v1744
        %v1759 = vmul.f32 %v381, %v1744
        %v1760 = vmul.f32 %v385, %v1744
        %v1761 = vmul.f32 %v396, %v1744
        %v1762 = vmul.f32 %v400, %v1744
        %v1763 = vmul.f32 %v404, %v1744
        %v1764 = vmul.f32 %v408, %v1744
        %v1765 = vmul.f32 %v419, %v1744
        %v1766 = vmul.f32 %v423, %v1744
        %v1767 = vmul.f32 %v427, %v1744
        %v1768 = vmul.f32 %v431, %v1744
        %v1769 = vmul.f32 %v442, %v1744
        %v1770 = vmul.f32 %v446, %v1744
        %v1771 = vmul.f32 %v450, %v1744
        %v1772 = vmul.f32 %v454, %v1744
        %v1773 = vmul.f32 %v465, %v1744
        %v1774 = vmul.f32 %v469, %v1744
        %v1775 = vmul.f32 %v473, %v1744
        %v1776 = vmul.f32 %v477, %v1744
        %v1777 = vmul.f32 %v488, %v1744
        %v1778 = vmul.f32 %v492, %v1744
        %v1779 = vmul.f32 %v496, %v1744
        %v1780 = vmul.f32 %v500, %v1744
        %v1781 = vmul.f32 %v511, %v1744
        %v1782 = vmul.f32 %v515, %v1744
        %v1783 = vmul.f32 %v519, %v1744
        %v1784 = vmul.f32 %v523, %v1744
        %v1785 = vmul.f32 %v534, %v1744
        %v1786 = vmul.f32 %v538, %v1744
        %v1787 = vmul.f32 %v542, %v1744
        %v1788 = vmul.f32 %v546, %v1744
        %v1789 = vmul.f32 %v557, %v1744
        %v1790 = vmul.f32 %v561, %v1744
        %v1791 = vmul.f32 %v565, %v1744
        %v1792 = vmul.f32 %v569, %v1744
        %v1793 = vmul.f32 %v580, %v1744
        %v1794 = vmul.f32 %v584, %v1744
        %v1795 = vmul.f32 %v588, %v1744
        %v1796 = vmul.f32 %v592, %v1744
        %v1797 = vmul.f32 %v603, %v1744
        %v1798 = vmul.f32 %v607, %v1744
        %v1799 = vmul.f32 %v611, %v1744
        %v1800 = vmul.f32 %v615, %v1744
        %v1801 = vmul.f32 %v626, %v1744
        %v1802 = vmul.f32 %v630, %v1744
        %v1803 = vmul.f32 %v634, %v1744
        %v1804 = vmul.f32 %v638, %v1744
        %v1805 = vmul.f32 %v649, %v1744
        %v1806 = vmul.f32 %v653, %v1744
        %v1807 = vmul.f32 %v657, %v1744
        %v1808 = vmul.f32 %v661, %v1744
        %vm1873 = vcmask 1043456
        %v1874 = vrot.slane %v1745, 4
        %v1875 = vrot.slane %v1746, 4
        %v1876 = vsel %vm1873, %v1874, %v1875
        %v1877 = vrot.slane %v1747, 4
        %v1878 = vsel %vm1873, %v1875, %v1877
        %v1879 = vrot.slane %v1748, 4
        %v1880 = vsel %vm1873, %v1877, %v1879
        %v1881 = vrot.slane %v1749, 4
        %v1882 = vrot.slane %v1750, 4
        %v1883 = vsel %vm1873, %v1881, %v1882
        %v1884 = vrot.slane %v1751, 4
        %v1885 = vsel %vm1873, %v1882, %v1884
        %v1886 = vrot.slane %v1752, 4
        %v1887 = vsel %vm1873, %v1884, %v1886
        %v1888 = vrot.slane %v1753, 4
        %v1889 = vrot.slane %v1754, 4
        %v1890 = vsel %vm1873, %v1888, %v1889
        %v1891 = vrot.slane %v1755, 4
        %v1892 = vsel %vm1873, %v1889, %v1891
        %v1893 = vrot.slane %v1756, 4
        %v1894 = vsel %vm1873, %v1891, %v1893
        %v1895 = vrot.slane %v1757, 4
        %v1896 = vrot.slane %v1758, 4
        %v1897 = vsel %vm1873, %v1895, %v1896
        %v1898 = vrot.slane %v1759, 4
        %v1899 = vsel %vm1873, %v1896, %v1898
        %v1900 = vrot.slane %v1760, 4
        %v1901 = vsel %vm1873, %v1898, %v1900
        %v1902 = vrot.slane %v1761, 4
        %v1903 = vrot.slane %v1762, 4
        %v1904 = vsel %vm1873, %v1902, %v1903
        %v1905 = vrot.slane %v1763, 4
        %v1906 = vsel %vm1873, %v1903, %v1905
        %v1907 = vrot.slane %v1764, 4
        %v1908 = vsel %vm1873, %v1905, %v1907
        %v1909 = vrot.slane %v1765, 4
        %v1910 = vrot.slane %v1766, 4
        %v1911 = vsel %vm1873, %v1909, %v1910
        %v1912 = vrot.slane %v1767, 4
        %v1913 = vsel %vm1873, %v1910, %v1912
        %v1914 = vrot.slane %v1768, 4
        %v1915 = vsel %vm1873, %v1912, %v1914
        %v1916 = vrot.slane %v1769, 4
        %v1917 = vrot.slane %v1770, 4
        %v1918 = vsel %vm1873, %v1916, %v1917
        %v1919 = vrot.slane %v1771, 4
        %v1920 = vsel %vm1873, %v1917, %v1919
        %v1921 = vrot.slane %v1772, 4
        %v1922 = vsel %vm1873, %v1919, %v1921
        %v1923 = vrot.slane %v1773, 4
        %v1924 = vrot.slane %v1774, 4
        %v1925 = vsel %vm1873, %v1923, %v1924
        %v1926 = vrot.slane %v1775, 4
        %v1927 = vsel %vm1873, %v1924, %v1926
        %v1928 = vrot.slane %v1776, 4
        %v1929 = vsel %vm1873, %v1926, %v1928
        %v1930 = vrot.slane %v1777, 4
        %v1931 = vrot.slane %v1778, 4
        %v1932 = vsel %vm1873, %v1930, %v1931
        %v1933 = vrot.slane %v1779, 4
        %v1934 = vsel %vm1873, %v1931, %v1933
        %v1935 = vrot.slane %v1780, 4
        %v1936 = vsel %vm1873, %v1933, %v1935
        %v1937 = vrot.slane %v1781, 4
        %v1938 = vrot.slane %v1782, 4
        %v1939 = vsel %vm1873, %v1937, %v1938
        %v1940 = vrot.slane %v1783, 4
        %v1941 = vsel %vm1873, %v1938, %v1940
        %v1942 = vrot.slane %v1784, 4
        %v1943 = vsel %vm1873, %v1940, %v1942
        %v1944 = vrot.slane %v1785, 4
        %v1945 = vrot.slane %v1786, 4
        %v1946 = vsel %vm1873, %v1944, %v1945
        %v1947 = vrot.slane %v1787, 4
        %v1948 = vsel %vm1873, %v1945, %v1947
        %v1949 = vrot.slane %v1788, 4
        %v1950 = vsel %vm1873, %v1947, %v1949
        %v1951 = vrot.slane %v1789, 4
        %v1952 = vrot.slane %v1790, 4
        %v1953 = vsel %vm1873, %v1951, %v1952
        %v1954 = vrot.slane %v1791, 4
        %v1955 = vsel %vm1873, %v1952, %v1954
        %v1956 = vrot.slane %v1792, 4
        %v1957 = vsel %vm1873, %v1954, %v1956
        %v1958 = vrot.slane %v1793, 4
        %v1959 = vrot.slane %v1794, 4
        %v1960 = vsel %vm1873, %v1958, %v1959
        %v1961 = vrot.slane %v1795, 4
        %v1962 = vsel %vm1873, %v1959, %v1961
        %v1963 = vrot.slane %v1796, 4
        %v1964 = vsel %vm1873, %v1961, %v1963
        %v1965 = vrot.slane %v1797, 4
        %v1966 = vrot.slane %v1798, 4
        %v1967 = vsel %vm1873, %v1965, %v1966
        %v1968 = vrot.slane %v1799, 4
        %v1969 = vsel %vm1873, %v1966, %v1968
        %v1970 = vrot.slane %v1800, 4
        %v1971 = vsel %vm1873, %v1968, %v1970
        %v1972 = vrot.slane %v1801, 4
        %v1973 = vrot.slane %v1802, 4
        %v1974 = vsel %vm1873, %v1972, %v1973
        %v1975 = vrot.slane %v1803, 4
        %v1976 = vsel %vm1873, %v1973, %v1975
        %v1977 = vrot.slane %v1804, 4
        %v1978 = vsel %vm1873, %v1975, %v1977
        %v1979 = vrot.slane %v1805, 4
        %v1980 = vrot.slane %v1806, 4
        %v1981 = vsel %vm1873, %v1979, %v1980
        %v1982 = vrot.slane %v1807, 4
        %v1983 = vsel %vm1873, %v1980, %v1982
        %v1984 = vrot.slane %v1808, 4
        %v1985 = vsel %vm1873, %v1982, %v1984
        %v2034 = vadd.f32 %v1693, %v1876
        %v2035 = vadd.f32 %v1694, %v1878
        %v2036 = vadd.f32 %v1695, %v1880
        %v2037 = vadd.f32 %v1696, %v1883
        %v2038 = vadd.f32 %v1697, %v1885
        %v2039 = vadd.f32 %v1698, %v1887
        %v2040 = vadd.f32 %v1699, %v1890
        %v2041 = vadd.f32 %v1700, %v1892
        %v2042 = vadd.f32 %v1701, %v1894
        %v2043 = vadd.f32 %v1702, %v1897
        %v2044 = vadd.f32 %v1703, %v1899
        %v2045 = vadd.f32 %v1704, %v1901
        %v2046 = vadd.f32 %v1705, %v1904
        %v2047 = vadd.f32 %v1706, %v1906
        %v2048 = vadd.f32 %v1707, %v1908
        %v2049 = vadd.f32 %v1708, %v1911
        %v2050 = vadd.f32 %v1709, %v1913
        %v2051 = vadd.f32 %v1710, %v1915
        %v2052 = vadd.f32 %v1711, %v1918
        %v2053 = vadd.f32 %v1712, %v1920
        %v2054 = vadd.f32 %v1713, %v1922
        %v2055 = vadd.f32 %v1714, %v1925
        %v2056 = vadd.f32 %v1715, %v1927
        %v2057 = vadd.f32 %v1716, %v1929
        %v2058 = vadd.f32 %v1717, %v1932
        %v2059 = vadd.f32 %v1718, %v1934
        %v2060 = vadd.f32 %v1719, %v1936
        %v2061 = vadd.f32 %v1720, %v1939
        %v2062 = vadd.f32 %v1721, %v1941
        %v2063 = vadd.f32 %v1722, %v1943
        %v2064 = vadd.f32 %v1723, %v1946
        %v2065 = vadd.f32 %v1724, %v1948
        %v2066 = vadd.f32 %v1725, %v1950
        %v2067 = vadd.f32 %v1726, %v1953
        %v2068 = vadd.f32 %v1727, %v1955
        %v2069 = vadd.f32 %v1728, %v1957
        %v2070 = vadd.f32 %v1729, %v1960
        %v2071 = vadd.f32 %v1730, %v1962
        %v2072 = vadd.f32 %v1731, %v1964
        %v2073 = vadd.f32 %v1732, %v1967
        %v2074 = vadd.f32 %v1733, %v1969
        %v2075 = vadd.f32 %v1734, %v1971
        %v2076 = vadd.f32 %v1735, %v1974
        %v2077 = vadd.f32 %v1736, %v1976
        %v2078 = vadd.f32 %v1737, %v1978
        %v2079 = vadd.f32 %v1738, %v1981
        %v2080 = vadd.f32 %v1739, %v1983
        %v2081 = vadd.f32 %v1740, %v1985
        %v2082 = vlaneseq
        %v2083 = vshrl.u32 %v2082, 7
        %v2084 = vsub.s32 5, %v2083
        %v2085 = vrot.slane %v276, %v2084
        %v2086 = vmul.f32 %v304, %v2085
        %v2087 = vmul.f32 %v308, %v2085
        %v2088 = vmul.f32 %v312, %v2085
        %v2089 = vmul.f32 %v316, %v2085
        %v2090 = vmul.f32 %v327, %v2085
        %v2091 = vmul.f32 %v331, %v2085
        %v2092 = vmul.f32 %v335, %v2085
        %v2093 = vmul.f32 %v339, %v2085
        %v2094 = vmul.f32 %v350, %v2085
        %v2095 = vmul.f32 %v354, %v2085
        %v2096 = vmul.f32 %v358, %v2085
        %v2097 = vmul.f32 %v362, %v2085
        %v2098 = vmul.f32 %v373, %v2085
        %v2099 = vmul.f32 %v377, %v2085
        %v2100 = vmul.f32 %v381, %v2085
        %v2101 = vmul.f32 %v385, %v2085
        %v2102 = vmul.f32 %v396, %v2085
        %v2103 = vmul.f32 %v400, %v2085
        %v2104 = vmul.f32 %v404, %v2085
        %v2105 = vmul.f32 %v408, %v2085
        %v2106 = vmul.f32 %v419, %v2085
        %v2107 = vmul.f32 %v423, %v2085
        %v2108 = vmul.f32 %v427, %v2085
        %v2109 = vmul.f32 %v431, %v2085
        %v2110 = vmul.f32 %v442, %v2085
        %v2111 = vmul.f32 %v446, %v2085
        %v2112 = vmul.f32 %v450, %v2085
        %v2113 = vmul.f32 %v454, %v2085
        %v2114 = vmul.f32 %v465, %v2085
        %v2115 = vmul.f32 %v469, %v2085
        %v2116 = vmul.f32 %v473, %v2085
        %v2117 = vmul.f32 %v477, %v2085
        %v2118 = vmul.f32 %v488, %v2085
        %v2119 = vmul.f32 %v492, %v2085
        %v2120 = vmul.f32 %v496, %v2085
        %v2121 = vmul.f32 %v500, %v2085
        %v2122 = vmul.f32 %v511, %v2085
        %v2123 = vmul.f32 %v515, %v2085
        %v2124 = vmul.f32 %v519, %v2085
        %v2125 = vmul.f32 %v523, %v2085
        %v2126 = vmul.f32 %v534, %v2085
        %v2127 = vmul.f32 %v538, %v2085
        %v2128 = vmul.f32 %v542, %v2085
        %v2129 = vmul.f32 %v546, %v2085
        %v2130 = vmul.f32 %v557, %v2085
        %v2131 = vmul.f32 %v561, %v2085
        %v2132 = vmul.f32 %v565, %v2085
        %v2133 = vmul.f32 %v569, %v2085
        %v2134 = vmul.f32 %v580, %v2085
        %v2135 = vmul.f32 %v584, %v2085
        %v2136 = vmul.f32 %v588, %v2085
        %v2137 = vmul.f32 %v592, %v2085
        %v2138 = vmul.f32 %v603, %v2085
        %v2139 = vmul.f32 %v607, %v2085
        %v2140 = vmul.f32 %v611, %v2085
        %v2141 = vmul.f32 %v615, %v2085
        %v2142 = vmul.f32 %v626, %v2085
        %v2143 = vmul.f32 %v630, %v2085
        %v2144 = vmul.f32 %v634, %v2085
        %v2145 = vmul.f32 %v638, %v2085
        %v2146 = vmul.f32 %v649, %v2085
        %v2147 = vmul.f32 %v653, %v2085
        %v2148 = vmul.f32 %v657, %v2085
        %v2149 = vmul.f32 %v661, %v2085
        %vm2214 = vcmask 1042432
        %v2215 = vrot.slane %v2086, 5
        %v2216 = vrot.slane %v2087, 5
        %v2217 = vsel %vm2214, %v2215, %v2216
        %v2218 = vrot.slane %v2088, 5
        %v2219 = vsel %vm2214, %v2216, %v2218
        %v2220 = vrot.slane %v2089, 5
        %v2221 = vsel %vm2214, %v2218, %v2220
        %v2222 = vrot.slane %v2090, 5
        %v2223 = vrot.slane %v2091, 5
        %v2224 = vsel %vm2214, %v2222, %v2223
        %v2225 = vrot.slane %v2092, 5
        %v2226 = vsel %vm2214, %v2223, %v2225
        %v2227 = vrot.slane %v2093, 5
        %v2228 = vsel %vm2214, %v2225, %v2227
        %v2229 = vrot.slane %v2094, 5
        %v2230 = vrot.slane %v2095, 5
        %v2231 = vsel %vm2214, %v2229, %v2230
        %v2232 = vrot.slane %v2096, 5
        %v2233 = vsel %vm2214, %v2230, %v2232
        %v2234 = vrot.slane %v2097, 5
        %v2235 = vsel %vm2214, %v2232, %v2234
        %v2236 = vrot.slane %v2098, 5
        %v2237 = vrot.slane %v2099, 5
        %v2238 = vsel %vm2214, %v2236, %v2237
        %v2239 = vrot.slane %v2100, 5
        %v2240 = vsel %vm2214, %v2237, %v2239
        %v2241 = vrot.slane %v2101, 5
        %v2242 = vsel %vm2214, %v2239, %v2241
        %v2243 = vrot.slane %v2102, 5
        %v2244 = vrot.slane %v2103, 5
        %v2245 = vsel %vm2214, %v2243, %v2244
        %v2246 = vrot.slane %v2104, 5
        %v2247 = vsel %vm2214, %v2244, %v2246
        %v2248 = vrot.slane %v2105, 5
        %v2249 = vsel %vm2214, %v2246, %v2248
        %v2250 = vrot.slane %v2106, 5
        %v2251 = vrot.slane %v2107, 5
        %v2252 = vsel %vm2214, %v2250, %v2251
        %v2253 = vrot.slane %v2108, 5
        %v2254 = vsel %vm2214, %v2251, %v2253
        %v2255 = vrot.slane %v2109, 5
        %v2256 = vsel %vm2214, %v2253, %v2255
        %v2257 = vrot.slane %v2110, 5
        %v2258 = vrot.slane %v2111, 5
        %v2259 = vsel %vm2214, %v2257, %v2258
        %v2260 = vrot.slane %v2112, 5
        %v2261 = vsel %vm2214, %v2258, %v2260
        %v2262 = vrot.slane %v2113, 5
        %v2263 = vsel %vm2214, %v2260, %v2262
        %v2264 = vrot.slane %v2114, 5
        %v2265 = vrot.slane %v2115, 5
        %v2266 = vsel %vm2214, %v2264, %v2265
        %v2267 = vrot.slane %v2116, 5
        %v2268 = vsel %vm2214, %v2265, %v2267
        %v2269 = vrot.slane %v2117, 5
        %v2270 = vsel %vm2214, %v2267, %v2269
        %v2271 = vrot.slane %v2118, 5
        %v2272 = vrot.slane %v2119, 5
        %v2273 = vsel %vm2214, %v2271, %v2272
        %v2274 = vrot.slane %v2120, 5
        %v2275 = vsel %vm2214, %v2272, %v2274
        %v2276 = vrot.slane %v2121, 5
        %v2277 = vsel %vm2214, %v2274, %v2276
        %v2278 = vrot.slane %v2122, 5
        %v2279 = vrot.slane %v2123, 5
        %v2280 = vsel %vm2214, %v2278, %v2279
        %v2281 = vrot.slane %v2124, 5
        %v2282 = vsel %vm2214, %v2279, %v2281
        %v2283 = vrot.slane %v2125, 5
        %v2284 = vsel %vm2214, %v2281, %v2283
        %v2285 = vrot.slane %v2126, 5
        %v2286 = vrot.slane %v2127, 5
        %v2287 = vsel %vm2214, %v2285, %v2286
        %v2288 = vrot.slane %v2128, 5
        %v2289 = vsel %vm2214, %v2286, %v2288
        %v2290 = vrot.slane %v2129, 5
        %v2291 = vsel %vm2214, %v2288, %v2290
        %v2292 = vrot.slane %v2130, 5
        %v2293 = vrot.slane %v2131, 5
        %v2294 = vsel %vm2214, %v2292, %v2293
        %v2295 = vrot.slane %v2132, 5
        %v2296 = vsel %vm2214, %v2293, %v2295
        %v2297 = vrot.slane %v2133, 5
        %v2298 = vsel %vm2214, %v2295, %v2297
        %v2299 = vrot.slane %v2134, 5
        %v2300 = vrot.slane %v2135, 5
        %v2301 = vsel %vm2214, %v2299, %v2300
        %v2302 = vrot.slane %v2136, 5
        %v2303 = vsel %vm2214, %v2300, %v2302
        %v2304 = vrot.slane %v2137, 5
        %v2305 = vsel %vm2214, %v2302, %v2304
        %v2306 = vrot.slane %v2138, 5
        %v2307 = vrot.slane %v2139, 5
        %v2308 = vsel %vm2214, %v2306, %v2307
        %v2309 = vrot.slane %v2140, 5
        %v2310 = vsel %vm2214, %v2307, %v2309
        %v2311 = vrot.slane %v2141, 5
        %v2312 = vsel %vm2214, %v2309, %v2311
        %v2313 = vrot.slane %v2142, 5
        %v2314 = vrot.slane %v2143, 5
        %v2315 = vsel %vm2214, %v2313, %v2314
        %v2316 = vrot.slane %v2144, 5
        %v2317 = vsel %vm2214, %v2314, %v2316
        %v2318 = vrot.slane %v2145, 5
        %v2319 = vsel %vm2214, %v2316, %v2318
        %v2320 = vrot.slane %v2146, 5
        %v2321 = vrot.slane %v2147, 5
        %v2322 = vsel %vm2214, %v2320, %v2321
        %v2323 = vrot.slane %v2148, 5
        %v2324 = vsel %vm2214, %v2321, %v2323
        %v2325 = vrot.slane %v2149, 5
        %v2326 = vsel %vm2214, %v2323, %v2325
        %v2375 = vadd.f32 %v2034, %v2217
        %v2376 = vadd.f32 %v2035, %v2219
        %v2377 = vadd.f32 %v2036, %v2221
        %v2378 = vadd.f32 %v2037, %v2224
        %v2379 = vadd.f32 %v2038, %v2226
        %v2380 = vadd.f32 %v2039, %v2228
        %v2381 = vadd.f32 %v2040, %v2231
        %v2382 = vadd.f32 %v2041, %v2233
        %v2383 = vadd.f32 %v2042, %v2235
        %v2384 = vadd.f32 %v2043, %v2238
        %v2385 = vadd.f32 %v2044, %v2240
        %v2386 = vadd.f32 %v2045, %v2242
        %v2387 = vadd.f32 %v2046, %v2245
        %v2388 = vadd.f32 %v2047, %v2247
        %v2389 = vadd.f32 %v2048, %v2249
        %v2390 = vadd.f32 %v2049, %v2252
        %v2391 = vadd.f32 %v2050, %v2254
        %v2392 = vadd.f32 %v2051, %v2256
        %v2393 = vadd.f32 %v2052, %v2259
        %v2394 = vadd.f32 %v2053, %v2261
        %v2395 = vadd.f32 %v2054, %v2263
        %v2396 = vadd.f32 %v2055, %v2266
        %v2397 = vadd.f32 %v2056, %v2268
        %v2398 = vadd.f32 %v2057, %v2270
        %v2399 = vadd.f32 %v2058, %v2273
        %v2400 = vadd.f32 %v2059, %v2275
        %v2401 = vadd.f32 %v2060, %v2277
        %v2402 = vadd.f32 %v2061, %v2280
        %v2403 = vadd.f32 %v2062, %v2282
        %v2404 = vadd.f32 %v2063, %v2284
        %v2405 = vadd.f32 %v2064, %v2287
        %v2406 = vadd.f32 %v2065, %v2289
        %v2407 = vadd.f32 %v2066, %v2291
        %v2408 = vadd.f32 %v2067, %v2294
        %v2409 = vadd.f32 %v2068, %v2296
        %v2410 = vadd.f32 %v2069, %v2298
        %v2411 = vadd.f32 %v2070, %v2301
        %v2412 = vadd.f32 %v2071, %v2303
        %v2413 = vadd.f32 %v2072, %v2305
        %v2414 = vadd.f32 %v2073, %v2308
        %v2415 = vadd.f32 %v2074, %v2310
        %v2416 = vadd.f32 %v2075, %v2312
        %v2417 = vadd.f32 %v2076, %v2315
        %v2418 = vadd.f32 %v2077, %v2317
        %v2419 = vadd.f32 %v2078, %v2319
        %v2420 = vadd.f32 %v2079, %v2322
        %v2421 = vadd.f32 %v2080, %v2324
        %v2422 = vadd.f32 %v2081, %v2326
        %v2423 = vlaneseq
        %v2424 = vshrl.u32 %v2423, 7
        %v2425 = vsub.s32 6, %v2424
        %v2426 = vrot.slane %v276, %v2425
        %v2427 = vmul.f32 %v304, %v2426
        %v2428 = vmul.f32 %v308, %v2426
        %v2429 = vmul.f32 %v312, %v2426
        %v2430 = vmul.f32 %v316, %v2426
        %v2431 = vmul.f32 %v327, %v2426
        %v2432 = vmul.f32 %v331, %v2426
        %v2433 = vmul.f32 %v335, %v2426
        %v2434 = vmul.f32 %v339, %v2426
        %v2435 = vmul.f32 %v350, %v2426
        %v2436 = vmul.f32 %v354, %v2426
        %v2437 = vmul.f32 %v358, %v2426
        %v2438 = vmul.f32 %v362, %v2426
        %v2439 = vmul.f32 %v373, %v2426
        %v2440 = vmul.f32 %v377, %v2426
        %v2441 = vmul.f32 %v381, %v2426
        %v2442 = vmul.f32 %v385, %v2426
        %v2443 = vmul.f32 %v396, %v2426
        %v2444 = vmul.f32 %v400, %v2426
        %v2445 = vmul.f32 %v404, %v2426
        %v2446 = vmul.f32 %v408, %v2426
        %v2447 = vmul.f32 %v419, %v2426
        %v2448 = vmul.f32 %v423, %v2426
        %v2449 = vmul.f32 %v427, %v2426
        %v2450 = vmul.f32 %v431, %v2426
        %v2451 = vmul.f32 %v442, %v2426
        %v2452 = vmul.f32 %v446, %v2426
        %v2453 = vmul.f32 %v450, %v2426
        %v2454 = vmul.f32 %v454, %v2426
        %v2455 = vmul.f32 %v465, %v2426
        %v2456 = vmul.f32 %v469, %v2426
        %v2457 = vmul.f32 %v473, %v2426
        %v2458 = vmul.f32 %v477, %v2426
        %v2459 = vmul.f32 %v488, %v2426
        %v2460 = vmul.f32 %v492, %v2426
        %v2461 = vmul.f32 %v496, %v2426
        %v2462 = vmul.f32 %v500, %v2426
        %v2463 = vmul.f32 %v511, %v2426
        %v2464 = vmul.f32 %v515, %v2426
        %v2465 = vmul.f32 %v519, %v2426
        %v2466 = vmul.f32 %v523, %v2426
        %v2467 = vmul.f32 %v534, %v2426
        %v2468 = vmul.f32 %v538, %v2426
        %v2469 = vmul.f32 %v542, %v2426
        %v2470 = vmul.f32 %v546, %v2426
        %v2471 = vmul.f32 %v557, %v2426
        %v2472 = vmul.f32 %v561, %v2426
        %v2473 = vmul.f32 %v565, %v2426
        %v2474 = vmul.f32 %v569, %v2426
        %v2475 = vmul.f32 %v580, %v2426
        %v2476 = vmul.f32 %v584, %v2426
        %v2477 = vmul.f32 %v588, %v2426
        %v2478 = vmul.f32 %v592, %v2426
        %v2479 = vmul.f32 %v603, %v2426
        %v2480 = vmul.f32 %v607, %v2426
        %v2481 = vmul.f32 %v611, %v2426
        %v2482 = vmul.f32 %v615, %v2426
        %v2483 = vmul.f32 %v626, %v2426
        %v2484 = vmul.f32 %v630, %v2426
        %v2485 = vmul.f32 %v634, %v2426
        %v2486 = vmul.f32 %v638, %v2426
        %v2487 = vmul.f32 %v649, %v2426
        %v2488 = vmul.f32 %v653, %v2426
        %v2489 = vmul.f32 %v657, %v2426
        %v2490 = vmul.f32 %v661, %v2426
        %vm2555 = vcmask 1041408
        %v2556 = vrot.slane %v2427, 6
        %v2557 = vrot.slane %v2428, 6
        %v2558 = vsel %vm2555, %v2556, %v2557
        %v2559 = vrot.slane %v2429, 6
        %v2560 = vsel %vm2555, %v2557, %v2559
        %v2561 = vrot.slane %v2430, 6
        %v2562 = vsel %vm2555, %v2559, %v2561
        %v2563 = vrot.slane %v2431, 6
        %v2564 = vrot.slane %v2432, 6
        %v2565 = vsel %vm2555, %v2563, %v2564
        %v2566 = vrot.slane %v2433, 6
        %v2567 = vsel %vm2555, %v2564, %v2566
        %v2568 = vrot.slane %v2434, 6
        %v2569 = vsel %vm2555, %v2566, %v2568
        %v2570 = vrot.slane %v2435, 6
        %v2571 = vrot.slane %v2436, 6
        %v2572 = vsel %vm2555, %v2570, %v2571
        %v2573 = vrot.slane %v2437, 6
        %v2574 = vsel %vm2555, %v2571, %v2573
        %v2575 = vrot.slane %v2438, 6
        %v2576 = vsel %vm2555, %v2573, %v2575
        %v2577 = vrot.slane %v2439, 6
        %v2578 = vrot.slane %v2440, 6
        %v2579 = vsel %vm2555, %v2577, %v2578
        %v2580 = vrot.slane %v2441, 6
        %v2581 = vsel %vm2555, %v2578, %v2580
        %v2582 = vrot.slane %v2442, 6
        %v2583 = vsel %vm2555, %v2580, %v2582
        %v2584 = vrot.slane %v2443, 6
        %v2585 = vrot.slane %v2444, 6
        %v2586 = vsel %vm2555, %v2584, %v2585
        %v2587 = vrot.slane %v2445, 6
        %v2588 = vsel %vm2555, %v2585, %v2587
        %v2589 = vrot.slane %v2446, 6
        %v2590 = vsel %vm2555, %v2587, %v2589
        %v2591 = vrot.slane %v2447, 6
        %v2592 = vrot.slane %v2448, 6
        %v2593 = vsel %vm2555, %v2591, %v2592
        %v2594 = vrot.slane %v2449, 6
        %v2595 = vsel %vm2555, %v2592, %v2594
        %v2596 = vrot.slane %v2450, 6
        %v2597 = vsel %vm2555, %v2594, %v2596
        %v2598 = vrot.slane %v2451, 6
        %v2599 = vrot.slane %v2452, 6
        %v2600 = vsel %vm2555, %v2598, %v2599
        %v2601 = vrot.slane %v2453, 6
        %v2602 = vsel %vm2555, %v2599, %v2601
        %v2603 = vrot.slane %v2454, 6
        %v2604 = vsel %vm2555, %v2601, %v2603
        %v2605 = vrot.slane %v2455, 6
        %v2606 = vrot.slane %v2456, 6
        %v2607 = vsel %vm2555, %v2605, %v2606
        %v2608 = vrot.slane %v2457, 6
        %v2609 = vsel %vm2555, %v2606, %v2608
        %v2610 = vrot.slane %v2458, 6
        %v2611 = vsel %vm2555, %v2608, %v2610
        %v2612 = vrot.slane %v2459, 6
        %v2613 = vrot.slane %v2460, 6
        %v2614 = vsel %vm2555, %v2612, %v2613
        %v2615 = vrot.slane %v2461, 6
        %v2616 = vsel %vm2555, %v2613, %v2615
        %v2617 = vrot.slane %v2462, 6
        %v2618 = vsel %vm2555, %v2615, %v2617
        %v2619 = vrot.slane %v2463, 6
        %v2620 = vrot.slane %v2464, 6
        %v2621 = vsel %vm2555, %v2619, %v2620
        %v2622 = vrot.slane %v2465, 6
        %v2623 = vsel %vm2555, %v2620, %v2622
        %v2624 = vrot.slane %v2466, 6
        %v2625 = vsel %vm2555, %v2622, %v2624
        %v2626 = vrot.slane %v2467, 6
        %v2627 = vrot.slane %v2468, 6
        %v2628 = vsel %vm2555, %v2626, %v2627
        %v2629 = vrot.slane %v2469, 6
        %v2630 = vsel %vm2555, %v2627, %v2629
        %v2631 = vrot.slane %v2470, 6
        %v2632 = vsel %vm2555, %v2629, %v2631
        %v2633 = vrot.slane %v2471, 6
        %v2634 = vrot.slane %v2472, 6
        %v2635 = vsel %vm2555, %v2633, %v2634
        %v2636 = vrot.slane %v2473, 6
        %v2637 = vsel %vm2555, %v2634, %v2636
        %v2638 = vrot.slane %v2474, 6
        %v2639 = vsel %vm2555, %v2636, %v2638
        %v2640 = vrot.slane %v2475, 6
        %v2641 = vrot.slane %v2476, 6
        %v2642 = vsel %vm2555, %v2640, %v2641
        %v2643 = vrot.slane %v2477, 6
        %v2644 = vsel %vm2555, %v2641, %v2643
        %v2645 = vrot.slane %v2478, 6
        %v2646 = vsel %vm2555, %v2643, %v2645
        %v2647 = vrot.slane %v2479, 6
        %v2648 = vrot.slane %v2480, 6
        %v2649 = vsel %vm2555, %v2647, %v2648
        %v2650 = vrot.slane %v2481, 6
        %v2651 = vsel %vm2555, %v2648, %v2650
        %v2652 = vrot.slane %v2482, 6
        %v2653 = vsel %vm2555, %v2650, %v2652
        %v2654 = vrot.slane %v2483, 6
        %v2655 = vrot.slane %v2484, 6
        %v2656 = vsel %vm2555, %v2654, %v2655
        %v2657 = vrot.slane %v2485, 6
        %v2658 = vsel %vm2555, %v2655, %v2657
        %v2659 = vrot.slane %v2486, 6
        %v2660 = vsel %vm2555, %v2657, %v2659
        %v2661 = vrot.slane %v2487, 6
        %v2662 = vrot.slane %v2488, 6
        %v2663 = vsel %vm2555, %v2661, %v2662
        %v2664 = vrot.slane %v2489, 6
        %v2665 = vsel %vm2555, %v2662, %v2664
        %v2666 = vrot.slane %v2490, 6
        %v2667 = vsel %vm2555, %v2664, %v2666
        %v2716 = vadd.f32 %v2375, %v2558
        %v2717 = vadd.f32 %v2376, %v2560
        %v2718 = vadd.f32 %v2377, %v2562
        %v2719 = vadd.f32 %v2378, %v2565
        %v2720 = vadd.f32 %v2379, %v2567
        %v2721 = vadd.f32 %v2380, %v2569
        %v2722 = vadd.f32 %v2381, %v2572
        %v2723 = vadd.f32 %v2382, %v2574
        %v2724 = vadd.f32 %v2383, %v2576
        %v2725 = vadd.f32 %v2384, %v2579
        %v2726 = vadd.f32 %v2385, %v2581
        %v2727 = vadd.f32 %v2386, %v2583
        %v2728 = vadd.f32 %v2387, %v2586
        %v2729 = vadd.f32 %v2388, %v2588
        %v2730 = vadd.f32 %v2389, %v2590
        %v2731 = vadd.f32 %v2390, %v2593
        %v2732 = vadd.f32 %v2391, %v2595
        %v2733 = vadd.f32 %v2392, %v2597
        %v2734 = vadd.f32 %v2393, %v2600
        %v2735 = vadd.f32 %v2394, %v2602
        %v2736 = vadd.f32 %v2395, %v2604
        %v2737 = vadd.f32 %v2396, %v2607
        %v2738 = vadd.f32 %v2397, %v2609
        %v2739 = vadd.f32 %v2398, %v2611
        %v2740 = vadd.f32 %v2399, %v2614
        %v2741 = vadd.f32 %v2400, %v2616
        %v2742 = vadd.f32 %v2401, %v2618
        %v2743 = vadd.f32 %v2402, %v2621
        %v2744 = vadd.f32 %v2403, %v2623
        %v2745 = vadd.f32 %v2404, %v2625
        %v2746 = vadd.f32 %v2405, %v2628
        %v2747 = vadd.f32 %v2406, %v2630
        %v2748 = vadd.f32 %v2407, %v2632
        %v2749 = vadd.f32 %v2408, %v2635
        %v2750 = vadd.f32 %v2409, %v2637
        %v2751 = vadd.f32 %v2410, %v2639
        %v2752 = vadd.f32 %v2411, %v2642
        %v2753 = vadd.f32 %v2412, %v2644
        %v2754 = vadd.f32 %v2413, %v2646
        %v2755 = vadd.f32 %v2414, %v2649
        %v2756 = vadd.f32 %v2415, %v2651
        %v2757 = vadd.f32 %v2416, %v2653
        %v2758 = vadd.f32 %v2417, %v2656
        %v2759 = vadd.f32 %v2418, %v2658
        %v2760 = vadd.f32 %v2419, %v2660
        %v2761 = vadd.f32 %v2420, %v2663
        %v2762 = vadd.f32 %v2421, %v2665
        %v2763 = vadd.f32 %v2422, %v2667
        %v2764 = vlaneseq
        %v2765 = vshrl.u32 %v2764, 7
        %v2766 = vsub.s32 7, %v2765
        %v2767 = vrot.slane %v276, %v2766
        %v2768 = vmul.f32 %v304, %v2767
        %v2769 = vmul.f32 %v308, %v2767
        %v2770 = vmul.f32 %v312, %v2767
        %v2771 = vmul.f32 %v316, %v2767
        %v2772 = vmul.f32 %v327, %v2767
        %v2773 = vmul.f32 %v331, %v2767
        %v2774 = vmul.f32 %v335, %v2767
        %v2775 = vmul.f32 %v339, %v2767
        %v2776 = vmul.f32 %v350, %v2767
        %v2777 = vmul.f32 %v354, %v2767
        %v2778 = vmul.f32 %v358, %v2767
        %v2779 = vmul.f32 %v362, %v2767
        %v2780 = vmul.f32 %v373, %v2767
        %v2781 = vmul.f32 %v377, %v2767
        %v2782 = vmul.f32 %v381, %v2767
        %v2783 = vmul.f32 %v385, %v2767
        %v2784 = vmul.f32 %v396, %v2767
        %v2785 = vmul.f32 %v400, %v2767
        %v2786 = vmul.f32 %v404, %v2767
        %v2787 = vmul.f32 %v408, %v2767
        %v2788 = vmul.f32 %v419, %v2767
        %v2789 = vmul.f32 %v423, %v2767
        %v2790 = vmul.f32 %v427, %v2767
        %v2791 = vmul.f32 %v431, %v2767
        %v2792 = vmul.f32 %v442, %v2767
        %v2793 = vmul.f32 %v446, %v2767
        %v2794 = vmul.f32 %v450, %v2767
        %v2795 = vmul.f32 %v454, %v2767
        %v2796 = vmul.f32 %v465, %v2767
        %v2797 = vmul.f32 %v469, %v2767
        %v2798 = vmul.f32 %v473, %v2767
        %v2799 = vmul.f32 %v477, %v2767
        %v2800 = vmul.f32 %v488, %v2767
        %v2801 = vmul.f32 %v492, %v2767
        %v2802 = vmul.f32 %v496, %v2767
        %v2803 = vmul.f32 %v500, %v2767
        %v2804 = vmul.f32 %v511, %v2767
        %v2805 = vmul.f32 %v515, %v2767
        %v2806 = vmul.f32 %v519, %v2767
        %v2807 = vmul.f32 %v523, %v2767
        %v2808 = vmul.f32 %v534, %v2767
        %v2809 = vmul.f32 %v538, %v2767
        %v2810 = vmul.f32 %v542, %v2767
        %v2811 = vmul.f32 %v546, %v2767
        %v2812 = vmul.f32 %v557, %v2767
        %v2813 = vmul.f32 %v561, %v2767
        %v2814 = vmul.f32 %v565, %v2767
        %v2815 = vmul.f32 %v569, %v2767
        %v2816 = vmul.f32 %v580, %v2767
        %v2817 = vmul.f32 %v584, %v2767
        %v2818 = vmul.f32 %v588, %v2767
        %v2819 = vmul.f32 %v592, %v2767
        %v2820 = vmul.f32 %v603, %v2767
        %v2821 = vmul.f32 %v607, %v2767
        %v2822 = vmul.f32 %v611, %v2767
        %v2823 = vmul.f32 %v615, %v2767
        %v2824 = vmul.f32 %v626, %v2767
        %v2825 = vmul.f32 %v630, %v2767
        %v2826 = vmul.f32 %v634, %v2767
        %v2827 = vmul.f32 %v638, %v2767
        %v2828 = vmul.f32 %v649, %v2767
        %v2829 = vmul.f32 %v653, %v2767
        %v2830 = vmul.f32 %v657, %v2767
        %v2831 = vmul.f32 %v661, %v2767
        %vm2896 = vcmask 1040384
        %v2897 = vrot.slane %v2768, 7
        %v2898 = vrot.slane %v2769, 7
        %v2899 = vsel %vm2896, %v2897, %v2898
        %v2900 = vrot.slane %v2770, 7
        %v2901 = vsel %vm2896, %v2898, %v2900
        %v2902 = vrot.slane %v2771, 7
        %v2903 = vsel %vm2896, %v2900, %v2902
        %v2904 = vrot.slane %v2772, 7
        %v2905 = vrot.slane %v2773, 7
        %v2906 = vsel %vm2896, %v2904, %v2905
        %v2907 = vrot.slane %v2774, 7
        %v2908 = vsel %vm2896, %v2905, %v2907
        %v2909 = vrot.slane %v2775, 7
        %v2910 = vsel %vm2896, %v2907, %v2909
        %v2911 = vrot.slane %v2776, 7
        %v2912 = vrot.slane %v2777, 7
        %v2913 = vsel %vm2896, %v2911, %v2912
        %v2914 = vrot.slane %v2778, 7
        %v2915 = vsel %vm2896, %v2912, %v2914
        %v2916 = vrot.slane %v2779, 7
        %v2917 = vsel %vm2896, %v2914, %v2916
        %v2918 = vrot.slane %v2780, 7
        %v2919 = vrot.slane %v2781, 7
        %v2920 = vsel %vm2896, %v2918, %v2919
        %v2921 = vrot.slane %v2782, 7
        %v2922 = vsel %vm2896, %v2919, %v2921
        %v2923 = vrot.slane %v2783, 7
        %v2924 = vsel %vm2896, %v2921, %v2923
        %v2925 = vrot.slane %v2784, 7
        %v2926 = vrot.slane %v2785, 7
        %v2927 = vsel %vm2896, %v2925, %v2926
        %v2928 = vrot.slane %v2786, 7
        %v2929 = vsel %vm2896, %v2926, %v2928
        %v2930 = vrot.slane %v2787, 7
        %v2931 = vsel %vm2896, %v2928, %v2930
        %v2932 = vrot.slane %v2788, 7
        %v2933 = vrot.slane %v2789, 7
        %v2934 = vsel %vm2896, %v2932, %v2933
        %v2935 = vrot.slane %v2790, 7
        %v2936 = vsel %vm2896, %v2933, %v2935
        %v2937 = vrot.slane %v2791, 7
        %v2938 = vsel %vm2896, %v2935, %v2937
        %v2939 = vrot.slane %v2792, 7
        %v2940 = vrot.slane %v2793, 7
        %v2941 = vsel %vm2896, %v2939, %v2940
        %v2942 = vrot.slane %v2794, 7
        %v2943 = vsel %vm2896, %v2940, %v2942
        %v2944 = vrot.slane %v2795, 7
        %v2945 = vsel %vm2896, %v2942, %v2944
        %v2946 = vrot.slane %v2796, 7
        %v2947 = vrot.slane %v2797, 7
        %v2948 = vsel %vm2896, %v2946, %v2947
        %v2949 = vrot.slane %v2798, 7
        %v2950 = vsel %vm2896, %v2947, %v2949
        %v2951 = vrot.slane %v2799, 7
        %v2952 = vsel %vm2896, %v2949, %v2951
        %v2953 = vrot.slane %v2800, 7
        %v2954 = vrot.slane %v2801, 7
        %v2955 = vsel %vm2896, %v2953, %v2954
        %v2956 = vrot.slane %v2802, 7
        %v2957 = vsel %vm2896, %v2954, %v2956
        %v2958 = vrot.slane %v2803, 7
        %v2959 = vsel %vm2896, %v2956, %v2958
        %v2960 = vrot.slane %v2804, 7
        %v2961 = vrot.slane %v2805, 7
        %v2962 = vsel %vm2896, %v2960, %v2961
        %v2963 = vrot.slane %v2806, 7
        %v2964 = vsel %vm2896, %v2961, %v2963
        %v2965 = vrot.slane %v2807, 7
        %v2966 = vsel %vm2896, %v2963, %v2965
        %v2967 = vrot.slane %v2808, 7
        %v2968 = vrot.slane %v2809, 7
        %v2969 = vsel %vm2896, %v2967, %v2968
        %v2970 = vrot.slane %v2810, 7
        %v2971 = vsel %vm2896, %v2968, %v2970
        %v2972 = vrot.slane %v2811, 7
        %v2973 = vsel %vm2896, %v2970, %v2972
        %v2974 = vrot.slane %v2812, 7
        %v2975 = vrot.slane %v2813, 7
        %v2976 = vsel %vm2896, %v2974, %v2975
        %v2977 = vrot.slane %v2814, 7
        %v2978 = vsel %vm2896, %v2975, %v2977
        %v2979 = vrot.slane %v2815, 7
        %v2980 = vsel %vm2896, %v2977, %v2979
        %v2981 = vrot.slane %v2816, 7
        %v2982 = vrot.slane %v2817, 7
        %v2983 = vsel %vm2896, %v2981, %v2982
        %v2984 = vrot.slane %v2818, 7
        %v2985 = vsel %vm2896, %v2982, %v2984
        %v2986 = vrot.slane %v2819, 7
        %v2987 = vsel %vm2896, %v2984, %v2986
        %v2988 = vrot.slane %v2820, 7
        %v2989 = vrot.slane %v2821, 7
        %v2990 = vsel %vm2896, %v2988, %v2989
        %v2991 = vrot.slane %v2822, 7
        %v2992 = vsel %vm2896, %v2989, %v2991
        %v2993 = vrot.slane %v2823, 7
        %v2994 = vsel %vm2896, %v2991, %v2993
        %v2995 = vrot.slane %v2824, 7
        %v2996 = vrot.slane %v2825, 7
        %v2997 = vsel %vm2896, %v2995, %v2996
        %v2998 = vrot.slane %v2826, 7
        %v2999 = vsel %vm2896, %v2996, %v2998
        %v3000 = vrot.slane %v2827, 7
        %v3001 = vsel %vm2896, %v2998, %v3000
        %v3002 = vrot.slane %v2828, 7
        %v3003 = vrot.slane %v2829, 7
        %v3004 = vsel %vm2896, %v3002, %v3003
        %v3005 = vrot.slane %v2830, 7
        %v3006 = vsel %vm2896, %v3003, %v3005
        %v3007 = vrot.slane %v2831, 7
        %v3008 = vsel %vm2896, %v3005, %v3007
        %v3057 = vadd.f32 %v2716, %v2899
        %v3058 = vadd.f32 %v2717, %v2901
        %v3059 = vadd.f32 %v2718, %v2903
        %v3060 = vadd.f32 %v2719, %v2906
        %v3061 = vadd.f32 %v2720, %v2908
        %v3062 = vadd.f32 %v2721, %v2910
        %v3063 = vadd.f32 %v2722, %v2913
        %v3064 = vadd.f32 %v2723, %v2915
        %v3065 = vadd.f32 %v2724, %v2917
        %v3066 = vadd.f32 %v2725, %v2920
        %v3067 = vadd.f32 %v2726, %v2922
        %v3068 = vadd.f32 %v2727, %v2924
        %v3069 = vadd.f32 %v2728, %v2927
        %v3070 = vadd.f32 %v2729, %v2929
        %v3071 = vadd.f32 %v2730, %v2931
        %v3072 = vadd.f32 %v2731, %v2934
        %v3073 = vadd.f32 %v2732, %v2936
        %v3074 = vadd.f32 %v2733, %v2938
        %v3075 = vadd.f32 %v2734, %v2941
        %v3076 = vadd.f32 %v2735, %v2943
        %v3077 = vadd.f32 %v2736, %v2945
        %v3078 = vadd.f32 %v2737, %v2948
        %v3079 = vadd.f32 %v2738, %v2950
        %v3080 = vadd.f32 %v2739, %v2952
        %v3081 = vadd.f32 %v2740, %v2955
        %v3082 = vadd.f32 %v2741, %v2957
        %v3083 = vadd.f32 %v2742, %v2959
        %v3084 = vadd.f32 %v2743, %v2962
        %v3085 = vadd.f32 %v2744, %v2964
        %v3086 = vadd.f32 %v2745, %v2966
        %v3087 = vadd.f32 %v2746, %v2969
        %v3088 = vadd.f32 %v2747, %v2971
        %v3089 = vadd.f32 %v2748, %v2973
        %v3090 = vadd.f32 %v2749, %v2976
        %v3091 = vadd.f32 %v2750, %v2978
        %v3092 = vadd.f32 %v2751, %v2980
        %v3093 = vadd.f32 %v2752, %v2983
        %v3094 = vadd.f32 %v2753, %v2985
        %v3095 = vadd.f32 %v2754, %v2987
        %v3096 = vadd.f32 %v2755, %v2990
        %v3097 = vadd.f32 %v2756, %v2992
        %v3098 = vadd.f32 %v2757, %v2994
        %v3099 = vadd.f32 %v2758, %v2997
        %v3100 = vadd.f32 %v2759, %v2999
        %v3101 = vadd.f32 %v2760, %v3001
        %v3102 = vadd.f32 %v2761, %v3004
        %v3103 = vadd.f32 %v2762, %v3006
        %v3104 = vadd.f32 %v2763, %v3008
        %v3105 = vlaneseq
        %v3106 = vshrl.u32 %v3105, 7
        %v3107 = vsub.s32 0, %v3106
        %v3108 = vrot.slane %v277, %v3107
        %v3109 = vmul.f32 %v308, %v3108
        %v3110 = vmul.f32 %v312, %v3108
        %v3111 = vmul.f32 %v316, %v3108
        %v3112 = vmul.f32 %v331, %v3108
        %v3113 = vmul.f32 %v335, %v3108
        %v3114 = vmul.f32 %v339, %v3108
        %v3115 = vmul.f32 %v354, %v3108
        %v3116 = vmul.f32 %v358, %v3108
        %v3117 = vmul.f32 %v362, %v3108
        %v3118 = vmul.f32 %v377, %v3108
        %v3119 = vmul.f32 %v381, %v3108
        %v3120 = vmul.f32 %v385, %v3108
        %v3121 = vmul.f32 %v400, %v3108
        %v3122 = vmul.f32 %v404, %v3108
        %v3123 = vmul.f32 %v408, %v3108
        %v3124 = vmul.f32 %v423, %v3108
        %v3125 = vmul.f32 %v427, %v3108
        %v3126 = vmul.f32 %v431, %v3108
        %v3127 = vmul.f32 %v446, %v3108
        %v3128 = vmul.f32 %v450, %v3108
        %v3129 = vmul.f32 %v454, %v3108
        %v3130 = vmul.f32 %v469, %v3108
        %v3131 = vmul.f32 %v473, %v3108
        %v3132 = vmul.f32 %v477, %v3108
        %v3133 = vmul.f32 %v492, %v3108
        %v3134 = vmul.f32 %v496, %v3108
        %v3135 = vmul.f32 %v500, %v3108
        %v3136 = vmul.f32 %v515, %v3108
        %v3137 = vmul.f32 %v519, %v3108
        %v3138 = vmul.f32 %v523, %v3108
        %v3139 = vmul.f32 %v538, %v3108
        %v3140 = vmul.f32 %v542, %v3108
        %v3141 = vmul.f32 %v546, %v3108
        %v3142 = vmul.f32 %v561, %v3108
        %v3143 = vmul.f32 %v565, %v3108
        %v3144 = vmul.f32 %v569, %v3108
        %v3145 = vmul.f32 %v584, %v3108
        %v3146 = vmul.f32 %v588, %v3108
        %v3147 = vmul.f32 %v592, %v3108
        %v3148 = vmul.f32 %v607, %v3108
        %v3149 = vmul.f32 %v611, %v3108
        %v3150 = vmul.f32 %v615, %v3108
        %v3151 = vmul.f32 %v630, %v3108
        %v3152 = vmul.f32 %v634, %v3108
        %v3153 = vmul.f32 %v638, %v3108
        %v3154 = vmul.f32 %v653, %v3108
        %v3155 = vmul.f32 %v657, %v3108
        %v3156 = vmul.f32 %v661, %v3108
        %v3157 = vadd.f32 %v3057, %v3109
        %v3158 = vadd.f32 %v3058, %v3110
        %v3159 = vadd.f32 %v3059, %v3111
        %v3160 = vadd.f32 %v3060, %v3112
        %v3161 = vadd.f32 %v3061, %v3113
        %v3162 = vadd.f32 %v3062, %v3114
        %v3163 = vadd.f32 %v3063, %v3115
        %v3164 = vadd.f32 %v3064, %v3116
        %v3165 = vadd.f32 %v3065, %v3117
        %v3166 = vadd.f32 %v3066, %v3118
        %v3167 = vadd.f32 %v3067, %v3119
        %v3168 = vadd.f32 %v3068, %v3120
        %v3169 = vadd.f32 %v3069, %v3121
        %v3170 = vadd.f32 %v3070, %v3122
        %v3171 = vadd.f32 %v3071, %v3123
        %v3172 = vadd.f32 %v3072, %v3124
        %v3173 = vadd.f32 %v3073, %v3125
        %v3174 = vadd.f32 %v3074, %v3126
        %v3175 = vadd.f32 %v3075, %v3127
        %v3176 = vadd.f32 %v3076, %v3128
        %v3177 = vadd.f32 %v3077, %v3129
        %v3178 = vadd.f32 %v3078, %v3130
        %v3179 = vadd.f32 %v3079, %v3131
        %v3180 = vadd.f32 %v3080, %v3132
        %v3181 = vadd.f32 %v3081, %v3133
        %v3182 = vadd.f32 %v3082, %v3134
        %v3183 = vadd.f32 %v3083, %v3135
        %v3184 = vadd.f32 %v3084, %v3136
        %v3185 = vadd.f32 %v3085, %v3137
        %v3186 = vadd.f32 %v3086, %v3138
        %v3187 = vadd.f32 %v3087, %v3139
        %v3188 = vadd.f32 %v3088, %v3140
        %v3189 = vadd.f32 %v3089, %v3141
        %v3190 = vadd.f32 %v3090, %v3142
        %v3191 = vadd.f32 %v3091, %v3143
        %v3192 = vadd.f32 %v3092, %v3144
        %v3193 = vadd.f32 %v3093, %v3145
        %v3194 = vadd.f32 %v3094, %v3146
        %v3195 = vadd.f32 %v3095, %v3147
        %v3196 = vadd.f32 %v3096, %v3148
        %v3197 = vadd.f32 %v3097, %v3149
        %v3198 = vadd.f32 %v3098, %v3150
        %v3199 = vadd.f32 %v3099, %v3151
        %v3200 = vadd.f32 %v3100, %v3152
        %v3201 = vadd.f32 %v3101, %v3153
        %v3202 = vadd.f32 %v3102, %v3154
        %v3203 = vadd.f32 %v3103, %v3155
        %v3204 = vadd.f32 %v3104, %v3156
        %v3205 = vlaneseq
        %v3206 = vshrl.u32 %v3205, 7
        %v3207 = vsub.s32 1, %v3206
        %v3208 = vrot.slane %v277, %v3207
        %v3209 = vmul.f32 %v308, %v3208
        %v3210 = vmul.f32 %v312, %v3208
        %v3211 = vmul.f32 %v316, %v3208
        %v3212 = vmul.f32 %v320, %v3208
        %v3213 = vmul.f32 %v331, %v3208
        %v3214 = vmul.f32 %v335, %v3208
        %v3215 = vmul.f32 %v339, %v3208
        %v3216 = vmul.f32 %v343, %v3208
        %v3217 = vmul.f32 %v354, %v3208
        %v3218 = vmul.f32 %v358, %v3208
        %v3219 = vmul.f32 %v362, %v3208
        %v3220 = vmul.f32 %v366, %v3208
        %v3221 = vmul.f32 %v377, %v3208
        %v3222 = vmul.f32 %v381, %v3208
        %v3223 = vmul.f32 %v385, %v3208
        %v3224 = vmul.f32 %v389, %v3208
        %v3225 = vmul.f32 %v400, %v3208
        %v3226 = vmul.f32 %v404, %v3208
        %v3227 = vmul.f32 %v408, %v3208
        %v3228 = vmul.f32 %v412, %v3208
        %v3229 = vmul.f32 %v423, %v3208
        %v3230 = vmul.f32 %v427, %v3208
        %v3231 = vmul.f32 %v431, %v3208
        %v3232 = vmul.f32 %v435, %v3208
        %v3233 = vmul.f32 %v446, %v3208
        %v3234 = vmul.f32 %v450, %v3208
        %v3235 = vmul.f32 %v454, %v3208
        %v3236 = vmul.f32 %v458, %v3208
        %v3237 = vmul.f32 %v469, %v3208
        %v3238 = vmul.f32 %v473, %v3208
        %v3239 = vmul.f32 %v477, %v3208
        %v3240 = vmul.f32 %v481, %v3208
        %v3241 = vmul.f32 %v492, %v3208
        %v3242 = vmul.f32 %v496, %v3208
        %v3243 = vmul.f32 %v500, %v3208
        %v3244 = vmul.f32 %v504, %v3208
        %v3245 = vmul.f32 %v515, %v3208
        %v3246 = vmul.f32 %v519, %v3208
        %v3247 = vmul.f32 %v523, %v3208
        %v3248 = vmul.f32 %v527, %v3208
        %v3249 = vmul.f32 %v538, %v3208
        %v3250 = vmul.f32 %v542, %v3208
        %v3251 = vmul.f32 %v546, %v3208
        %v3252 = vmul.f32 %v550, %v3208
        %v3253 = vmul.f32 %v561, %v3208
        %v3254 = vmul.f32 %v565, %v3208
        %v3255 = vmul.f32 %v569, %v3208
        %v3256 = vmul.f32 %v573, %v3208
        %v3257 = vmul.f32 %v584, %v3208
        %v3258 = vmul.f32 %v588, %v3208
        %v3259 = vmul.f32 %v592, %v3208
        %v3260 = vmul.f32 %v596, %v3208
        %v3261 = vmul.f32 %v607, %v3208
        %v3262 = vmul.f32 %v611, %v3208
        %v3263 = vmul.f32 %v615, %v3208
        %v3264 = vmul.f32 %v619, %v3208
        %v3265 = vmul.f32 %v630, %v3208
        %v3266 = vmul.f32 %v634, %v3208
        %v3267 = vmul.f32 %v638, %v3208
        %v3268 = vmul.f32 %v642, %v3208
        %v3269 = vmul.f32 %v653, %v3208
        %v3270 = vmul.f32 %v657, %v3208
        %v3271 = vmul.f32 %v661, %v3208
        %v3272 = vmul.f32 %v665, %v3208
        %v3337 = vrot.slane %v3209, 1
        %v3338 = vrot.slane %v3210, 1
        %v3339 = vsel %vm850, %v3337, %v3338
        %v3340 = vrot.slane %v3211, 1
        %v3341 = vsel %vm850, %v3338, %v3340
        %v3342 = vrot.slane %v3212, 1
        %v3343 = vsel %vm850, %v3340, %v3342
        %v3344 = vrot.slane %v3213, 1
        %v3345 = vrot.slane %v3214, 1
        %v3346 = vsel %vm850, %v3344, %v3345
        %v3347 = vrot.slane %v3215, 1
        %v3348 = vsel %vm850, %v3345, %v3347
        %v3349 = vrot.slane %v3216, 1
        %v3350 = vsel %vm850, %v3347, %v3349
        %v3351 = vrot.slane %v3217, 1
        %v3352 = vrot.slane %v3218, 1
        %v3353 = vsel %vm850, %v3351, %v3352
        %v3354 = vrot.slane %v3219, 1
        %v3355 = vsel %vm850, %v3352, %v3354
        %v3356 = vrot.slane %v3220, 1
        %v3357 = vsel %vm850, %v3354, %v3356
        %v3358 = vrot.slane %v3221, 1
        %v3359 = vrot.slane %v3222, 1
        %v3360 = vsel %vm850, %v3358, %v3359
        %v3361 = vrot.slane %v3223, 1
        %v3362 = vsel %vm850, %v3359, %v3361
        %v3363 = vrot.slane %v3224, 1
        %v3364 = vsel %vm850, %v3361, %v3363
        %v3365 = vrot.slane %v3225, 1
        %v3366 = vrot.slane %v3226, 1
        %v3367 = vsel %vm850, %v3365, %v3366
        %v3368 = vrot.slane %v3227, 1
        %v3369 = vsel %vm850, %v3366, %v3368
        %v3370 = vrot.slane %v3228, 1
        %v3371 = vsel %vm850, %v3368, %v3370
        %v3372 = vrot.slane %v3229, 1
        %v3373 = vrot.slane %v3230, 1
        %v3374 = vsel %vm850, %v3372, %v3373
        %v3375 = vrot.slane %v3231, 1
        %v3376 = vsel %vm850, %v3373, %v3375
        %v3377 = vrot.slane %v3232, 1
        %v3378 = vsel %vm850, %v3375, %v3377
        %v3379 = vrot.slane %v3233, 1
        %v3380 = vrot.slane %v3234, 1
        %v3381 = vsel %vm850, %v3379, %v3380
        %v3382 = vrot.slane %v3235, 1
        %v3383 = vsel %vm850, %v3380, %v3382
        %v3384 = vrot.slane %v3236, 1
        %v3385 = vsel %vm850, %v3382, %v3384
        %v3386 = vrot.slane %v3237, 1
        %v3387 = vrot.slane %v3238, 1
        %v3388 = vsel %vm850, %v3386, %v3387
        %v3389 = vrot.slane %v3239, 1
        %v3390 = vsel %vm850, %v3387, %v3389
        %v3391 = vrot.slane %v3240, 1
        %v3392 = vsel %vm850, %v3389, %v3391
        %v3393 = vrot.slane %v3241, 1
        %v3394 = vrot.slane %v3242, 1
        %v3395 = vsel %vm850, %v3393, %v3394
        %v3396 = vrot.slane %v3243, 1
        %v3397 = vsel %vm850, %v3394, %v3396
        %v3398 = vrot.slane %v3244, 1
        %v3399 = vsel %vm850, %v3396, %v3398
        %v3400 = vrot.slane %v3245, 1
        %v3401 = vrot.slane %v3246, 1
        %v3402 = vsel %vm850, %v3400, %v3401
        %v3403 = vrot.slane %v3247, 1
        %v3404 = vsel %vm850, %v3401, %v3403
        %v3405 = vrot.slane %v3248, 1
        %v3406 = vsel %vm850, %v3403, %v3405
        %v3407 = vrot.slane %v3249, 1
        %v3408 = vrot.slane %v3250, 1
        %v3409 = vsel %vm850, %v3407, %v3408
        %v3410 = vrot.slane %v3251, 1
        %v3411 = vsel %vm850, %v3408, %v3410
        %v3412 = vrot.slane %v3252, 1
        %v3413 = vsel %vm850, %v3410, %v3412
        %v3414 = vrot.slane %v3253, 1
        %v3415 = vrot.slane %v3254, 1
        %v3416 = vsel %vm850, %v3414, %v3415
        %v3417 = vrot.slane %v3255, 1
        %v3418 = vsel %vm850, %v3415, %v3417
        %v3419 = vrot.slane %v3256, 1
        %v3420 = vsel %vm850, %v3417, %v3419
        %v3421 = vrot.slane %v3257, 1
        %v3422 = vrot.slane %v3258, 1
        %v3423 = vsel %vm850, %v3421, %v3422
        %v3424 = vrot.slane %v3259, 1
        %v3425 = vsel %vm850, %v3422, %v3424
        %v3426 = vrot.slane %v3260, 1
        %v3427 = vsel %vm850, %v3424, %v3426
        %v3428 = vrot.slane %v3261, 1
        %v3429 = vrot.slane %v3262, 1
        %v3430 = vsel %vm850, %v3428, %v3429
        %v3431 = vrot.slane %v3263, 1
        %v3432 = vsel %vm850, %v3429, %v3431
        %v3433 = vrot.slane %v3264, 1
        %v3434 = vsel %vm850, %v3431, %v3433
        %v3435 = vrot.slane %v3265, 1
        %v3436 = vrot.slane %v3266, 1
        %v3437 = vsel %vm850, %v3435, %v3436
        %v3438 = vrot.slane %v3267, 1
        %v3439 = vsel %vm850, %v3436, %v3438
        %v3440 = vrot.slane %v3268, 1
        %v3441 = vsel %vm850, %v3438, %v3440
        %v3442 = vrot.slane %v3269, 1
        %v3443 = vrot.slane %v3270, 1
        %v3444 = vsel %vm850, %v3442, %v3443
        %v3445 = vrot.slane %v3271, 1
        %v3446 = vsel %vm850, %v3443, %v3445
        %v3447 = vrot.slane %v3272, 1
        %v3448 = vsel %vm850, %v3445, %v3447
        %v3497 = vadd.f32 %v3157, %v3339
        %v3498 = vadd.f32 %v3158, %v3341
        %v3499 = vadd.f32 %v3159, %v3343
        %v3500 = vadd.f32 %v3160, %v3346
        %v3501 = vadd.f32 %v3161, %v3348
        %v3502 = vadd.f32 %v3162, %v3350
        %v3503 = vadd.f32 %v3163, %v3353
        %v3504 = vadd.f32 %v3164, %v3355
        %v3505 = vadd.f32 %v3165, %v3357
        %v3506 = vadd.f32 %v3166, %v3360
        %v3507 = vadd.f32 %v3167, %v3362
        %v3508 = vadd.f32 %v3168, %v3364
        %v3509 = vadd.f32 %v3169, %v3367
        %v3510 = vadd.f32 %v3170, %v3369
        %v3511 = vadd.f32 %v3171, %v3371
        %v3512 = vadd.f32 %v3172, %v3374
        %v3513 = vadd.f32 %v3173, %v3376
        %v3514 = vadd.f32 %v3174, %v3378
        %v3515 = vadd.f32 %v3175, %v3381
        %v3516 = vadd.f32 %v3176, %v3383
        %v3517 = vadd.f32 %v3177, %v3385
        %v3518 = vadd.f32 %v3178, %v3388
        %v3519 = vadd.f32 %v3179, %v3390
        %v3520 = vadd.f32 %v3180, %v3392
        %v3521 = vadd.f32 %v3181, %v3395
        %v3522 = vadd.f32 %v3182, %v3397
        %v3523 = vadd.f32 %v3183, %v3399
        %v3524 = vadd.f32 %v3184, %v3402
        %v3525 = vadd.f32 %v3185, %v3404
        %v3526 = vadd.f32 %v3186, %v3406
        %v3527 = vadd.f32 %v3187, %v3409
        %v3528 = vadd.f32 %v3188, %v3411
        %v3529 = vadd.f32 %v3189, %v3413
        %v3530 = vadd.f32 %v3190, %v3416
        %v3531 = vadd.f32 %v3191, %v3418
        %v3532 = vadd.f32 %v3192, %v3420
        %v3533 = vadd.f32 %v3193, %v3423
        %v3534 = vadd.f32 %v3194, %v3425
        %v3535 = vadd.f32 %v3195, %v3427
        %v3536 = vadd.f32 %v3196, %v3430
        %v3537 = vadd.f32 %v3197, %v3432
        %v3538 = vadd.f32 %v3198, %v3434
        %v3539 = vadd.f32 %v3199, %v3437
        %v3540 = vadd.f32 %v3200, %v3439
        %v3541 = vadd.f32 %v3201, %v3441
        %v3542 = vadd.f32 %v3202, %v3444
        %v3543 = vadd.f32 %v3203, %v3446
        %v3544 = vadd.f32 %v3204, %v3448
        %v3545 = vlaneseq
        %v3546 = vshrl.u32 %v3545, 7
        %v3547 = vsub.s32 2, %v3546
        %v3548 = vrot.slane %v277, %v3547
        %v3549 = vmul.f32 %v308, %v3548
        %v3550 = vmul.f32 %v312, %v3548
        %v3551 = vmul.f32 %v316, %v3548
        %v3552 = vmul.f32 %v320, %v3548
        %v3553 = vmul.f32 %v331, %v3548
        %v3554 = vmul.f32 %v335, %v3548
        %v3555 = vmul.f32 %v339, %v3548
        %v3556 = vmul.f32 %v343, %v3548
        %v3557 = vmul.f32 %v354, %v3548
        %v3558 = vmul.f32 %v358, %v3548
        %v3559 = vmul.f32 %v362, %v3548
        %v3560 = vmul.f32 %v366, %v3548
        %v3561 = vmul.f32 %v377, %v3548
        %v3562 = vmul.f32 %v381, %v3548
        %v3563 = vmul.f32 %v385, %v3548
        %v3564 = vmul.f32 %v389, %v3548
        %v3565 = vmul.f32 %v400, %v3548
        %v3566 = vmul.f32 %v404, %v3548
        %v3567 = vmul.f32 %v408, %v3548
        %v3568 = vmul.f32 %v412, %v3548
        %v3569 = vmul.f32 %v423, %v3548
        %v3570 = vmul.f32 %v427, %v3548
        %v3571 = vmul.f32 %v431, %v3548
        %v3572 = vmul.f32 %v435, %v3548
        %v3573 = vmul.f32 %v446, %v3548
        %v3574 = vmul.f32 %v450, %v3548
        %v3575 = vmul.f32 %v454, %v3548
        %v3576 = vmul.f32 %v458, %v3548
        %v3577 = vmul.f32 %v469, %v3548
        %v3578 = vmul.f32 %v473, %v3548
        %v3579 = vmul.f32 %v477, %v3548
        %v3580 = vmul.f32 %v481, %v3548
        %v3581 = vmul.f32 %v492, %v3548
        %v3582 = vmul.f32 %v496, %v3548
        %v3583 = vmul.f32 %v500, %v3548
        %v3584 = vmul.f32 %v504, %v3548
        %v3585 = vmul.f32 %v515, %v3548
        %v3586 = vmul.f32 %v519, %v3548
        %v3587 = vmul.f32 %v523, %v3548
        %v3588 = vmul.f32 %v527, %v3548
        %v3589 = vmul.f32 %v538, %v3548
        %v3590 = vmul.f32 %v542, %v3548
        %v3591 = vmul.f32 %v546, %v3548
        %v3592 = vmul.f32 %v550, %v3548
        %v3593 = vmul.f32 %v561, %v3548
        %v3594 = vmul.f32 %v565, %v3548
        %v3595 = vmul.f32 %v569, %v3548
        %v3596 = vmul.f32 %v573, %v3548
        %v3597 = vmul.f32 %v584, %v3548
        %v3598 = vmul.f32 %v588, %v3548
        %v3599 = vmul.f32 %v592, %v3548
        %v3600 = vmul.f32 %v596, %v3548
        %v3601 = vmul.f32 %v607, %v3548
        %v3602 = vmul.f32 %v611, %v3548
        %v3603 = vmul.f32 %v615, %v3548
        %v3604 = vmul.f32 %v619, %v3548
        %v3605 = vmul.f32 %v630, %v3548
        %v3606 = vmul.f32 %v634, %v3548
        %v3607 = vmul.f32 %v638, %v3548
        %v3608 = vmul.f32 %v642, %v3548
        %v3609 = vmul.f32 %v653, %v3548
        %v3610 = vmul.f32 %v657, %v3548
        %v3611 = vmul.f32 %v661, %v3548
        %v3612 = vmul.f32 %v665, %v3548
        %v3677 = vrot.slane %v3549, 2
        %v3678 = vrot.slane %v3550, 2
        %v3679 = vsel %vm1191, %v3677, %v3678
        %v3680 = vrot.slane %v3551, 2
        %v3681 = vsel %vm1191, %v3678, %v3680
        %v3682 = vrot.slane %v3552, 2
        %v3683 = vsel %vm1191, %v3680, %v3682
        %v3684 = vrot.slane %v3553, 2
        %v3685 = vrot.slane %v3554, 2
        %v3686 = vsel %vm1191, %v3684, %v3685
        %v3687 = vrot.slane %v3555, 2
        %v3688 = vsel %vm1191, %v3685, %v3687
        %v3689 = vrot.slane %v3556, 2
        %v3690 = vsel %vm1191, %v3687, %v3689
        %v3691 = vrot.slane %v3557, 2
        %v3692 = vrot.slane %v3558, 2
        %v3693 = vsel %vm1191, %v3691, %v3692
        %v3694 = vrot.slane %v3559, 2
        %v3695 = vsel %vm1191, %v3692, %v3694
        %v3696 = vrot.slane %v3560, 2
        %v3697 = vsel %vm1191, %v3694, %v3696
        %v3698 = vrot.slane %v3561, 2
        %v3699 = vrot.slane %v3562, 2
        %v3700 = vsel %vm1191, %v3698, %v3699
        %v3701 = vrot.slane %v3563, 2
        %v3702 = vsel %vm1191, %v3699, %v3701
        %v3703 = vrot.slane %v3564, 2
        %v3704 = vsel %vm1191, %v3701, %v3703
        %v3705 = vrot.slane %v3565, 2
        %v3706 = vrot.slane %v3566, 2
        %v3707 = vsel %vm1191, %v3705, %v3706
        %v3708 = vrot.slane %v3567, 2
        %v3709 = vsel %vm1191, %v3706, %v3708
        %v3710 = vrot.slane %v3568, 2
        %v3711 = vsel %vm1191, %v3708, %v3710
        %v3712 = vrot.slane %v3569, 2
        %v3713 = vrot.slane %v3570, 2
        %v3714 = vsel %vm1191, %v3712, %v3713
        %v3715 = vrot.slane %v3571, 2
        %v3716 = vsel %vm1191, %v3713, %v3715
        %v3717 = vrot.slane %v3572, 2
        %v3718 = vsel %vm1191, %v3715, %v3717
        %v3719 = vrot.slane %v3573, 2
        %v3720 = vrot.slane %v3574, 2
        %v3721 = vsel %vm1191, %v3719, %v3720
        %v3722 = vrot.slane %v3575, 2
        %v3723 = vsel %vm1191, %v3720, %v3722
        %v3724 = vrot.slane %v3576, 2
        %v3725 = vsel %vm1191, %v3722, %v3724
        %v3726 = vrot.slane %v3577, 2
        %v3727 = vrot.slane %v3578, 2
        %v3728 = vsel %vm1191, %v3726, %v3727
        %v3729 = vrot.slane %v3579, 2
        %v3730 = vsel %vm1191, %v3727, %v3729
        %v3731 = vrot.slane %v3580, 2
        %v3732 = vsel %vm1191, %v3729, %v3731
        %v3733 = vrot.slane %v3581, 2
        %v3734 = vrot.slane %v3582, 2
        %v3735 = vsel %vm1191, %v3733, %v3734
        %v3736 = vrot.slane %v3583, 2
        %v3737 = vsel %vm1191, %v3734, %v3736
        %v3738 = vrot.slane %v3584, 2
        %v3739 = vsel %vm1191, %v3736, %v3738
        %v3740 = vrot.slane %v3585, 2
        %v3741 = vrot.slane %v3586, 2
        %v3742 = vsel %vm1191, %v3740, %v3741
        %v3743 = vrot.slane %v3587, 2
        %v3744 = vsel %vm1191, %v3741, %v3743
        %v3745 = vrot.slane %v3588, 2
        %v3746 = vsel %vm1191, %v3743, %v3745
        %v3747 = vrot.slane %v3589, 2
        %v3748 = vrot.slane %v3590, 2
        %v3749 = vsel %vm1191, %v3747, %v3748
        %v3750 = vrot.slane %v3591, 2
        %v3751 = vsel %vm1191, %v3748, %v3750
        %v3752 = vrot.slane %v3592, 2
        %v3753 = vsel %vm1191, %v3750, %v3752
        %v3754 = vrot.slane %v3593, 2
        %v3755 = vrot.slane %v3594, 2
        %v3756 = vsel %vm1191, %v3754, %v3755
        %v3757 = vrot.slane %v3595, 2
        %v3758 = vsel %vm1191, %v3755, %v3757
        %v3759 = vrot.slane %v3596, 2
        %v3760 = vsel %vm1191, %v3757, %v3759
        %v3761 = vrot.slane %v3597, 2
        %v3762 = vrot.slane %v3598, 2
        %v3763 = vsel %vm1191, %v3761, %v3762
        %v3764 = vrot.slane %v3599, 2
        %v3765 = vsel %vm1191, %v3762, %v3764
        %v3766 = vrot.slane %v3600, 2
        %v3767 = vsel %vm1191, %v3764, %v3766
        %v3768 = vrot.slane %v3601, 2
        %v3769 = vrot.slane %v3602, 2
        %v3770 = vsel %vm1191, %v3768, %v3769
        %v3771 = vrot.slane %v3603, 2
        %v3772 = vsel %vm1191, %v3769, %v3771
        %v3773 = vrot.slane %v3604, 2
        %v3774 = vsel %vm1191, %v3771, %v3773
        %v3775 = vrot.slane %v3605, 2
        %v3776 = vrot.slane %v3606, 2
        %v3777 = vsel %vm1191, %v3775, %v3776
        %v3778 = vrot.slane %v3607, 2
        %v3779 = vsel %vm1191, %v3776, %v3778
        %v3780 = vrot.slane %v3608, 2
        %v3781 = vsel %vm1191, %v3778, %v3780
        %v3782 = vrot.slane %v3609, 2
        %v3783 = vrot.slane %v3610, 2
        %v3784 = vsel %vm1191, %v3782, %v3783
        %v3785 = vrot.slane %v3611, 2
        %v3786 = vsel %vm1191, %v3783, %v3785
        %v3787 = vrot.slane %v3612, 2
        %v3788 = vsel %vm1191, %v3785, %v3787
        %v3837 = vadd.f32 %v3497, %v3679
        %v3838 = vadd.f32 %v3498, %v3681
        %v3839 = vadd.f32 %v3499, %v3683
        %v3840 = vadd.f32 %v3500, %v3686
        %v3841 = vadd.f32 %v3501, %v3688
        %v3842 = vadd.f32 %v3502, %v3690
        %v3843 = vadd.f32 %v3503, %v3693
        %v3844 = vadd.f32 %v3504, %v3695
        %v3845 = vadd.f32 %v3505, %v3697
        %v3846 = vadd.f32 %v3506, %v3700
        %v3847 = vadd.f32 %v3507, %v3702
        %v3848 = vadd.f32 %v3508, %v3704
        %v3849 = vadd.f32 %v3509, %v3707
        %v3850 = vadd.f32 %v3510, %v3709
        %v3851 = vadd.f32 %v3511, %v3711
        %v3852 = vadd.f32 %v3512, %v3714
        %v3853 = vadd.f32 %v3513, %v3716
        %v3854 = vadd.f32 %v3514, %v3718
        %v3855 = vadd.f32 %v3515, %v3721
        %v3856 = vadd.f32 %v3516, %v3723
        %v3857 = vadd.f32 %v3517, %v3725
        %v3858 = vadd.f32 %v3518, %v3728
        %v3859 = vadd.f32 %v3519, %v3730
        %v3860 = vadd.f32 %v3520, %v3732
        %v3861 = vadd.f32 %v3521, %v3735
        %v3862 = vadd.f32 %v3522, %v3737
        %v3863 = vadd.f32 %v3523, %v3739
        %v3864 = vadd.f32 %v3524, %v3742
        %v3865 = vadd.f32 %v3525, %v3744
        %v3866 = vadd.f32 %v3526, %v3746
        %v3867 = vadd.f32 %v3527, %v3749
        %v3868 = vadd.f32 %v3528, %v3751
        %v3869 = vadd.f32 %v3529, %v3753
        %v3870 = vadd.f32 %v3530, %v3756
        %v3871 = vadd.f32 %v3531, %v3758
        %v3872 = vadd.f32 %v3532, %v3760
        %v3873 = vadd.f32 %v3533, %v3763
        %v3874 = vadd.f32 %v3534, %v3765
        %v3875 = vadd.f32 %v3535, %v3767
        %v3876 = vadd.f32 %v3536, %v3770
        %v3877 = vadd.f32 %v3537, %v3772
        %v3878 = vadd.f32 %v3538, %v3774
        %v3879 = vadd.f32 %v3539, %v3777
        %v3880 = vadd.f32 %v3540, %v3779
        %v3881 = vadd.f32 %v3541, %v3781
        %v3882 = vadd.f32 %v3542, %v3784
        %v3883 = vadd.f32 %v3543, %v3786
        %v3884 = vadd.f32 %v3544, %v3788
        %v3885 = vlaneseq
        %v3886 = vshrl.u32 %v3885, 7
        %v3887 = vsub.s32 3, %v3886
        %v3888 = vrot.slane %v277, %v3887
        %v3889 = vmul.f32 %v308, %v3888
        %v3890 = vmul.f32 %v312, %v3888
        %v3891 = vmul.f32 %v316, %v3888
        %v3892 = vmul.f32 %v320, %v3888
        %v3893 = vmul.f32 %v331, %v3888
        %v3894 = vmul.f32 %v335, %v3888
        %v3895 = vmul.f32 %v339, %v3888
        %v3896 = vmul.f32 %v343, %v3888
        %v3897 = vmul.f32 %v354, %v3888
        %v3898 = vmul.f32 %v358, %v3888
        %v3899 = vmul.f32 %v362, %v3888
        %v3900 = vmul.f32 %v366, %v3888
        %v3901 = vmul.f32 %v377, %v3888
        %v3902 = vmul.f32 %v381, %v3888
        %v3903 = vmul.f32 %v385, %v3888
        %v3904 = vmul.f32 %v389, %v3888
        %v3905 = vmul.f32 %v400, %v3888
        %v3906 = vmul.f32 %v404, %v3888
        %v3907 = vmul.f32 %v408, %v3888
        %v3908 = vmul.f32 %v412, %v3888
        %v3909 = vmul.f32 %v423, %v3888
        %v3910 = vmul.f32 %v427, %v3888
        %v3911 = vmul.f32 %v431, %v3888
        %v3912 = vmul.f32 %v435, %v3888
        %v3913 = vmul.f32 %v446, %v3888
        %v3914 = vmul.f32 %v450, %v3888
        %v3915 = vmul.f32 %v454, %v3888
        %v3916 = vmul.f32 %v458, %v3888
        %v3917 = vmul.f32 %v469, %v3888
        %v3918 = vmul.f32 %v473, %v3888
        %v3919 = vmul.f32 %v477, %v3888
        %v3920 = vmul.f32 %v481, %v3888
        %v3921 = vmul.f32 %v492, %v3888
        %v3922 = vmul.f32 %v496, %v3888
        %v3923 = vmul.f32 %v500, %v3888
        %v3924 = vmul.f32 %v504, %v3888
        %v3925 = vmul.f32 %v515, %v3888
        %v3926 = vmul.f32 %v519, %v3888
        %v3927 = vmul.f32 %v523, %v3888
        %v3928 = vmul.f32 %v527, %v3888
        %v3929 = vmul.f32 %v538, %v3888
        %v3930 = vmul.f32 %v542, %v3888
        %v3931 = vmul.f32 %v546, %v3888
        %v3932 = vmul.f32 %v550, %v3888
        %v3933 = vmul.f32 %v561, %v3888
        %v3934 = vmul.f32 %v565, %v3888
        %v3935 = vmul.f32 %v569, %v3888
        %v3936 = vmul.f32 %v573, %v3888
        %v3937 = vmul.f32 %v584, %v3888
        %v3938 = vmul.f32 %v588, %v3888
        %v3939 = vmul.f32 %v592, %v3888
        %v3940 = vmul.f32 %v596, %v3888
        %v3941 = vmul.f32 %v607, %v3888
        %v3942 = vmul.f32 %v611, %v3888
        %v3943 = vmul.f32 %v615, %v3888
        %v3944 = vmul.f32 %v619, %v3888
        %v3945 = vmul.f32 %v630, %v3888
        %v3946 = vmul.f32 %v634, %v3888
        %v3947 = vmul.f32 %v638, %v3888
        %v3948 = vmul.f32 %v642, %v3888
        %v3949 = vmul.f32 %v653, %v3888
        %v3950 = vmul.f32 %v657, %v3888
        %v3951 = vmul.f32 %v661, %v3888
        %v3952 = vmul.f32 %v665, %v3888
        %v4017 = vrot.slane %v3889, 3
        %v4018 = vrot.slane %v3890, 3
        %v4019 = vsel %vm1532, %v4017, %v4018
        %v4020 = vrot.slane %v3891, 3
        %v4021 = vsel %vm1532, %v4018, %v4020
        %v4022 = vrot.slane %v3892, 3
        %v4023 = vsel %vm1532, %v4020, %v4022
        %v4024 = vrot.slane %v3893, 3
        %v4025 = vrot.slane %v3894, 3
        %v4026 = vsel %vm1532, %v4024, %v4025
        %v4027 = vrot.slane %v3895, 3
        %v4028 = vsel %vm1532, %v4025, %v4027
        %v4029 = vrot.slane %v3896, 3
        %v4030 = vsel %vm1532, %v4027, %v4029
        %v4031 = vrot.slane %v3897, 3
        %v4032 = vrot.slane %v3898, 3
        %v4033 = vsel %vm1532, %v4031, %v4032
        %v4034 = vrot.slane %v3899, 3
        %v4035 = vsel %vm1532, %v4032, %v4034
        %v4036 = vrot.slane %v3900, 3
        %v4037 = vsel %vm1532, %v4034, %v4036
        %v4038 = vrot.slane %v3901, 3
        %v4039 = vrot.slane %v3902, 3
        %v4040 = vsel %vm1532, %v4038, %v4039
        %v4041 = vrot.slane %v3903, 3
        %v4042 = vsel %vm1532, %v4039, %v4041
        %v4043 = vrot.slane %v3904, 3
        %v4044 = vsel %vm1532, %v4041, %v4043
        %v4045 = vrot.slane %v3905, 3
        %v4046 = vrot.slane %v3906, 3
        %v4047 = vsel %vm1532, %v4045, %v4046
        %v4048 = vrot.slane %v3907, 3
        %v4049 = vsel %vm1532, %v4046, %v4048
        %v4050 = vrot.slane %v3908, 3
        %v4051 = vsel %vm1532, %v4048, %v4050
        %v4052 = vrot.slane %v3909, 3
        %v4053 = vrot.slane %v3910, 3
        %v4054 = vsel %vm1532, %v4052, %v4053
        %v4055 = vrot.slane %v3911, 3
        %v4056 = vsel %vm1532, %v4053, %v4055
        %v4057 = vrot.slane %v3912, 3
        %v4058 = vsel %vm1532, %v4055, %v4057
        %v4059 = vrot.slane %v3913, 3
        %v4060 = vrot.slane %v3914, 3
        %v4061 = vsel %vm1532, %v4059, %v4060
        %v4062 = vrot.slane %v3915, 3
        %v4063 = vsel %vm1532, %v4060, %v4062
        %v4064 = vrot.slane %v3916, 3
        %v4065 = vsel %vm1532, %v4062, %v4064
        %v4066 = vrot.slane %v3917, 3
        %v4067 = vrot.slane %v3918, 3
        %v4068 = vsel %vm1532, %v4066, %v4067
        %v4069 = vrot.slane %v3919, 3
        %v4070 = vsel %vm1532, %v4067, %v4069
        %v4071 = vrot.slane %v3920, 3
        %v4072 = vsel %vm1532, %v4069, %v4071
        %v4073 = vrot.slane %v3921, 3
        %v4074 = vrot.slane %v3922, 3
        %v4075 = vsel %vm1532, %v4073, %v4074
        %v4076 = vrot.slane %v3923, 3
        %v4077 = vsel %vm1532, %v4074, %v4076
        %v4078 = vrot.slane %v3924, 3
        %v4079 = vsel %vm1532, %v4076, %v4078
        %v4080 = vrot.slane %v3925, 3
        %v4081 = vrot.slane %v3926, 3
        %v4082 = vsel %vm1532, %v4080, %v4081
        %v4083 = vrot.slane %v3927, 3
        %v4084 = vsel %vm1532, %v4081, %v4083
        %v4085 = vrot.slane %v3928, 3
        %v4086 = vsel %vm1532, %v4083, %v4085
        %v4087 = vrot.slane %v3929, 3
        %v4088 = vrot.slane %v3930, 3
        %v4089 = vsel %vm1532, %v4087, %v4088
        %v4090 = vrot.slane %v3931, 3
        %v4091 = vsel %vm1532, %v4088, %v4090
        %v4092 = vrot.slane %v3932, 3
        %v4093 = vsel %vm1532, %v4090, %v4092
        %v4094 = vrot.slane %v3933, 3
        %v4095 = vrot.slane %v3934, 3
        %v4096 = vsel %vm1532, %v4094, %v4095
        %v4097 = vrot.slane %v3935, 3
        %v4098 = vsel %vm1532, %v4095, %v4097
        %v4099 = vrot.slane %v3936, 3
        %v4100 = vsel %vm1532, %v4097, %v4099
        %v4101 = vrot.slane %v3937, 3
        %v4102 = vrot.slane %v3938, 3
        %v4103 = vsel %vm1532, %v4101, %v4102
        %v4104 = vrot.slane %v3939, 3
        %v4105 = vsel %vm1532, %v4102, %v4104
        %v4106 = vrot.slane %v3940, 3
        %v4107 = vsel %vm1532, %v4104, %v4106
        %v4108 = vrot.slane %v3941, 3
        %v4109 = vrot.slane %v3942, 3
        %v4110 = vsel %vm1532, %v4108, %v4109
        %v4111 = vrot.slane %v3943, 3
        %v4112 = vsel %vm1532, %v4109, %v4111
        %v4113 = vrot.slane %v3944, 3
        %v4114 = vsel %vm1532, %v4111, %v4113
        %v4115 = vrot.slane %v3945, 3
        %v4116 = vrot.slane %v3946, 3
        %v4117 = vsel %vm1532, %v4115, %v4116
        %v4118 = vrot.slane %v3947, 3
        %v4119 = vsel %vm1532, %v4116, %v4118
        %v4120 = vrot.slane %v3948, 3
        %v4121 = vsel %vm1532, %v4118, %v4120
        %v4122 = vrot.slane %v3949, 3
        %v4123 = vrot.slane %v3950, 3
        %v4124 = vsel %vm1532, %v4122, %v4123
        %v4125 = vrot.slane %v3951, 3
        %v4126 = vsel %vm1532, %v4123, %v4125
        %v4127 = vrot.slane %v3952, 3
        %v4128 = vsel %vm1532, %v4125, %v4127
        %v4177 = vadd.f32 %v3837, %v4019
        %v4178 = vadd.f32 %v3838, %v4021
        %v4179 = vadd.f32 %v3839, %v4023
        %v4180 = vadd.f32 %v3840, %v4026
        %v4181 = vadd.f32 %v3841, %v4028
        %v4182 = vadd.f32 %v3842, %v4030
        %v4183 = vadd.f32 %v3843, %v4033
        %v4184 = vadd.f32 %v3844, %v4035
        %v4185 = vadd.f32 %v3845, %v4037
        %v4186 = vadd.f32 %v3846, %v4040
        %v4187 = vadd.f32 %v3847, %v4042
        %v4188 = vadd.f32 %v3848, %v4044
        %v4189 = vadd.f32 %v3849, %v4047
        %v4190 = vadd.f32 %v3850, %v4049
        %v4191 = vadd.f32 %v3851, %v4051
        %v4192 = vadd.f32 %v3852, %v4054
        %v4193 = vadd.f32 %v3853, %v4056
        %v4194 = vadd.f32 %v3854, %v4058
        %v4195 = vadd.f32 %v3855, %v4061
        %v4196 = vadd.f32 %v3856, %v4063
        %v4197 = vadd.f32 %v3857, %v4065
        %v4198 = vadd.f32 %v3858, %v4068
        %v4199 = vadd.f32 %v3859, %v4070
        %v4200 = vadd.f32 %v3860, %v4072
        %v4201 = vadd.f32 %v3861, %v4075
        %v4202 = vadd.f32 %v3862, %v4077
        %v4203 = vadd.f32 %v3863, %v4079
        %v4204 = vadd.f32 %v3864, %v4082
        %v4205 = vadd.f32 %v3865, %v4084
        %v4206 = vadd.f32 %v3866, %v4086
        %v4207 = vadd.f32 %v3867, %v4089
        %v4208 = vadd.f32 %v3868, %v4091
        %v4209 = vadd.f32 %v3869, %v4093
        %v4210 = vadd.f32 %v3870, %v4096
        %v4211 = vadd.f32 %v3871, %v4098
        %v4212 = vadd.f32 %v3872, %v4100
        %v4213 = vadd.f32 %v3873, %v4103
        %v4214 = vadd.f32 %v3874, %v4105
        %v4215 = vadd.f32 %v3875, %v4107
        %v4216 = vadd.f32 %v3876, %v4110
        %v4217 = vadd.f32 %v3877, %v4112
        %v4218 = vadd.f32 %v3878, %v4114
        %v4219 = vadd.f32 %v3879, %v4117
        %v4220 = vadd.f32 %v3880, %v4119
        %v4221 = vadd.f32 %v3881, %v4121
        %v4222 = vadd.f32 %v3882, %v4124
        %v4223 = vadd.f32 %v3883, %v4126
        %v4224 = vadd.f32 %v3884, %v4128
        %v4225 = vlaneseq
        %v4226 = vshrl.u32 %v4225, 7
        %v4227 = vsub.s32 4, %v4226
        %v4228 = vrot.slane %v277, %v4227
        %v4229 = vmul.f32 %v308, %v4228
        %v4230 = vmul.f32 %v312, %v4228
        %v4231 = vmul.f32 %v316, %v4228
        %v4232 = vmul.f32 %v320, %v4228
        %v4233 = vmul.f32 %v331, %v4228
        %v4234 = vmul.f32 %v335, %v4228
        %v4235 = vmul.f32 %v339, %v4228
        %v4236 = vmul.f32 %v343, %v4228
        %v4237 = vmul.f32 %v354, %v4228
        %v4238 = vmul.f32 %v358, %v4228
        %v4239 = vmul.f32 %v362, %v4228
        %v4240 = vmul.f32 %v366, %v4228
        %v4241 = vmul.f32 %v377, %v4228
        %v4242 = vmul.f32 %v381, %v4228
        %v4243 = vmul.f32 %v385, %v4228
        %v4244 = vmul.f32 %v389, %v4228
        %v4245 = vmul.f32 %v400, %v4228
        %v4246 = vmul.f32 %v404, %v4228
        %v4247 = vmul.f32 %v408, %v4228
        %v4248 = vmul.f32 %v412, %v4228
        %v4249 = vmul.f32 %v423, %v4228
        %v4250 = vmul.f32 %v427, %v4228
        %v4251 = vmul.f32 %v431, %v4228
        %v4252 = vmul.f32 %v435, %v4228
        %v4253 = vmul.f32 %v446, %v4228
        %v4254 = vmul.f32 %v450, %v4228
        %v4255 = vmul.f32 %v454, %v4228
        %v4256 = vmul.f32 %v458, %v4228
        %v4257 = vmul.f32 %v469, %v4228
        %v4258 = vmul.f32 %v473, %v4228
        %v4259 = vmul.f32 %v477, %v4228
        %v4260 = vmul.f32 %v481, %v4228
        %v4261 = vmul.f32 %v492, %v4228
        %v4262 = vmul.f32 %v496, %v4228
        %v4263 = vmul.f32 %v500, %v4228
        %v4264 = vmul.f32 %v504, %v4228
        %v4265 = vmul.f32 %v515, %v4228
        %v4266 = vmul.f32 %v519, %v4228
        %v4267 = vmul.f32 %v523, %v4228
        %v4268 = vmul.f32 %v527, %v4228
        %v4269 = vmul.f32 %v538, %v4228
        %v4270 = vmul.f32 %v542, %v4228
        %v4271 = vmul.f32 %v546, %v4228
        %v4272 = vmul.f32 %v550, %v4228
        %v4273 = vmul.f32 %v561, %v4228
        %v4274 = vmul.f32 %v565, %v4228
        %v4275 = vmul.f32 %v569, %v4228
        %v4276 = vmul.f32 %v573, %v4228
        %v4277 = vmul.f32 %v584, %v4228
        %v4278 = vmul.f32 %v588, %v4228
        %v4279 = vmul.f32 %v592, %v4228
        %v4280 = vmul.f32 %v596, %v4228
        %v4281 = vmul.f32 %v607, %v4228
        %v4282 = vmul.f32 %v611, %v4228
        %v4283 = vmul.f32 %v615, %v4228
        %v4284 = vmul.f32 %v619, %v4228
        %v4285 = vmul.f32 %v630, %v4228
        %v4286 = vmul.f32 %v634, %v4228
        %v4287 = vmul.f32 %v638, %v4228
        %v4288 = vmul.f32 %v642, %v4228
        %v4289 = vmul.f32 %v653, %v4228
        %v4290 = vmul.f32 %v657, %v4228
        %v4291 = vmul.f32 %v661, %v4228
        %v4292 = vmul.f32 %v665, %v4228
        %v4357 = vrot.slane %v4229, 4
        %v4358 = vrot.slane %v4230, 4
        %v4359 = vsel %vm1873, %v4357, %v4358
        %v4360 = vrot.slane %v4231, 4
        %v4361 = vsel %vm1873, %v4358, %v4360
        %v4362 = vrot.slane %v4232, 4
        %v4363 = vsel %vm1873, %v4360, %v4362
        %v4364 = vrot.slane %v4233, 4
        %v4365 = vrot.slane %v4234, 4
        %v4366 = vsel %vm1873, %v4364, %v4365
        %v4367 = vrot.slane %v4235, 4
        %v4368 = vsel %vm1873, %v4365, %v4367
        %v4369 = vrot.slane %v4236, 4
        %v4370 = vsel %vm1873, %v4367, %v4369
        %v4371 = vrot.slane %v4237, 4
        %v4372 = vrot.slane %v4238, 4
        %v4373 = vsel %vm1873, %v4371, %v4372
        %v4374 = vrot.slane %v4239, 4
        %v4375 = vsel %vm1873, %v4372, %v4374
        %v4376 = vrot.slane %v4240, 4
        %v4377 = vsel %vm1873, %v4374, %v4376
        %v4378 = vrot.slane %v4241, 4
        %v4379 = vrot.slane %v4242, 4
        %v4380 = vsel %vm1873, %v4378, %v4379
        %v4381 = vrot.slane %v4243, 4
        %v4382 = vsel %vm1873, %v4379, %v4381
        %v4383 = vrot.slane %v4244, 4
        %v4384 = vsel %vm1873, %v4381, %v4383
        %v4385 = vrot.slane %v4245, 4
        %v4386 = vrot.slane %v4246, 4
        %v4387 = vsel %vm1873, %v4385, %v4386
        %v4388 = vrot.slane %v4247, 4
        %v4389 = vsel %vm1873, %v4386, %v4388
        %v4390 = vrot.slane %v4248, 4
        %v4391 = vsel %vm1873, %v4388, %v4390
        %v4392 = vrot.slane %v4249, 4
        %v4393 = vrot.slane %v4250, 4
        %v4394 = vsel %vm1873, %v4392, %v4393
        %v4395 = vrot.slane %v4251, 4
        %v4396 = vsel %vm1873, %v4393, %v4395
        %v4397 = vrot.slane %v4252, 4
        %v4398 = vsel %vm1873, %v4395, %v4397
        %v4399 = vrot.slane %v4253, 4
        %v4400 = vrot.slane %v4254, 4
        %v4401 = vsel %vm1873, %v4399, %v4400
        %v4402 = vrot.slane %v4255, 4
        %v4403 = vsel %vm1873, %v4400, %v4402
        %v4404 = vrot.slane %v4256, 4
        %v4405 = vsel %vm1873, %v4402, %v4404
        %v4406 = vrot.slane %v4257, 4
        %v4407 = vrot.slane %v4258, 4
        %v4408 = vsel %vm1873, %v4406, %v4407
        %v4409 = vrot.slane %v4259, 4
        %v4410 = vsel %vm1873, %v4407, %v4409
        %v4411 = vrot.slane %v4260, 4
        %v4412 = vsel %vm1873, %v4409, %v4411
        %v4413 = vrot.slane %v4261, 4
        %v4414 = vrot.slane %v4262, 4
        %v4415 = vsel %vm1873, %v4413, %v4414
        %v4416 = vrot.slane %v4263, 4
        %v4417 = vsel %vm1873, %v4414, %v4416
        %v4418 = vrot.slane %v4264, 4
        %v4419 = vsel %vm1873, %v4416, %v4418
        %v4420 = vrot.slane %v4265, 4
        %v4421 = vrot.slane %v4266, 4
        %v4422 = vsel %vm1873, %v4420, %v4421
        %v4423 = vrot.slane %v4267, 4
        %v4424 = vsel %vm1873, %v4421, %v4423
        %v4425 = vrot.slane %v4268, 4
        %v4426 = vsel %vm1873, %v4423, %v4425
        %v4427 = vrot.slane %v4269, 4
        %v4428 = vrot.slane %v4270, 4
        %v4429 = vsel %vm1873, %v4427, %v4428
        %v4430 = vrot.slane %v4271, 4
        %v4431 = vsel %vm1873, %v4428, %v4430
        %v4432 = vrot.slane %v4272, 4
        %v4433 = vsel %vm1873, %v4430, %v4432
        %v4434 = vrot.slane %v4273, 4
        %v4435 = vrot.slane %v4274, 4
        %v4436 = vsel %vm1873, %v4434, %v4435
        %v4437 = vrot.slane %v4275, 4
        %v4438 = vsel %vm1873, %v4435, %v4437
        %v4439 = vrot.slane %v4276, 4
        %v4440 = vsel %vm1873, %v4437, %v4439
        %v4441 = vrot.slane %v4277, 4
        %v4442 = vrot.slane %v4278, 4
        %v4443 = vsel %vm1873, %v4441, %v4442
        %v4444 = vrot.slane %v4279, 4
        %v4445 = vsel %vm1873, %v4442, %v4444
        %v4446 = vrot.slane %v4280, 4
        %v4447 = vsel %vm1873, %v4444, %v4446
        %v4448 = vrot.slane %v4281, 4
        %v4449 = vrot.slane %v4282, 4
        %v4450 = vsel %vm1873, %v4448, %v4449
        %v4451 = vrot.slane %v4283, 4
        %v4452 = vsel %vm1873, %v4449, %v4451
        %v4453 = vrot.slane %v4284, 4
        %v4454 = vsel %vm1873, %v4451, %v4453
        %v4455 = vrot.slane %v4285, 4
        %v4456 = vrot.slane %v4286, 4
        %v4457 = vsel %vm1873, %v4455, %v4456
        %v4458 = vrot.slane %v4287, 4
        %v4459 = vsel %vm1873, %v4456, %v4458
        %v4460 = vrot.slane %v4288, 4
        %v4461 = vsel %vm1873, %v4458, %v4460
        %v4462 = vrot.slane %v4289, 4
        %v4463 = vrot.slane %v4290, 4
        %v4464 = vsel %vm1873, %v4462, %v4463
        %v4465 = vrot.slane %v4291, 4
        %v4466 = vsel %vm1873, %v4463, %v4465
        %v4467 = vrot.slane %v4292, 4
        %v4468 = vsel %vm1873, %v4465, %v4467
        %v4517 = vadd.f32 %v4177, %v4359
        %v4518 = vadd.f32 %v4178, %v4361
        %v4519 = vadd.f32 %v4179, %v4363
        %v4520 = vadd.f32 %v4180, %v4366
        %v4521 = vadd.f32 %v4181, %v4368
        %v4522 = vadd.f32 %v4182, %v4370
        %v4523 = vadd.f32 %v4183, %v4373
        %v4524 = vadd.f32 %v4184, %v4375
        %v4525 = vadd.f32 %v4185, %v4377
        %v4526 = vadd.f32 %v4186, %v4380
        %v4527 = vadd.f32 %v4187, %v4382
        %v4528 = vadd.f32 %v4188, %v4384
        %v4529 = vadd.f32 %v4189, %v4387
        %v4530 = vadd.f32 %v4190, %v4389
        %v4531 = vadd.f32 %v4191, %v4391
        %v4532 = vadd.f32 %v4192, %v4394
        %v4533 = vadd.f32 %v4193, %v4396
        %v4534 = vadd.f32 %v4194, %v4398
        %v4535 = vadd.f32 %v4195, %v4401
        %v4536 = vadd.f32 %v4196, %v4403
        %v4537 = vadd.f32 %v4197, %v4405
        %v4538 = vadd.f32 %v4198, %v4408
        %v4539 = vadd.f32 %v4199, %v4410
        %v4540 = vadd.f32 %v4200, %v4412
        %v4541 = vadd.f32 %v4201, %v4415
        %v4542 = vadd.f32 %v4202, %v4417
        %v4543 = vadd.f32 %v4203, %v4419
        %v4544 = vadd.f32 %v4204, %v4422
        %v4545 = vadd.f32 %v4205, %v4424
        %v4546 = vadd.f32 %v4206, %v4426
        %v4547 = vadd.f32 %v4207, %v4429
        %v4548 = vadd.f32 %v4208, %v4431
        %v4549 = vadd.f32 %v4209, %v4433
        %v4550 = vadd.f32 %v4210, %v4436
        %v4551 = vadd.f32 %v4211, %v4438
        %v4552 = vadd.f32 %v4212, %v4440
        %v4553 = vadd.f32 %v4213, %v4443
        %v4554 = vadd.f32 %v4214, %v4445
        %v4555 = vadd.f32 %v4215, %v4447
        %v4556 = vadd.f32 %v4216, %v4450
        %v4557 = vadd.f32 %v4217, %v4452
        %v4558 = vadd.f32 %v4218, %v4454
        %v4559 = vadd.f32 %v4219, %v4457
        %v4560 = vadd.f32 %v4220, %v4459
        %v4561 = vadd.f32 %v4221, %v4461
        %v4562 = vadd.f32 %v4222, %v4464
        %v4563 = vadd.f32 %v4223, %v4466
        %v4564 = vadd.f32 %v4224, %v4468
        %vm4565 = vcmask 326656
        %v4567 = vsel %vm4565, %v4520, 0
        %v4570 = vsel %vm4565, %v4521, 0
        %v4573 = vsel %vm4565, %v4522, 0
        %v4576 = vsel %vm4565, %v4523, 0
        %v4579 = vsel %vm4565, %v4524, 0
        %v4582 = vsel %vm4565, %v4525, 0
        %v4585 = vsel %vm4565, %v4526, 0
        %v4588 = vsel %vm4565, %v4527, 0
        %v4591 = vsel %vm4565, %v4528, 0
        %v4594 = vsel %vm4565, %v4529, 0
        %v4597 = vsel %vm4565, %v4530, 0
        %v4600 = vsel %vm4565, %v4531, 0
        %v4603 = vsel %vm4565, %v4532, 0
        %v4606 = vsel %vm4565, %v4533, 0
        %v4609 = vsel %vm4565, %v4534, 0
        %v4612 = vsel %vm4565, %v4535, 0
        %v4615 = vsel %vm4565, %v4536, 0
        %v4618 = vsel %vm4565, %v4537, 0
        %v4621 = vsel %vm4565, %v4538, 0
        %v4624 = vsel %vm4565, %v4539, 0
        %v4627 = vsel %vm4565, %v4540, 0
        %v4630 = vsel %vm4565, %v4541, 0
        %v4633 = vsel %vm4565, %v4542, 0
        %v4636 = vsel %vm4565, %v4543, 0
        %v4639 = vsel %vm4565, %v4544, 0
        %v4642 = vsel %vm4565, %v4545, 0
        %v4645 = vsel %vm4565, %v4546, 0
        %v4648 = vsel %vm4565, %v4547, 0
        %v4651 = vsel %vm4565, %v4548, 0
        %v4654 = vsel %vm4565, %v4549, 0
        %v4657 = vsel %vm4565, %v4550, 0
        %v4660 = vsel %vm4565, %v4551, 0
        %v4663 = vsel %vm4565, %v4552, 0
        %v4666 = vsel %vm4565, %v4553, 0
        %v4669 = vsel %vm4565, %v4554, 0
        %v4672 = vsel %vm4565, %v4555, 0
        %v4675 = vsel %vm4565, %v4556, 0
        %v4678 = vsel %vm4565, %v4557, 0
        %v4681 = vsel %vm4565, %v4558, 0
        %4683 = vmatprep.subr.mxu0 0.0
        %4684 = vmatpush1.msra.mxu0 %v283
        %4685 = vmatprep.subr.mxu0 0.0
        %4686 = vmatpush1.msra.mxu0 %v284
        %4687 = vmatprep.subr.mxu0 0.0
        %4688 = vmatpush1.msra.mxu0 %v285
        %4689 = vmatprep.subr.mxu0 0.0
        %4690 = vmatpush1.msra.mxu0 %v286
        %4691 = vmatprep.subr.mxu0 0.0
        %4692 = vmatpush1.msra.mxu0 %v287
        %4693 = vmatprep.subr.mxu0 0.0
        %4694 = vmatpush1.msra.mxu0 0.0
        %4695 = vmatprep.subr.mxu0 0.0
        %4696 = vmatpush1.msra.mxu0 0.0
        %4697 = vmatprep.subr.mxu0 0.0
        %4698 = vmatpush1.msra.mxu0 0.0
        %4699 = vmatprep.subr.mxu0 0.0
        %4700 = vmatpush1.msra.mxu0 0.0
        %4701 = vmatprep.subr.mxu0 0.0
        %4702 = vmatpush1.msra.mxu0 0.0
        %4703 = vmatprep.subr.mxu0 0.0
        %4704 = vmatpush1.msra.mxu0 0.0
        %4705 = vmatprep.subr.mxu0 0.0
        %4706 = vmatpush1.msra.mxu0 0.0
        %4707 = vmatprep.subr.mxu0 0.0
        %4708 = vmatpush1.msra.mxu0 0.0
        %4709 = vmatprep.subr.mxu0 0.0
        %4710 = vmatpush1.msra.mxu0 0.0
        %4711 = vmatprep.subr.mxu0 0.0
        %4712 = vmatpush1.msra.mxu0 0.0
        %4713 = vmatprep.subr.mxu0 0.0
        %4714 = vmatpush1.msra.mxu0 0.0
        %4715 = vmatprep.subr.mxu0 0.0
        %4716 = vmatpush1.msra.mxu0 0.0
        %4717 = vmatprep.subr.mxu0 0.0
        %4718 = vmatpush1.msra.mxu0 0.0
        %4719 = vmatprep.subr.mxu0 0.0
        %4720 = vmatpush1.msra.mxu0 0.0
        %4721 = vmatprep.subr.mxu0 0.0
        %4722 = vmatpush1.msra.mxu0 0.0
        %4723 = vmatprep.subr.mxu0 0.0
        %4724 = vmatpush1.msra.mxu0 0.0
        %4725 = vmatprep.subr.mxu0 0.0
        %4726 = vmatpush1.msra.mxu0 0.0
        %4727 = vmatprep.subr.mxu0 0.0
        %4728 = vmatpush1.msra.mxu0 0.0
        %4729 = vmatprep.subr.mxu0 0.0
        %4730 = vmatpush1.msra.mxu0 0.0
        %4731 = vmatprep.subr.mxu0 0.0
        %4732 = vmatpush1.msra.mxu0 0.0
        %4733 = vmatprep.subr.mxu0 0.0
        %4734 = vmatpush1.msra.mxu0 0.0
        %4735 = vmatprep.subr.mxu0 0.0
        %4736 = vmatpush1.msra.mxu0 0.0
        %4737 = vmatprep.subr.mxu0 0.0
        %4738 = vmatpush1.msra.mxu0 0.0
        %4739 = vmatprep.subr.mxu0 0.0
        %4740 = vmatpush1.msra.mxu0 0.0
        %4741 = vmatprep.subr.mxu0 0.0
        %4742 = vmatpush1.msra.mxu0 0.0
        %4743 = vmatprep.subr.mxu0 0.0
        %4744 = vmatpush1.msra.mxu0 0.0
        %4745 = vmatprep.subr.mxu0 0.0
        %4746 = vmatpush1.msra.mxu0 0.0
        %4747 = vmatprep.mubr.f32.mxu0 0.0
        %4748 = vmatmul.mubr.f32.gmra.mrb[0].mxu0 %v4567
        %v4749 = vpop.f32.mrb[0].mxu0
        %v4750 = vadd.f32 0.0, %v4749
        %v4751 = vpop.f32.mrb[0].mxu0
        %4752 = vmatprep.mubr.f32.mxu0 0.0
        %4753 = vmatmul.mubr.f32.gmra.mrb[0].mxu0 %v4570
        %v4754 = vpop.f32.mrb[0].mxu0
        %v4755 = vadd.f32 0.0, %v4754
        %v4756 = vpop.f32.mrb[0].mxu0
        %4757 = vmatprep.mubr.f32.mxu0 0.0
        %4758 = vmatmul.mubr.f32.gmra.mrb[0].mxu0 %v4573
        %v4759 = vpop.f32.mrb[0].mxu0
        %v4760 = vadd.f32 0.0, %v4759
        %v4761 = vpop.f32.mrb[0].mxu0
        %4762 = vmatprep.mubr.f32.mxu0 0.0
        %4763 = vmatmul.mubr.f32.gmra.mrb[0].mxu0 %v4576
        %v4764 = vpop.f32.mrb[0].mxu0
        %v4765 = vadd.f32 0.0, %v4764
        %v4766 = vpop.f32.mrb[0].mxu0
        %4767 = vmatprep.mubr.f32.mxu0 0.0
        %4768 = vmatmul.mubr.f32.gmra.mrb[0].mxu0 %v4579
        %v4769 = vpop.f32.mrb[0].mxu0
        %v4770 = vadd.f32 0.0, %v4769
        %v4771 = vpop.f32.mrb[0].mxu0
        %4772 = vmatprep.mubr.f32.mxu0 0.0
        %4773 = vmatmul.mubr.f32.gmra.mrb[0].mxu0 %v4582
        %v4774 = vpop.f32.mrb[0].mxu0
        %v4775 = vadd.f32 0.0, %v4774
        %v4776 = vpop.f32.mrb[0].mxu0
        %4777 = vmatprep.mubr.f32.mxu0 0.0
        %4778 = vmatmul.mubr.f32.gmra.mrb[0].mxu0 %v4585
        %v4779 = vpop.f32.mrb[0].mxu0
        %v4780 = vadd.f32 0.0, %v4779
        %v4781 = vpop.f32.mrb[0].mxu0
        %4782 = vmatprep.mubr.f32.mxu0 0.0
        %4783 = vmatmul.mubr.f32.gmra.mrb[0].mxu0 %v4588
        %v4784 = vpop.f32.mrb[0].mxu0
        %v4785 = vadd.f32 0.0, %v4784
        %v4786 = vpop.f32.mrb[0].mxu0
        %4787 = vmatprep.mubr.f32.mxu0 0.0
        %4788 = vmatmul.mubr.f32.gmra.mrb[0].mxu0 %v4591
        %v4789 = vpop.f32.mrb[0].mxu0
        %v4790 = vadd.f32 0.0, %v4789
        %v4791 = vpop.f32.mrb[0].mxu0
        %4792 = vmatprep.mubr.f32.mxu0 0.0
        %4793 = vmatmul.mubr.f32.gmra.mrb[0].mxu0 %v4594
        %v4794 = vpop.f32.mrb[0].mxu0
        %v4795 = vadd.f32 0.0, %v4794
        %v4796 = vpop.f32.mrb[0].mxu0
        %4797 = vmatprep.mubr.f32.mxu0 0.0
        %4798 = vmatmul.mubr.f32.gmra.mrb[0].mxu0 %v4597
        %v4799 = vpop.f32.mrb[0].mxu0
        %v4800 = vadd.f32 0.0, %v4799
        %v4801 = vpop.f32.mrb[0].mxu0
        %4802 = vmatprep.mubr.f32.mxu0 0.0
        %4803 = vmatmul.mubr.f32.gmra.mrb[0].mxu0 %v4600
        %v4804 = vpop.f32.mrb[0].mxu0
        %v4805 = vadd.f32 0.0, %v4804
        %v4806 = vpop.f32.mrb[0].mxu0
        %4807 = vmatprep.mubr.f32.mxu0 0.0
        %4808 = vmatmul.mubr.f32.gmra.mrb[0].mxu0 %v4603
        %v4809 = vpop.f32.mrb[0].mxu0
        %v4810 = vadd.f32 0.0, %v4809
        %v4811 = vpop.f32.mrb[0].mxu0
        %4812 = vmatprep.mubr.f32.mxu0 0.0
        %4813 = vmatmul.mubr.f32.gmra.mrb[0].mxu0 %v4606
        %v4814 = vpop.f32.mrb[0].mxu0
        %v4815 = vadd.f32 0.0, %v4814
        %v4816 = vpop.f32.mrb[0].mxu0
        %4817 = vmatprep.mubr.f32.mxu0 0.0
        %4818 = vmatmul.mubr.f32.gmra.mrb[0].mxu0 %v4609
        %v4819 = vpop.f32.mrb[0].mxu0
        %v4820 = vadd.f32 0.0, %v4819
        %v4821 = vpop.f32.mrb[0].mxu0
        %4822 = vmatprep.mubr.f32.mxu0 0.0
        %4823 = vmatmul.mubr.f32.gmra.mrb[0].mxu0 %v4612
        %v4824 = vpop.f32.mrb[0].mxu0
        %v4825 = vadd.f32 0.0, %v4824
        %v4826 = vpop.f32.mrb[0].mxu0
        %4827 = vmatprep.mubr.f32.mxu0 0.0
        %4828 = vmatmul.mubr.f32.gmra.mrb[0].mxu0 %v4615
        %v4829 = vpop.f32.mrb[0].mxu0
        %v4830 = vadd.f32 0.0, %v4829
        %v4831 = vpop.f32.mrb[0].mxu0
        %4832 = vmatprep.mubr.f32.mxu0 0.0
        %4833 = vmatmul.mubr.f32.gmra.mrb[0].mxu0 %v4618
        %v4834 = vpop.f32.mrb[0].mxu0
        %v4835 = vadd.f32 0.0, %v4834
        %v4836 = vpop.f32.mrb[0].mxu0
        %4837 = vmatprep.mubr.f32.mxu0 0.0
        %4838 = vmatmul.mubr.f32.gmra.mrb[0].mxu0 %v4621
        %v4839 = vpop.f32.mrb[0].mxu0
        %v4840 = vadd.f32 0.0, %v4839
        %v4841 = vpop.f32.mrb[0].mxu0
        %4842 = vmatprep.mubr.f32.mxu0 0.0
        %4843 = vmatmul.mubr.f32.gmra.mrb[0].mxu0 %v4624
        %v4844 = vpop.f32.mrb[0].mxu0
        %v4845 = vadd.f32 0.0, %v4844
        %v4846 = vpop.f32.mrb[0].mxu0
        %4847 = vmatprep.mubr.f32.mxu0 0.0
        %4848 = vmatmul.mubr.f32.gmra.mrb[0].mxu0 %v4627
        %v4849 = vpop.f32.mrb[0].mxu0
        %v4850 = vadd.f32 0.0, %v4849
        %v4851 = vpop.f32.mrb[0].mxu0
        %4852 = vmatprep.mubr.f32.mxu0 0.0
        %4853 = vmatmul.mubr.f32.gmra.mrb[0].mxu0 %v4630
        %v4854 = vpop.f32.mrb[0].mxu0
        %v4855 = vadd.f32 0.0, %v4854
        %v4856 = vpop.f32.mrb[0].mxu0
        %4857 = vmatprep.mubr.f32.mxu0 0.0
        %4858 = vmatmul.mubr.f32.gmra.mrb[0].mxu0 %v4633
        %v4859 = vpop.f32.mrb[0].mxu0
        %v4860 = vadd.f32 0.0, %v4859
        %v4861 = vpop.f32.mrb[0].mxu0
        %4862 = vmatprep.mubr.f32.mxu0 0.0
        %4863 = vmatmul.mubr.f32.gmra.mrb[0].mxu0 %v4636
        %v4864 = vpop.f32.mrb[0].mxu0
        %v4865 = vadd.f32 0.0, %v4864
        %v4866 = vpop.f32.mrb[0].mxu0
        %4867 = vmatprep.mubr.f32.mxu0 0.0
        %4868 = vmatmul.mubr.f32.gmra.mrb[0].mxu0 %v4639
        %v4869 = vpop.f32.mrb[0].mxu0
        %v4870 = vadd.f32 0.0, %v4869
        %v4871 = vpop.f32.mrb[0].mxu0
        %4872 = vmatprep.mubr.f32.mxu0 0.0
        %4873 = vmatmul.mubr.f32.gmra.mrb[0].mxu0 %v4642
        %v4874 = vpop.f32.mrb[0].mxu0
        %v4875 = vadd.f32 0.0, %v4874
        %v4876 = vpop.f32.mrb[0].mxu0
        %4877 = vmatprep.mubr.f32.mxu0 0.0
        %4878 = vmatmul.mubr.f32.gmra.mrb[0].mxu0 %v4645
        %v4879 = vpop.f32.mrb[0].mxu0
        %v4880 = vadd.f32 0.0, %v4879
        %v4881 = vpop.f32.mrb[0].mxu0
        %4882 = vmatprep.mubr.f32.mxu0 0.0
        %4883 = vmatmul.mubr.f32.gmra.mrb[0].mxu0 %v4648
        %v4884 = vpop.f32.mrb[0].mxu0
        %v4885 = vadd.f32 0.0, %v4884
        %v4886 = vpop.f32.mrb[0].mxu0
        %4887 = vmatprep.mubr.f32.mxu0 0.0
        %4888 = vmatmul.mubr.f32.gmra.mrb[0].mxu0 %v4651
        %v4889 = vpop.f32.mrb[0].mxu0
        %v4890 = vadd.f32 0.0, %v4889
        %v4891 = vpop.f32.mrb[0].mxu0
        %4892 = vmatprep.mubr.f32.mxu0 0.0
        %4893 = vmatmul.mubr.f32.gmra.mrb[0].mxu0 %v4654
        %v4894 = vpop.f32.mrb[0].mxu0
        %v4895 = vadd.f32 0.0, %v4894
        %v4896 = vpop.f32.mrb[0].mxu0
        %4897 = vmatprep.mubr.f32.mxu0 0.0
        %4898 = vmatmul.mubr.f32.gmra.mrb[0].mxu0 %v4657
        %v4899 = vpop.f32.mrb[0].mxu0
        %v4900 = vadd.f32 0.0, %v4899
        %v4901 = vpop.f32.mrb[0].mxu0
        %4902 = vmatprep.mubr.f32.mxu0 0.0
        %4903 = vmatmul.mubr.f32.gmra.mrb[0].mxu0 %v4660
        %v4904 = vpop.f32.mrb[0].mxu0
        %v4905 = vadd.f32 0.0, %v4904
        %v4906 = vpop.f32.mrb[0].mxu0
        %4907 = vmatprep.mubr.f32.mxu0 0.0
        %4908 = vmatmul.mubr.f32.gmra.mrb[0].mxu0 %v4663
        %v4909 = vpop.f32.mrb[0].mxu0
        %v4910 = vadd.f32 0.0, %v4909
        %v4911 = vpop.f32.mrb[0].mxu0
        %4912 = vmatprep.mubr.f32.mxu0 0.0
        %4913 = vmatmul.mubr.f32.gmra.mrb[0].mxu0 %v4666
        %v4914 = vpop.f32.mrb[0].mxu0
        %v4915 = vadd.f32 0.0, %v4914
        %v4916 = vpop.f32.mrb[0].mxu0
        %4917 = vmatprep.mubr.f32.mxu0 0.0
        %4918 = vmatmul.mubr.f32.gmra.mrb[0].mxu0 %v4669
        %v4919 = vpop.f32.mrb[0].mxu0
        %v4920 = vadd.f32 0.0, %v4919
        %v4921 = vpop.f32.mrb[0].mxu0
        %4922 = vmatprep.mubr.f32.mxu0 0.0
        %4923 = vmatmul.mubr.f32.gmra.mrb[0].mxu0 %v4672
        %v4924 = vpop.f32.mrb[0].mxu0
        %v4925 = vadd.f32 0.0, %v4924
        %v4926 = vpop.f32.mrb[0].mxu0
        %4927 = vmatprep.mubr.f32.mxu0 0.0
        %4928 = vmatmul.mubr.f32.gmra.mrb[0].mxu0 %v4675
        %v4929 = vpop.f32.mrb[0].mxu0
        %v4930 = vadd.f32 0.0, %v4929
        %v4931 = vpop.f32.mrb[0].mxu0
        %4932 = vmatprep.mubr.f32.mxu0 0.0
        %4933 = vmatmul.mubr.f32.gmra.mrb[0].mxu0 %v4678
        %v4934 = vpop.f32.mrb[0].mxu0
        %v4935 = vadd.f32 0.0, %v4934
        %v4936 = vpop.f32.mrb[0].mxu0
        %4937 = vmatprep.mubr.f32.mxu0 0.0
        %4938 = vmatmul.mubr.f32.gmra.mrb[0].mxu0 %v4681
        %v4939 = vpop.f32.mrb[0].mxu0
        %v4940 = vadd.f32 0.0, %v4939
        %v4941 = vpop.f32.mrb[0].mxu0
        %4942 = vdwg.mxu0
        %v4944 = vsel %vm4565, %v4517, 0
        %v4947 = vsel %vm4565, %v4518, 0
        %v4950 = vsel %vm4565, %v4519, 0
        %4952 = vmatprep.subr.mxu0 0.0
        %4953 = vmatpush1.msra.mxu0 %v278
        %4954 = vmatprep.subr.mxu0 0.0
        %4955 = vmatpush1.msra.mxu0 %v279
        %4956 = vmatprep.subr.mxu0 0.0
        %4957 = vmatpush1.msra.mxu0 %v280
        %4958 = vmatprep.subr.mxu0 0.0
        %4959 = vmatpush1.msra.mxu0 %v281
        %4960 = vmatprep.subr.mxu0 0.0
        %4961 = vmatpush1.msra.mxu0 %v282
        %4962 = vmatprep.subr.mxu0 0.0
        %4963 = vmatpush1.msra.mxu0 0.0
        %4964 = vmatprep.subr.mxu0 0.0
        %4965 = vmatpush1.msra.mxu0 0.0
        %4966 = vmatprep.subr.mxu0 0.0
        %4967 = vmatpush1.msra.mxu0 0.0
        %4968 = vmatprep.subr.mxu0 0.0
        %4969 = vmatpush1.msra.mxu0 0.0
        %4970 = vmatprep.subr.mxu0 0.0
        %4971 = vmatpush1.msra.mxu0 0.0
        %4972 = vmatprep.subr.mxu0 0.0
        %4973 = vmatpush1.msra.mxu0 0.0
        %4974 = vmatprep.subr.mxu0 0.0
        %4975 = vmatpush1.msra.mxu0 0.0
        %4976 = vmatprep.subr.mxu0 0.0
        %4977 = vmatpush1.msra.mxu0 0.0
        %4978 = vmatprep.subr.mxu0 0.0
        %4979 = vmatpush1.msra.mxu0 0.0
        %4980 = vmatprep.subr.mxu0 0.0
        %4981 = vmatpush1.msra.mxu0 0.0
        %4982 = vmatprep.subr.mxu0 0.0
        %4983 = vmatpush1.msra.mxu0 0.0
        %4984 = vmatprep.subr.mxu0 0.0
        %4985 = vmatpush1.msra.mxu0 0.0
        %4986 = vmatprep.subr.mxu0 0.0
        %4987 = vmatpush1.msra.mxu0 0.0
        %4988 = vmatprep.subr.mxu0 0.0
        %4989 = vmatpush1.msra.mxu0 0.0
        %4990 = vmatprep.subr.mxu0 0.0
        %4991 = vmatpush1.msra.mxu0 0.0
        %4992 = vmatprep.subr.mxu0 0.0
        %4993 = vmatpush1.msra.mxu0 0.0
        %4994 = vmatprep.subr.mxu0 0.0
        %4995 = vmatpush1.msra.mxu0 0.0
        %4996 = vmatprep.subr.mxu0 0.0
        %4997 = vmatpush1.msra.mxu0 0.0
        %4998 = vmatprep.subr.mxu0 0.0
        %4999 = vmatpush1.msra.mxu0 0.0
        %5000 = vmatprep.subr.mxu0 0.0
        %5001 = vmatpush1.msra.mxu0 0.0
        %5002 = vmatprep.subr.mxu0 0.0
        %5003 = vmatpush1.msra.mxu0 0.0
        %5004 = vmatprep.subr.mxu0 0.0
        %5005 = vmatpush1.msra.mxu0 0.0
        %5006 = vmatprep.subr.mxu0 0.0
        %5007 = vmatpush1.msra.mxu0 0.0
        %5008 = vmatprep.subr.mxu0 0.0
        %5009 = vmatpush1.msra.mxu0 0.0
        %5010 = vmatprep.subr.mxu0 0.0
        %5011 = vmatpush1.msra.mxu0 0.0
        %5012 = vmatprep.subr.mxu0 0.0
        %5013 = vmatpush1.msra.mxu0 0.0
        %5014 = vmatprep.subr.mxu0 0.0
        %5015 = vmatpush1.msra.mxu0 0.0
        %5016 = vmatprep.mubr.f32.mxu0 0.0
        %5017 = vmatmul.mubr.f32.gmra.mrb[0].mxu0 %v4944
        %v5018 = vpop.f32.mrb[0].mxu0
        %v5019 = vadd.f32 %v4750, %v5018
        %v5020 = vpop.f32.mrb[0].mxu0
        %5021 = vmatprep.mubr.f32.mxu0 0.0
        %5022 = vmatmul.mubr.f32.gmra.mrb[0].mxu0 %v4947
        %v5023 = vpop.f32.mrb[0].mxu0
        %v5024 = vadd.f32 %v4755, %v5023
        %v5025 = vpop.f32.mrb[0].mxu0
        %5026 = vmatprep.mubr.f32.mxu0 0.0
        %5027 = vmatmul.mubr.f32.gmra.mrb[0].mxu0 %v4950
        %v5028 = vpop.f32.mrb[0].mxu0
        %v5029 = vadd.f32 %v4760, %v5028
        %v5030 = vpop.f32.mrb[0].mxu0
        %5031 = vmatprep.mubr.f32.mxu0 0.0
        %5032 = vmatmul.mubr.f32.gmra.mrb[0].mxu0 %v4567
        %v5033 = vpop.f32.mrb[0].mxu0
        %v5034 = vadd.f32 %v4765, %v5033
        %v5035 = vpop.f32.mrb[0].mxu0
        %5036 = vmatprep.mubr.f32.mxu0 0.0
        %5037 = vmatmul.mubr.f32.gmra.mrb[0].mxu0 %v4570
        %v5038 = vpop.f32.mrb[0].mxu0
        %v5039 = vadd.f32 %v4770, %v5038
        %v5040 = vpop.f32.mrb[0].mxu0
        %5041 = vmatprep.mubr.f32.mxu0 0.0
        %5042 = vmatmul.mubr.f32.gmra.mrb[0].mxu0 %v4573
        %v5043 = vpop.f32.mrb[0].mxu0
        %v5044 = vadd.f32 %v4775, %v5043
        %v5045 = vpop.f32.mrb[0].mxu0
        %5046 = vmatprep.mubr.f32.mxu0 0.0
        %5047 = vmatmul.mubr.f32.gmra.mrb[0].mxu0 %v4576
        %v5048 = vpop.f32.mrb[0].mxu0
        %v5049 = vadd.f32 %v4780, %v5048
        %v5050 = vpop.f32.mrb[0].mxu0
        %5051 = vmatprep.mubr.f32.mxu0 0.0
        %5052 = vmatmul.mubr.f32.gmra.mrb[0].mxu0 %v4579
        %v5053 = vpop.f32.mrb[0].mxu0
        %v5054 = vadd.f32 %v4785, %v5053
        %v5055 = vpop.f32.mrb[0].mxu0
        %5056 = vmatprep.mubr.f32.mxu0 0.0
        %5057 = vmatmul.mubr.f32.gmra.mrb[0].mxu0 %v4582
        %v5058 = vpop.f32.mrb[0].mxu0
        %v5059 = vadd.f32 %v4790, %v5058
        %v5060 = vpop.f32.mrb[0].mxu0
        %5061 = vmatprep.mubr.f32.mxu0 0.0
        %5062 = vmatmul.mubr.f32.gmra.mrb[0].mxu0 %v4585
        %v5063 = vpop.f32.mrb[0].mxu0
        %v5064 = vadd.f32 %v4795, %v5063
        %v5065 = vpop.f32.mrb[0].mxu0
        %5066 = vmatprep.mubr.f32.mxu0 0.0
        %5067 = vmatmul.mubr.f32.gmra.mrb[0].mxu0 %v4588
        %v5068 = vpop.f32.mrb[0].mxu0
        %v5069 = vadd.f32 %v4800, %v5068
        %v5070 = vpop.f32.mrb[0].mxu0
        %5071 = vmatprep.mubr.f32.mxu0 0.0
        %5072 = vmatmul.mubr.f32.gmra.mrb[0].mxu0 %v4591
        %v5073 = vpop.f32.mrb[0].mxu0
        %v5074 = vadd.f32 %v4805, %v5073
        %v5075 = vpop.f32.mrb[0].mxu0
        %5076 = vmatprep.mubr.f32.mxu0 0.0
        %5077 = vmatmul.mubr.f32.gmra.mrb[0].mxu0 %v4594
        %v5078 = vpop.f32.mrb[0].mxu0
        %v5079 = vadd.f32 %v4810, %v5078
        %v5080 = vpop.f32.mrb[0].mxu0
        %5081 = vmatprep.mubr.f32.mxu0 0.0
        %5082 = vmatmul.mubr.f32.gmra.mrb[0].mxu0 %v4597
        %v5083 = vpop.f32.mrb[0].mxu0
        %v5084 = vadd.f32 %v4815, %v5083
        %v5085 = vpop.f32.mrb[0].mxu0
        %5086 = vmatprep.mubr.f32.mxu0 0.0
        %5087 = vmatmul.mubr.f32.gmra.mrb[0].mxu0 %v4600
        %v5088 = vpop.f32.mrb[0].mxu0
        %v5089 = vadd.f32 %v4820, %v5088
        %v5090 = vpop.f32.mrb[0].mxu0
        %5091 = vmatprep.mubr.f32.mxu0 0.0
        %5092 = vmatmul.mubr.f32.gmra.mrb[0].mxu0 %v4603
        %v5093 = vpop.f32.mrb[0].mxu0
        %v5094 = vadd.f32 %v4825, %v5093
        %v5095 = vpop.f32.mrb[0].mxu0
        %5096 = vmatprep.mubr.f32.mxu0 0.0
        %5097 = vmatmul.mubr.f32.gmra.mrb[0].mxu0 %v4606
        %v5098 = vpop.f32.mrb[0].mxu0
        %v5099 = vadd.f32 %v4830, %v5098
        %v5100 = vpop.f32.mrb[0].mxu0
        %5101 = vmatprep.mubr.f32.mxu0 0.0
        %5102 = vmatmul.mubr.f32.gmra.mrb[0].mxu0 %v4609
        %v5103 = vpop.f32.mrb[0].mxu0
        %v5104 = vadd.f32 %v4835, %v5103
        %v5105 = vpop.f32.mrb[0].mxu0
        %5106 = vmatprep.mubr.f32.mxu0 0.0
        %5107 = vmatmul.mubr.f32.gmra.mrb[0].mxu0 %v4612
        %v5108 = vpop.f32.mrb[0].mxu0
        %v5109 = vadd.f32 %v4840, %v5108
        %v5110 = vpop.f32.mrb[0].mxu0
        %5111 = vmatprep.mubr.f32.mxu0 0.0
        %5112 = vmatmul.mubr.f32.gmra.mrb[0].mxu0 %v4615
        %v5113 = vpop.f32.mrb[0].mxu0
        %v5114 = vadd.f32 %v4845, %v5113
        %v5115 = vpop.f32.mrb[0].mxu0
        %5116 = vmatprep.mubr.f32.mxu0 0.0
        %5117 = vmatmul.mubr.f32.gmra.mrb[0].mxu0 %v4618
        %v5118 = vpop.f32.mrb[0].mxu0
        %v5119 = vadd.f32 %v4850, %v5118
        %v5120 = vpop.f32.mrb[0].mxu0
        %5121 = vmatprep.mubr.f32.mxu0 0.0
        %5122 = vmatmul.mubr.f32.gmra.mrb[0].mxu0 %v4621
        %v5123 = vpop.f32.mrb[0].mxu0
        %v5124 = vadd.f32 %v4855, %v5123
        %v5125 = vpop.f32.mrb[0].mxu0
        %5126 = vmatprep.mubr.f32.mxu0 0.0
        %5127 = vmatmul.mubr.f32.gmra.mrb[0].mxu0 %v4624
        %v5128 = vpop.f32.mrb[0].mxu0
        %v5129 = vadd.f32 %v4860, %v5128
        %v5130 = vpop.f32.mrb[0].mxu0
        %5131 = vmatprep.mubr.f32.mxu0 0.0
        %5132 = vmatmul.mubr.f32.gmra.mrb[0].mxu0 %v4627
        %v5133 = vpop.f32.mrb[0].mxu0
        %v5134 = vadd.f32 %v4865, %v5133
        %v5135 = vpop.f32.mrb[0].mxu0
        %5136 = vmatprep.mubr.f32.mxu0 0.0
        %5137 = vmatmul.mubr.f32.gmra.mrb[0].mxu0 %v4630
        %v5138 = vpop.f32.mrb[0].mxu0
        %v5139 = vadd.f32 %v4870, %v5138
        %v5140 = vpop.f32.mrb[0].mxu0
        %5141 = vmatprep.mubr.f32.mxu0 0.0
        %5142 = vmatmul.mubr.f32.gmra.mrb[0].mxu0 %v4633
        %v5143 = vpop.f32.mrb[0].mxu0
        %v5144 = vadd.f32 %v4875, %v5143
        %v5145 = vpop.f32.mrb[0].mxu0
        %5146 = vmatprep.mubr.f32.mxu0 0.0
        %5147 = vmatmul.mubr.f32.gmra.mrb[0].mxu0 %v4636
        %v5148 = vpop.f32.mrb[0].mxu0
        %v5149 = vadd.f32 %v4880, %v5148
        %v5150 = vpop.f32.mrb[0].mxu0
        %5151 = vmatprep.mubr.f32.mxu0 0.0
        %5152 = vmatmul.mubr.f32.gmra.mrb[0].mxu0 %v4639
        %v5153 = vpop.f32.mrb[0].mxu0
        %v5154 = vadd.f32 %v4885, %v5153
        %v5155 = vpop.f32.mrb[0].mxu0
        %5156 = vmatprep.mubr.f32.mxu0 0.0
        %5157 = vmatmul.mubr.f32.gmra.mrb[0].mxu0 %v4642
        %v5158 = vpop.f32.mrb[0].mxu0
        %v5159 = vadd.f32 %v4890, %v5158
        %v5160 = vpop.f32.mrb[0].mxu0
        %5161 = vmatprep.mubr.f32.mxu0 0.0
        %5162 = vmatmul.mubr.f32.gmra.mrb[0].mxu0 %v4645
        %v5163 = vpop.f32.mrb[0].mxu0
        %v5164 = vadd.f32 %v4895, %v5163
        %v5165 = vpop.f32.mrb[0].mxu0
        %5166 = vmatprep.mubr.f32.mxu0 0.0
        %5167 = vmatmul.mubr.f32.gmra.mrb[0].mxu0 %v4648
        %v5168 = vpop.f32.mrb[0].mxu0
        %v5169 = vadd.f32 %v4900, %v5168
        %v5170 = vpop.f32.mrb[0].mxu0
        %5171 = vmatprep.mubr.f32.mxu0 0.0
        %5172 = vmatmul.mubr.f32.gmra.mrb[0].mxu0 %v4651
        %v5173 = vpop.f32.mrb[0].mxu0
        %v5174 = vadd.f32 %v4905, %v5173
        %v5175 = vpop.f32.mrb[0].mxu0
        %5176 = vmatprep.mubr.f32.mxu0 0.0
        %5177 = vmatmul.mubr.f32.gmra.mrb[0].mxu0 %v4654
        %v5178 = vpop.f32.mrb[0].mxu0
        %v5179 = vadd.f32 %v4910, %v5178
        %v5180 = vpop.f32.mrb[0].mxu0
        %5181 = vmatprep.mubr.f32.mxu0 0.0
        %5182 = vmatmul.mubr.f32.gmra.mrb[0].mxu0 %v4657
        %v5183 = vpop.f32.mrb[0].mxu0
        %v5184 = vadd.f32 %v4915, %v5183
        %v5185 = vpop.f32.mrb[0].mxu0
        %5186 = vmatprep.mubr.f32.mxu0 0.0
        %5187 = vmatmul.mubr.f32.gmra.mrb[0].mxu0 %v4660
        %v5188 = vpop.f32.mrb[0].mxu0
        %v5189 = vadd.f32 %v4920, %v5188
        %v5190 = vpop.f32.mrb[0].mxu0
        %5191 = vmatprep.mubr.f32.mxu0 0.0
        %5192 = vmatmul.mubr.f32.gmra.mrb[0].mxu0 %v4663
        %v5193 = vpop.f32.mrb[0].mxu0
        %v5194 = vadd.f32 %v4925, %v5193
        %v5195 = vpop.f32.mrb[0].mxu0
        %5196 = vmatprep.mubr.f32.mxu0 0.0
        %5197 = vmatmul.mubr.f32.gmra.mrb[0].mxu0 %v4666
        %v5198 = vpop.f32.mrb[0].mxu0
        %v5199 = vadd.f32 %v4930, %v5198
        %v5200 = vpop.f32.mrb[0].mxu0
        %5201 = vmatprep.mubr.f32.mxu0 0.0
        %5202 = vmatmul.mubr.f32.gmra.mrb[0].mxu0 %v4669
        %v5203 = vpop.f32.mrb[0].mxu0
        %v5204 = vadd.f32 %v4935, %v5203
        %v5205 = vpop.f32.mrb[0].mxu0
        %5206 = vmatprep.mubr.f32.mxu0 0.0
        %5207 = vmatmul.mubr.f32.gmra.mrb[0].mxu0 %v4672
        %v5208 = vpop.f32.mrb[0].mxu0
        %v5209 = vadd.f32 %v4940, %v5208
        %v5210 = vpop.f32.mrb[0].mxu0
        %5211 = vdwg.mxu0
        %v5213 = vsel %vm4565, %v4559, 0
        %v5216 = vsel %vm4565, %v4560, 0
        %v5219 = vsel %vm4565, %v4561, 0
        %5221 = vmatprep.subr.mxu0 0.0
        %5222 = vmatpush1.msra.mxu0 %v288
        %5223 = vmatprep.subr.mxu0 0.0
        %5224 = vmatpush1.msra.mxu0 %v289
        %5225 = vmatprep.subr.mxu0 0.0
        %5226 = vmatpush1.msra.mxu0 %v290
        %5227 = vmatprep.subr.mxu0 0.0
        %5228 = vmatpush1.msra.mxu0 %v291
        %5229 = vmatprep.subr.mxu0 0.0
        %5230 = vmatpush1.msra.mxu0 %v292
        %5231 = vmatprep.subr.mxu0 0.0
        %5232 = vmatpush1.msra.mxu0 0.0
        %5233 = vmatprep.subr.mxu0 0.0
        %5234 = vmatpush1.msra.mxu0 0.0
        %5235 = vmatprep.subr.mxu0 0.0
        %5236 = vmatpush1.msra.mxu0 0.0
        %5237 = vmatprep.subr.mxu0 0.0
        %5238 = vmatpush1.msra.mxu0 0.0
        %5239 = vmatprep.subr.mxu0 0.0
        %5240 = vmatpush1.msra.mxu0 0.0
        %5241 = vmatprep.subr.mxu0 0.0
        %5242 = vmatpush1.msra.mxu0 0.0
        %5243 = vmatprep.subr.mxu0 0.0
        %5244 = vmatpush1.msra.mxu0 0.0
        %5245 = vmatprep.subr.mxu0 0.0
        %5246 = vmatpush1.msra.mxu0 0.0
        %5247 = vmatprep.subr.mxu0 0.0
        %5248 = vmatpush1.msra.mxu0 0.0
        %5249 = vmatprep.subr.mxu0 0.0
        %5250 = vmatpush1.msra.mxu0 0.0
        %5251 = vmatprep.subr.mxu0 0.0
        %5252 = vmatpush1.msra.mxu0 0.0
        %5253 = vmatprep.subr.mxu0 0.0
        %5254 = vmatpush1.msra.mxu0 0.0
        %5255 = vmatprep.subr.mxu0 0.0
        %5256 = vmatpush1.msra.mxu0 0.0
        %5257 = vmatprep.subr.mxu0 0.0
        %5258 = vmatpush1.msra.mxu0 0.0
        %5259 = vmatprep.subr.mxu0 0.0
        %5260 = vmatpush1.msra.mxu0 0.0
        %5261 = vmatprep.subr.mxu0 0.0
        %5262 = vmatpush1.msra.mxu0 0.0
        %5263 = vmatprep.subr.mxu0 0.0
        %5264 = vmatpush1.msra.mxu0 0.0
        %5265 = vmatprep.subr.mxu0 0.0
        %5266 = vmatpush1.msra.mxu0 0.0
        %5267 = vmatprep.subr.mxu0 0.0
        %5268 = vmatpush1.msra.mxu0 0.0
        %5269 = vmatprep.subr.mxu0 0.0
        %5270 = vmatpush1.msra.mxu0 0.0
        %5271 = vmatprep.subr.mxu0 0.0
        %5272 = vmatpush1.msra.mxu0 0.0
        %5273 = vmatprep.subr.mxu0 0.0
        %5274 = vmatpush1.msra.mxu0 0.0
        %5275 = vmatprep.subr.mxu0 0.0
        %5276 = vmatpush1.msra.mxu0 0.0
        %5277 = vmatprep.subr.mxu0 0.0
        %5278 = vmatpush1.msra.mxu0 0.0
        %5279 = vmatprep.subr.mxu0 0.0
        %5280 = vmatpush1.msra.mxu0 0.0
        %5281 = vmatprep.subr.mxu0 0.0
        %5282 = vmatpush1.msra.mxu0 0.0
        %5283 = vmatprep.subr.mxu0 0.0
        %5284 = vmatpush1.msra.mxu0 0.0
        %5285 = vmatprep.mubr.f32.mxu0 0.0
        %5286 = vmatmul.mubr.f32.gmra.mrb[0].mxu0 %v4576
        %v5287 = vpop.f32.mrb[0].mxu0
        %v5288 = vadd.f32 0.0, %v5287
        %v5289 = vpop.f32.mrb[0].mxu0
        %5290 = vmatprep.mubr.f32.mxu0 0.0
        %5291 = vmatmul.mubr.f32.gmra.mrb[0].mxu0 %v4579
        %v5292 = vpop.f32.mrb[0].mxu0
        %v5293 = vadd.f32 0.0, %v5292
        %v5294 = vpop.f32.mrb[0].mxu0
        %5295 = vmatprep.mubr.f32.mxu0 0.0
        %5296 = vmatmul.mubr.f32.gmra.mrb[0].mxu0 %v4582
        %v5297 = vpop.f32.mrb[0].mxu0
        %v5298 = vadd.f32 0.0, %v5297
        %v5299 = vpop.f32.mrb[0].mxu0
        %5300 = vmatprep.mubr.f32.mxu0 0.0
        %5301 = vmatmul.mubr.f32.gmra.mrb[0].mxu0 %v4585
        %v5302 = vpop.f32.mrb[0].mxu0
        %v5303 = vadd.f32 0.0, %v5302
        %v5304 = vpop.f32.mrb[0].mxu0
        %5305 = vmatprep.mubr.f32.mxu0 0.0
        %5306 = vmatmul.mubr.f32.gmra.mrb[0].mxu0 %v4588
        %v5307 = vpop.f32.mrb[0].mxu0
        %v5308 = vadd.f32 0.0, %v5307
        %v5309 = vpop.f32.mrb[0].mxu0
        %5310 = vmatprep.mubr.f32.mxu0 0.0
        %5311 = vmatmul.mubr.f32.gmra.mrb[0].mxu0 %v4591
        %v5312 = vpop.f32.mrb[0].mxu0
        %v5313 = vadd.f32 0.0, %v5312
        %v5314 = vpop.f32.mrb[0].mxu0
        %5315 = vmatprep.mubr.f32.mxu0 0.0
        %5316 = vmatmul.mubr.f32.gmra.mrb[0].mxu0 %v4594
        %v5317 = vpop.f32.mrb[0].mxu0
        %v5318 = vadd.f32 0.0, %v5317
        %v5319 = vpop.f32.mrb[0].mxu0
        %5320 = vmatprep.mubr.f32.mxu0 0.0
        %5321 = vmatmul.mubr.f32.gmra.mrb[0].mxu0 %v4597
        %v5322 = vpop.f32.mrb[0].mxu0
        %v5323 = vadd.f32 0.0, %v5322
        %v5324 = vpop.f32.mrb[0].mxu0
        %5325 = vmatprep.mubr.f32.mxu0 0.0
        %5326 = vmatmul.mubr.f32.gmra.mrb[0].mxu0 %v4600
        %v5327 = vpop.f32.mrb[0].mxu0
        %v5328 = vadd.f32 0.0, %v5327
        %v5329 = vpop.f32.mrb[0].mxu0
        %5330 = vmatprep.mubr.f32.mxu0 0.0
        %5331 = vmatmul.mubr.f32.gmra.mrb[0].mxu0 %v4603
        %v5332 = vpop.f32.mrb[0].mxu0
        %v5333 = vadd.f32 0.0, %v5332
        %v5334 = vpop.f32.mrb[0].mxu0
        %5335 = vmatprep.mubr.f32.mxu0 0.0
        %5336 = vmatmul.mubr.f32.gmra.mrb[0].mxu0 %v4606
        %v5337 = vpop.f32.mrb[0].mxu0
        %v5338 = vadd.f32 0.0, %v5337
        %v5339 = vpop.f32.mrb[0].mxu0
        %5340 = vmatprep.mubr.f32.mxu0 0.0
        %5341 = vmatmul.mubr.f32.gmra.mrb[0].mxu0 %v4609
        %v5342 = vpop.f32.mrb[0].mxu0
        %v5343 = vadd.f32 0.0, %v5342
        %v5344 = vpop.f32.mrb[0].mxu0
        %5345 = vmatprep.mubr.f32.mxu0 0.0
        %5346 = vmatmul.mubr.f32.gmra.mrb[0].mxu0 %v4612
        %v5347 = vpop.f32.mrb[0].mxu0
        %v5348 = vadd.f32 0.0, %v5347
        %v5349 = vpop.f32.mrb[0].mxu0
        %5350 = vmatprep.mubr.f32.mxu0 0.0
        %5351 = vmatmul.mubr.f32.gmra.mrb[0].mxu0 %v4615
        %v5352 = vpop.f32.mrb[0].mxu0
        %v5353 = vadd.f32 0.0, %v5352
        %v5354 = vpop.f32.mrb[0].mxu0
        %5355 = vmatprep.mubr.f32.mxu0 0.0
        %5356 = vmatmul.mubr.f32.gmra.mrb[0].mxu0 %v4618
        %v5357 = vpop.f32.mrb[0].mxu0
        %v5358 = vadd.f32 0.0, %v5357
        %v5359 = vpop.f32.mrb[0].mxu0
        %5360 = vmatprep.mubr.f32.mxu0 0.0
        %5361 = vmatmul.mubr.f32.gmra.mrb[0].mxu0 %v4621
        %v5362 = vpop.f32.mrb[0].mxu0
        %v5363 = vadd.f32 0.0, %v5362
        %v5364 = vpop.f32.mrb[0].mxu0
        %5365 = vmatprep.mubr.f32.mxu0 0.0
        %5366 = vmatmul.mubr.f32.gmra.mrb[0].mxu0 %v4624
        %v5367 = vpop.f32.mrb[0].mxu0
        %v5368 = vadd.f32 0.0, %v5367
        %v5369 = vpop.f32.mrb[0].mxu0
        %5370 = vmatprep.mubr.f32.mxu0 0.0
        %5371 = vmatmul.mubr.f32.gmra.mrb[0].mxu0 %v4627
        %v5372 = vpop.f32.mrb[0].mxu0
        %v5373 = vadd.f32 0.0, %v5372
        %v5374 = vpop.f32.mrb[0].mxu0
        %5375 = vmatprep.mubr.f32.mxu0 0.0
        %5376 = vmatmul.mubr.f32.gmra.mrb[0].mxu0 %v4630
        %v5377 = vpop.f32.mrb[0].mxu0
        %v5378 = vadd.f32 0.0, %v5377
        %v5379 = vpop.f32.mrb[0].mxu0
        %5380 = vmatprep.mubr.f32.mxu0 0.0
        %5381 = vmatmul.mubr.f32.gmra.mrb[0].mxu0 %v4633
        %v5382 = vpop.f32.mrb[0].mxu0
        %v5383 = vadd.f32 0.0, %v5382
        %v5384 = vpop.f32.mrb[0].mxu0
        %5385 = vmatprep.mubr.f32.mxu0 0.0
        %5386 = vmatmul.mubr.f32.gmra.mrb[0].mxu0 %v4636
        %v5387 = vpop.f32.mrb[0].mxu0
        %v5388 = vadd.f32 0.0, %v5387
        %v5389 = vpop.f32.mrb[0].mxu0
        %5390 = vmatprep.mubr.f32.mxu0 0.0
        %5391 = vmatmul.mubr.f32.gmra.mrb[0].mxu0 %v4639
        %v5392 = vpop.f32.mrb[0].mxu0
        %v5393 = vadd.f32 0.0, %v5392
        %v5394 = vpop.f32.mrb[0].mxu0
        %5395 = vmatprep.mubr.f32.mxu0 0.0
        %5396 = vmatmul.mubr.f32.gmra.mrb[0].mxu0 %v4642
        %v5397 = vpop.f32.mrb[0].mxu0
        %v5398 = vadd.f32 0.0, %v5397
        %v5399 = vpop.f32.mrb[0].mxu0
        %5400 = vmatprep.mubr.f32.mxu0 0.0
        %5401 = vmatmul.mubr.f32.gmra.mrb[0].mxu0 %v4645
        %v5402 = vpop.f32.mrb[0].mxu0
        %v5403 = vadd.f32 0.0, %v5402
        %v5404 = vpop.f32.mrb[0].mxu0
        %5405 = vmatprep.mubr.f32.mxu0 0.0
        %5406 = vmatmul.mubr.f32.gmra.mrb[0].mxu0 %v4648
        %v5407 = vpop.f32.mrb[0].mxu0
        %v5408 = vadd.f32 0.0, %v5407
        %v5409 = vpop.f32.mrb[0].mxu0
        %5410 = vmatprep.mubr.f32.mxu0 0.0
        %5411 = vmatmul.mubr.f32.gmra.mrb[0].mxu0 %v4651
        %v5412 = vpop.f32.mrb[0].mxu0
        %v5413 = vadd.f32 0.0, %v5412
        %v5414 = vpop.f32.mrb[0].mxu0
        %5415 = vmatprep.mubr.f32.mxu0 0.0
        %5416 = vmatmul.mubr.f32.gmra.mrb[0].mxu0 %v4654
        %v5417 = vpop.f32.mrb[0].mxu0
        %v5418 = vadd.f32 0.0, %v5417
        %v5419 = vpop.f32.mrb[0].mxu0
        %5420 = vmatprep.mubr.f32.mxu0 0.0
        %5421 = vmatmul.mubr.f32.gmra.mrb[0].mxu0 %v4657
        %v5422 = vpop.f32.mrb[0].mxu0
        %v5423 = vadd.f32 0.0, %v5422
        %v5424 = vpop.f32.mrb[0].mxu0
        %5425 = vmatprep.mubr.f32.mxu0 0.0
        %5426 = vmatmul.mubr.f32.gmra.mrb[0].mxu0 %v4660
        %v5427 = vpop.f32.mrb[0].mxu0
        %v5428 = vadd.f32 0.0, %v5427
        %v5429 = vpop.f32.mrb[0].mxu0
        %5430 = vmatprep.mubr.f32.mxu0 0.0
        %5431 = vmatmul.mubr.f32.gmra.mrb[0].mxu0 %v4663
        %v5432 = vpop.f32.mrb[0].mxu0
        %v5433 = vadd.f32 0.0, %v5432
        %v5434 = vpop.f32.mrb[0].mxu0
        %5435 = vmatprep.mubr.f32.mxu0 0.0
        %5436 = vmatmul.mubr.f32.gmra.mrb[0].mxu0 %v4666
        %v5437 = vpop.f32.mrb[0].mxu0
        %v5438 = vadd.f32 0.0, %v5437
        %v5439 = vpop.f32.mrb[0].mxu0
        %5440 = vmatprep.mubr.f32.mxu0 0.0
        %5441 = vmatmul.mubr.f32.gmra.mrb[0].mxu0 %v4669
        %v5442 = vpop.f32.mrb[0].mxu0
        %v5443 = vadd.f32 0.0, %v5442
        %v5444 = vpop.f32.mrb[0].mxu0
        %5445 = vmatprep.mubr.f32.mxu0 0.0
        %5446 = vmatmul.mubr.f32.gmra.mrb[0].mxu0 %v4672
        %v5447 = vpop.f32.mrb[0].mxu0
        %v5448 = vadd.f32 0.0, %v5447
        %v5449 = vpop.f32.mrb[0].mxu0
        %5450 = vmatprep.mubr.f32.mxu0 0.0
        %5451 = vmatmul.mubr.f32.gmra.mrb[0].mxu0 %v4675
        %v5452 = vpop.f32.mrb[0].mxu0
        %v5453 = vadd.f32 0.0, %v5452
        %v5454 = vpop.f32.mrb[0].mxu0
        %5455 = vmatprep.mubr.f32.mxu0 0.0
        %5456 = vmatmul.mubr.f32.gmra.mrb[0].mxu0 %v4678
        %v5457 = vpop.f32.mrb[0].mxu0
        %v5458 = vadd.f32 0.0, %v5457
        %v5459 = vpop.f32.mrb[0].mxu0
        %5460 = vmatprep.mubr.f32.mxu0 0.0
        %5461 = vmatmul.mubr.f32.gmra.mrb[0].mxu0 %v4681
        %v5462 = vpop.f32.mrb[0].mxu0
        %v5463 = vadd.f32 0.0, %v5462
        %v5464 = vpop.f32.mrb[0].mxu0
        %5465 = vmatprep.mubr.f32.mxu0 0.0
        %5466 = vmatmul.mubr.f32.gmra.mrb[0].mxu0 %v5213
        %v5467 = vpop.f32.mrb[0].mxu0
        %v5468 = vadd.f32 0.0, %v5467
        %v5469 = vpop.f32.mrb[0].mxu0
        %5470 = vmatprep.mubr.f32.mxu0 0.0
        %5471 = vmatmul.mubr.f32.gmra.mrb[0].mxu0 %v5216
        %v5472 = vpop.f32.mrb[0].mxu0
        %v5473 = vadd.f32 0.0, %v5472
        %v5474 = vpop.f32.mrb[0].mxu0
        %5475 = vmatprep.mubr.f32.mxu0 0.0
        %5476 = vmatmul.mubr.f32.gmra.mrb[0].mxu0 %v5219
        %v5477 = vpop.f32.mrb[0].mxu0
        %v5478 = vadd.f32 0.0, %v5477
        %v5479 = vpop.f32.mrb[0].mxu0
        %5480 = vdwg.mxu0
        %v5481 = vadd.f32 %v5019, %v5288
        %v5482 = vadd.f32 %v5024, %v5293
        %v5483 = vadd.f32 %v5029, %v5298
        %v5484 = vadd.f32 %v5034, %v5303
        %v5485 = vadd.f32 %v5039, %v5308
        %v5486 = vadd.f32 %v5044, %v5313
        %v5487 = vadd.f32 %v5049, %v5318
        %v5488 = vadd.f32 %v5054, %v5323
        %v5489 = vadd.f32 %v5059, %v5328
        %v5490 = vadd.f32 %v5064, %v5333
        %v5491 = vadd.f32 %v5069, %v5338
        %v5492 = vadd.f32 %v5074, %v5343
        %v5493 = vadd.f32 %v5079, %v5348
        %v5494 = vadd.f32 %v5084, %v5353
        %v5495 = vadd.f32 %v5089, %v5358
        %v5496 = vadd.f32 %v5094, %v5363
        %v5497 = vadd.f32 %v5099, %v5368
        %v5498 = vadd.f32 %v5104, %v5373
        %v5499 = vadd.f32 %v5109, %v5378
        %v5500 = vadd.f32 %v5114, %v5383
        %v5501 = vadd.f32 %v5119, %v5388
        %v5502 = vadd.f32 %v5124, %v5393
        %v5503 = vadd.f32 %v5129, %v5398
        %v5504 = vadd.f32 %v5134, %v5403
        %v5505 = vadd.f32 %v5139, %v5408
        %v5506 = vadd.f32 %v5144, %v5413
        %v5507 = vadd.f32 %v5149, %v5418
        %v5508 = vadd.f32 %v5154, %v5423
        %v5509 = vadd.f32 %v5159, %v5428
        %v5510 = vadd.f32 %v5164, %v5433
        %v5511 = vadd.f32 %v5169, %v5438
        %v5512 = vadd.f32 %v5174, %v5443
        %v5513 = vadd.f32 %v5179, %v5448
        %v5514 = vadd.f32 %v5184, %v5453
        %v5515 = vadd.f32 %v5189, %v5458
        %v5516 = vadd.f32 %v5194, %v5463
        %v5517 = vadd.f32 %v5199, %v5468
        %v5518 = vadd.f32 %v5204, %v5473
        %v5519 = vadd.f32 %v5209, %v5478
        %v5521 = vsel %vm4565, %v4562, 0
        %v5524 = vsel %vm4565, %v4563, 0
        %v5527 = vsel %vm4565, %v4564, 0
        %5529 = vmatprep.subr.mxu0 0.0
        %5530 = vmatpush1.msra.mxu0 %v293
        %5531 = vmatprep.subr.mxu0 0.0
        %5532 = vmatpush1.msra.mxu0 %v294
        %5533 = vmatprep.subr.mxu0 0.0
        %5534 = vmatpush1.msra.mxu0 %v295
        %5535 = vmatprep.subr.mxu0 0.0
        %5536 = vmatpush1.msra.mxu0 %v296
        %5537 = vmatprep.subr.mxu0 0.0
        %5538 = vmatpush1.msra.mxu0 %v297
        %5539 = vmatprep.subr.mxu0 0.0
        %5540 = vmatpush1.msra.mxu0 0.0
        %5541 = vmatprep.subr.mxu0 0.0
        %5542 = vmatpush1.msra.mxu0 0.0
        %5543 = vmatprep.subr.mxu0 0.0
        %5544 = vmatpush1.msra.mxu0 0.0
        %5545 = vmatprep.subr.mxu0 0.0
        %5546 = vmatpush1.msra.mxu0 0.0
        %5547 = vmatprep.subr.mxu0 0.0
        %5548 = vmatpush1.msra.mxu0 0.0
        %5549 = vmatprep.subr.mxu0 0.0
        %5550 = vmatpush1.msra.mxu0 0.0
        %5551 = vmatprep.subr.mxu0 0.0
        %5552 = vmatpush1.msra.mxu0 0.0
        %5553 = vmatprep.subr.mxu0 0.0
        %5554 = vmatpush1.msra.mxu0 0.0
        %5555 = vmatprep.subr.mxu0 0.0
        %5556 = vmatpush1.msra.mxu0 0.0
        %5557 = vmatprep.subr.mxu0 0.0
        %5558 = vmatpush1.msra.mxu0 0.0
        %5559 = vmatprep.subr.mxu0 0.0
        %5560 = vmatpush1.msra.mxu0 0.0
        %5561 = vmatprep.subr.mxu0 0.0
        %5562 = vmatpush1.msra.mxu0 0.0
        %5563 = vmatprep.subr.mxu0 0.0
        %5564 = vmatpush1.msra.mxu0 0.0
        %5565 = vmatprep.subr.mxu0 0.0
        %5566 = vmatpush1.msra.mxu0 0.0
        %5567 = vmatprep.subr.mxu0 0.0
        %5568 = vmatpush1.msra.mxu0 0.0
        %5569 = vmatprep.subr.mxu0 0.0
        %5570 = vmatpush1.msra.mxu0 0.0
        %5571 = vmatprep.subr.mxu0 0.0
        %5572 = vmatpush1.msra.mxu0 0.0
        %5573 = vmatprep.subr.mxu0 0.0
        %5574 = vmatpush1.msra.mxu0 0.0
        %5575 = vmatprep.subr.mxu0 0.0
        %5576 = vmatpush1.msra.mxu0 0.0
        %5577 = vmatprep.subr.mxu0 0.0
        %5578 = vmatpush1.msra.mxu0 0.0
        %5579 = vmatprep.subr.mxu0 0.0
        %5580 = vmatpush1.msra.mxu0 0.0
        %5581 = vmatprep.subr.mxu0 0.0
        %5582 = vmatpush1.msra.mxu0 0.0
        %5583 = vmatprep.subr.mxu0 0.0
        %5584 = vmatpush1.msra.mxu0 0.0
        %5585 = vmatprep.subr.mxu0 0.0
        %5586 = vmatpush1.msra.mxu0 0.0
        %5587 = vmatprep.subr.mxu0 0.0
        %5588 = vmatpush1.msra.mxu0 0.0
        %5589 = vmatprep.subr.mxu0 0.0
        %5590 = vmatpush1.msra.mxu0 0.0
        %5591 = vmatprep.subr.mxu0 0.0
        %5592 = vmatpush1.msra.mxu0 0.0
        %5593 = vmatprep.mubr.f32.mxu0 0.0
        %5594 = vmatmul.mubr.f32.gmra.mrb[0].mxu0 %v4585
        %v5595 = vpop.f32.mrb[0].mxu0
        %v5596 = vadd.f32 0.0, %v5595
        %v5597 = vpop.f32.mrb[0].mxu0
        %5598 = vmatprep.mubr.f32.mxu0 0.0
        %5599 = vmatmul.mubr.f32.gmra.mrb[0].mxu0 %v4588
        %v5600 = vpop.f32.mrb[0].mxu0
        %v5601 = vadd.f32 0.0, %v5600
        %v5602 = vpop.f32.mrb[0].mxu0
        %5603 = vmatprep.mubr.f32.mxu0 0.0
        %5604 = vmatmul.mubr.f32.gmra.mrb[0].mxu0 %v4591
        %v5605 = vpop.f32.mrb[0].mxu0
        %v5606 = vadd.f32 0.0, %v5605
        %v5607 = vpop.f32.mrb[0].mxu0
        %5608 = vmatprep.mubr.f32.mxu0 0.0
        %5609 = vmatmul.mubr.f32.gmra.mrb[0].mxu0 %v4594
        %v5610 = vpop.f32.mrb[0].mxu0
        %v5611 = vadd.f32 0.0, %v5610
        %v5612 = vpop.f32.mrb[0].mxu0
        %5613 = vmatprep.mubr.f32.mxu0 0.0
        %5614 = vmatmul.mubr.f32.gmra.mrb[0].mxu0 %v4597
        %v5615 = vpop.f32.mrb[0].mxu0
        %v5616 = vadd.f32 0.0, %v5615
        %v5617 = vpop.f32.mrb[0].mxu0
        %5618 = vmatprep.mubr.f32.mxu0 0.0
        %5619 = vmatmul.mubr.f32.gmra.mrb[0].mxu0 %v4600
        %v5620 = vpop.f32.mrb[0].mxu0
        %v5621 = vadd.f32 0.0, %v5620
        %v5622 = vpop.f32.mrb[0].mxu0
        %5623 = vmatprep.mubr.f32.mxu0 0.0
        %5624 = vmatmul.mubr.f32.gmra.mrb[0].mxu0 %v4603
        %v5625 = vpop.f32.mrb[0].mxu0
        %v5626 = vadd.f32 0.0, %v5625
        %v5627 = vpop.f32.mrb[0].mxu0
        %5628 = vmatprep.mubr.f32.mxu0 0.0
        %5629 = vmatmul.mubr.f32.gmra.mrb[0].mxu0 %v4606
        %v5630 = vpop.f32.mrb[0].mxu0
        %v5631 = vadd.f32 0.0, %v5630
        %v5632 = vpop.f32.mrb[0].mxu0
        %5633 = vmatprep.mubr.f32.mxu0 0.0
        %5634 = vmatmul.mubr.f32.gmra.mrb[0].mxu0 %v4609
        %v5635 = vpop.f32.mrb[0].mxu0
        %v5636 = vadd.f32 0.0, %v5635
        %v5637 = vpop.f32.mrb[0].mxu0
        %5638 = vmatprep.mubr.f32.mxu0 0.0
        %5639 = vmatmul.mubr.f32.gmra.mrb[0].mxu0 %v4612
        %v5640 = vpop.f32.mrb[0].mxu0
        %v5641 = vadd.f32 0.0, %v5640
        %v5642 = vpop.f32.mrb[0].mxu0
        %5643 = vmatprep.mubr.f32.mxu0 0.0
        %5644 = vmatmul.mubr.f32.gmra.mrb[0].mxu0 %v4615
        %v5645 = vpop.f32.mrb[0].mxu0
        %v5646 = vadd.f32 0.0, %v5645
        %v5647 = vpop.f32.mrb[0].mxu0
        %5648 = vmatprep.mubr.f32.mxu0 0.0
        %5649 = vmatmul.mubr.f32.gmra.mrb[0].mxu0 %v4618
        %v5650 = vpop.f32.mrb[0].mxu0
        %v5651 = vadd.f32 0.0, %v5650
        %v5652 = vpop.f32.mrb[0].mxu0
        %5653 = vmatprep.mubr.f32.mxu0 0.0
        %5654 = vmatmul.mubr.f32.gmra.mrb[0].mxu0 %v4621
        %v5655 = vpop.f32.mrb[0].mxu0
        %v5656 = vadd.f32 0.0, %v5655
        %v5657 = vpop.f32.mrb[0].mxu0
        %5658 = vmatprep.mubr.f32.mxu0 0.0
        %5659 = vmatmul.mubr.f32.gmra.mrb[0].mxu0 %v4624
        %v5660 = vpop.f32.mrb[0].mxu0
        %v5661 = vadd.f32 0.0, %v5660
        %v5662 = vpop.f32.mrb[0].mxu0
        %5663 = vmatprep.mubr.f32.mxu0 0.0
        %5664 = vmatmul.mubr.f32.gmra.mrb[0].mxu0 %v4627
        %v5665 = vpop.f32.mrb[0].mxu0
        %v5666 = vadd.f32 0.0, %v5665
        %v5667 = vpop.f32.mrb[0].mxu0
        %5668 = vmatprep.mubr.f32.mxu0 0.0
        %5669 = vmatmul.mubr.f32.gmra.mrb[0].mxu0 %v4630
        %v5670 = vpop.f32.mrb[0].mxu0
        %v5671 = vadd.f32 0.0, %v5670
        %v5672 = vpop.f32.mrb[0].mxu0
        %5673 = vmatprep.mubr.f32.mxu0 0.0
        %5674 = vmatmul.mubr.f32.gmra.mrb[0].mxu0 %v4633
        %v5675 = vpop.f32.mrb[0].mxu0
        %v5676 = vadd.f32 0.0, %v5675
        %v5677 = vpop.f32.mrb[0].mxu0
        %5678 = vmatprep.mubr.f32.mxu0 0.0
        %5679 = vmatmul.mubr.f32.gmra.mrb[0].mxu0 %v4636
        %v5680 = vpop.f32.mrb[0].mxu0
        %v5681 = vadd.f32 0.0, %v5680
        %v5682 = vpop.f32.mrb[0].mxu0
        %5683 = vmatprep.mubr.f32.mxu0 0.0
        %5684 = vmatmul.mubr.f32.gmra.mrb[0].mxu0 %v4639
        %v5685 = vpop.f32.mrb[0].mxu0
        %v5686 = vadd.f32 0.0, %v5685
        %v5687 = vpop.f32.mrb[0].mxu0
        %5688 = vmatprep.mubr.f32.mxu0 0.0
        %5689 = vmatmul.mubr.f32.gmra.mrb[0].mxu0 %v4642
        %v5690 = vpop.f32.mrb[0].mxu0
        %v5691 = vadd.f32 0.0, %v5690
        %v5692 = vpop.f32.mrb[0].mxu0
        %5693 = vmatprep.mubr.f32.mxu0 0.0
        %5694 = vmatmul.mubr.f32.gmra.mrb[0].mxu0 %v4645
        %v5695 = vpop.f32.mrb[0].mxu0
        %v5696 = vadd.f32 0.0, %v5695
        %v5697 = vpop.f32.mrb[0].mxu0
        %5698 = vmatprep.mubr.f32.mxu0 0.0
        %5699 = vmatmul.mubr.f32.gmra.mrb[0].mxu0 %v4648
        %v5700 = vpop.f32.mrb[0].mxu0
        %v5701 = vadd.f32 0.0, %v5700
        %v5702 = vpop.f32.mrb[0].mxu0
        %5703 = vmatprep.mubr.f32.mxu0 0.0
        %5704 = vmatmul.mubr.f32.gmra.mrb[0].mxu0 %v4651
        %v5705 = vpop.f32.mrb[0].mxu0
        %v5706 = vadd.f32 0.0, %v5705
        %v5707 = vpop.f32.mrb[0].mxu0
        %5708 = vmatprep.mubr.f32.mxu0 0.0
        %5709 = vmatmul.mubr.f32.gmra.mrb[0].mxu0 %v4654
        %v5710 = vpop.f32.mrb[0].mxu0
        %v5711 = vadd.f32 0.0, %v5710
        %v5712 = vpop.f32.mrb[0].mxu0
        %5713 = vmatprep.mubr.f32.mxu0 0.0
        %5714 = vmatmul.mubr.f32.gmra.mrb[0].mxu0 %v4657
        %v5715 = vpop.f32.mrb[0].mxu0
        %v5716 = vadd.f32 0.0, %v5715
        %v5717 = vpop.f32.mrb[0].mxu0
        %5718 = vmatprep.mubr.f32.mxu0 0.0
        %5719 = vmatmul.mubr.f32.gmra.mrb[0].mxu0 %v4660
        %v5720 = vpop.f32.mrb[0].mxu0
        %v5721 = vadd.f32 0.0, %v5720
        %v5722 = vpop.f32.mrb[0].mxu0
        %5723 = vmatprep.mubr.f32.mxu0 0.0
        %5724 = vmatmul.mubr.f32.gmra.mrb[0].mxu0 %v4663
        %v5725 = vpop.f32.mrb[0].mxu0
        %v5726 = vadd.f32 0.0, %v5725
        %v5727 = vpop.f32.mrb[0].mxu0
        %5728 = vmatprep.mubr.f32.mxu0 0.0
        %5729 = vmatmul.mubr.f32.gmra.mrb[0].mxu0 %v4666
        %v5730 = vpop.f32.mrb[0].mxu0
        %v5731 = vadd.f32 0.0, %v5730
        %v5732 = vpop.f32.mrb[0].mxu0
        %5733 = vmatprep.mubr.f32.mxu0 0.0
        %5734 = vmatmul.mubr.f32.gmra.mrb[0].mxu0 %v4669
        %v5735 = vpop.f32.mrb[0].mxu0
        %v5736 = vadd.f32 0.0, %v5735
        %v5737 = vpop.f32.mrb[0].mxu0
        %5738 = vmatprep.mubr.f32.mxu0 0.0
        %5739 = vmatmul.mubr.f32.gmra.mrb[0].mxu0 %v4672
        %v5740 = vpop.f32.mrb[0].mxu0
        %v5741 = vadd.f32 0.0, %v5740
        %v5742 = vpop.f32.mrb[0].mxu0
        %5743 = vmatprep.mubr.f32.mxu0 0.0
        %5744 = vmatmul.mubr.f32.gmra.mrb[0].mxu0 %v4675
        %v5745 = vpop.f32.mrb[0].mxu0
        %v5746 = vadd.f32 0.0, %v5745
        %v5747 = vpop.f32.mrb[0].mxu0
        %5748 = vmatprep.mubr.f32.mxu0 0.0
        %5749 = vmatmul.mubr.f32.gmra.mrb[0].mxu0 %v4678
        %v5750 = vpop.f32.mrb[0].mxu0
        %v5751 = vadd.f32 0.0, %v5750
        %v5752 = vpop.f32.mrb[0].mxu0
        %5753 = vmatprep.mubr.f32.mxu0 0.0
        %5754 = vmatmul.mubr.f32.gmra.mrb[0].mxu0 %v4681
        %v5755 = vpop.f32.mrb[0].mxu0
        %v5756 = vadd.f32 0.0, %v5755
        %v5757 = vpop.f32.mrb[0].mxu0
        %5758 = vmatprep.mubr.f32.mxu0 0.0
        %5759 = vmatmul.mubr.f32.gmra.mrb[0].mxu0 %v5213
        %v5760 = vpop.f32.mrb[0].mxu0
        %v5761 = vadd.f32 0.0, %v5760
        %v5762 = vpop.f32.mrb[0].mxu0
        %5763 = vmatprep.mubr.f32.mxu0 0.0
        %5764 = vmatmul.mubr.f32.gmra.mrb[0].mxu0 %v5216
        %v5765 = vpop.f32.mrb[0].mxu0
        %v5766 = vadd.f32 0.0, %v5765
        %v5767 = vpop.f32.mrb[0].mxu0
        %5768 = vmatprep.mubr.f32.mxu0 0.0
        %5769 = vmatmul.mubr.f32.gmra.mrb[0].mxu0 %v5219
        %v5770 = vpop.f32.mrb[0].mxu0
        %v5771 = vadd.f32 0.0, %v5770
        %v5772 = vpop.f32.mrb[0].mxu0
        %5773 = vmatprep.mubr.f32.mxu0 0.0
        %5774 = vmatmul.mubr.f32.gmra.mrb[0].mxu0 %v5521
        %v5775 = vpop.f32.mrb[0].mxu0
        %v5776 = vadd.f32 0.0, %v5775
        %v5777 = vpop.f32.mrb[0].mxu0
        %5778 = vmatprep.mubr.f32.mxu0 0.0
        %5779 = vmatmul.mubr.f32.gmra.mrb[0].mxu0 %v5524
        %v5780 = vpop.f32.mrb[0].mxu0
        %v5781 = vadd.f32 0.0, %v5780
        %v5782 = vpop.f32.mrb[0].mxu0
        %5783 = vmatprep.mubr.f32.mxu0 0.0
        %5784 = vmatmul.mubr.f32.gmra.mrb[0].mxu0 %v5527
        %v5785 = vpop.f32.mrb[0].mxu0
        %v5786 = vadd.f32 0.0, %v5785
        %v5787 = vpop.f32.mrb[0].mxu0
        %5788 = vdwg.mxu0
        %v5789 = vadd.f32 %v5481, %v5596
        %v5790 = vadd.f32 %v5482, %v5601
        %v5791 = vadd.f32 %v5483, %v5606
        %v5792 = vadd.f32 %v5484, %v5611
        %v5793 = vadd.f32 %v5485, %v5616
        %v5794 = vadd.f32 %v5486, %v5621
        %v5795 = vadd.f32 %v5487, %v5626
        %v5796 = vadd.f32 %v5488, %v5631
        %v5797 = vadd.f32 %v5489, %v5636
        %v5798 = vadd.f32 %v5490, %v5641
        %v5799 = vadd.f32 %v5491, %v5646
        %v5800 = vadd.f32 %v5492, %v5651
        %v5801 = vadd.f32 %v5493, %v5656
        %v5802 = vadd.f32 %v5494, %v5661
        %v5803 = vadd.f32 %v5495, %v5666
        %v5804 = vadd.f32 %v5496, %v5671
        %v5805 = vadd.f32 %v5497, %v5676
        %v5806 = vadd.f32 %v5498, %v5681
        %v5807 = vadd.f32 %v5499, %v5686
        %v5808 = vadd.f32 %v5500, %v5691
        %v5809 = vadd.f32 %v5501, %v5696
        %v5810 = vadd.f32 %v5502, %v5701
        %v5811 = vadd.f32 %v5503, %v5706
        %v5812 = vadd.f32 %v5504, %v5711
        %v5813 = vadd.f32 %v5505, %v5716
        %v5814 = vadd.f32 %v5506, %v5721
        %v5815 = vadd.f32 %v5507, %v5726
        %v5816 = vadd.f32 %v5508, %v5731
        %v5817 = vadd.f32 %v5509, %v5736
        %v5818 = vadd.f32 %v5510, %v5741
        %v5819 = vadd.f32 %v5511, %v5746
        %v5820 = vadd.f32 %v5512, %v5751
        %v5821 = vadd.f32 %v5513, %v5756
        %v5822 = vadd.f32 %v5514, %v5761
        %v5823 = vadd.f32 %v5515, %v5766
        %v5824 = vadd.f32 %v5516, %v5771
        %v5825 = vadd.f32 %v5517, %v5776
        %v5826 = vadd.f32 %v5518, %v5781
        %v5827 = vadd.f32 %v5519, %v5786
        %v5828 = vld [vmem:[%s3] sm:$0x1]
        %v5830 = vlaneseq
        %v5831 = vshrl.u32 %v5830, 7
        %v5832 = vsub.s32 0, %v5831
        %v5833 = vrot.slane %v5828, %v5832
        %v5835 = vmul.f32 %v5789, %v5833
        %v5836 = vmul.f32 %v5790, %v5833
        %v5837 = vmul.f32 %v5791, %v5833
        %v5838 = vmul.f32 %v5792, %v5833
        %v5839 = vmul.f32 %v5793, %v5833
        %v5840 = vmul.f32 %v5794, %v5833
        %v5841 = vmul.f32 %v5795, %v5833
        %v5842 = vmul.f32 %v5796, %v5833
        %v5843 = vmul.f32 %v5797, %v5833
        %v5844 = vmul.f32 %v5798, %v5833
        %v5845 = vmul.f32 %v5799, %v5833
        %v5846 = vmul.f32 %v5800, %v5833
        %v5847 = vmul.f32 %v5801, %v5833
        %v5848 = vmul.f32 %v5802, %v5833
        %v5849 = vmul.f32 %v5803, %v5833
        %v5850 = vmul.f32 %v5804, %v5833
        %v5851 = vmul.f32 %v5805, %v5833
        %v5852 = vmul.f32 %v5806, %v5833
        %v5853 = vmul.f32 %v5807, %v5833
        %v5854 = vmul.f32 %v5808, %v5833
        %v5855 = vmul.f32 %v5809, %v5833
        %v5856 = vmul.f32 %v5810, %v5833
        %v5857 = vmul.f32 %v5811, %v5833
        %v5858 = vmul.f32 %v5812, %v5833
        %v5859 = vmul.f32 %v5813, %v5833
        %v5860 = vmul.f32 %v5814, %v5833
        %v5861 = vmul.f32 %v5815, %v5833
        %v5862 = vmul.f32 %v5816, %v5833
        %v5863 = vmul.f32 %v5817, %v5833
        %v5864 = vmul.f32 %v5818, %v5833
        %v5865 = vmul.f32 %v5819, %v5833
        %v5866 = vmul.f32 %v5820, %v5833
        %v5867 = vmul.f32 %v5821, %v5833
        %v5868 = vmul.f32 %v5822, %v5833
        %v5869 = vmul.f32 %v5823, %v5833
        %v5870 = vmul.f32 %v5824, %v5833
        %v5871 = vmul.f32 %v5825, %v5833
        %v5872 = vmul.f32 %v5826, %v5833
        %v5873 = vmul.f32 %v5827, %v5833
        %v5874 = vld [vmem:[%s4] sm:$0x1]
        %v5876 = vlaneseq
        %v5877 = vshrl.u32 %v5876, 7
        %v5878 = vsub.s32 0, %v5877
        %v5879 = vrot.slane %v5874, %v5878
        %v5881 = vadd.f32 %v5835, %v5879
        %v5882 = vadd.f32 %v5836, %v5879
        %v5883 = vadd.f32 %v5837, %v5879
        %v5884 = vadd.f32 %v5838, %v5879
        %v5885 = vadd.f32 %v5839, %v5879
        %v5886 = vadd.f32 %v5840, %v5879
        %v5887 = vadd.f32 %v5841, %v5879
        %v5888 = vadd.f32 %v5842, %v5879
        %v5889 = vadd.f32 %v5843, %v5879
        %v5890 = vadd.f32 %v5844, %v5879
        %v5891 = vadd.f32 %v5845, %v5879
        %v5892 = vadd.f32 %v5846, %v5879
        %v5893 = vadd.f32 %v5847, %v5879
        %v5894 = vadd.f32 %v5848, %v5879
        %v5895 = vadd.f32 %v5849, %v5879
        %v5896 = vadd.f32 %v5850, %v5879
        %v5897 = vadd.f32 %v5851, %v5879
        %v5898 = vadd.f32 %v5852, %v5879
        %v5899 = vadd.f32 %v5853, %v5879
        %v5900 = vadd.f32 %v5854, %v5879
        %v5901 = vadd.f32 %v5855, %v5879
        %v5902 = vadd.f32 %v5856, %v5879
        %v5903 = vadd.f32 %v5857, %v5879
        %v5904 = vadd.f32 %v5858, %v5879
        %v5905 = vadd.f32 %v5859, %v5879
        %v5906 = vadd.f32 %v5860, %v5879
        %v5907 = vadd.f32 %v5861, %v5879
        %v5908 = vadd.f32 %v5862, %v5879
        %v5909 = vadd.f32 %v5863, %v5879
        %v5910 = vadd.f32 %v5864, %v5879
        %v5911 = vadd.f32 %v5865, %v5879
        %v5912 = vadd.f32 %v5866, %v5879
        %v5913 = vadd.f32 %v5867, %v5879
        %v5914 = vadd.f32 %v5868, %v5879
        %v5915 = vadd.f32 %v5869, %v5879
        %v5916 = vadd.f32 %v5870, %v5879
        %v5917 = vadd.f32 %v5871, %v5879
        %v5918 = vadd.f32 %v5872, %v5879
        %v5919 = vadd.f32 %v5873, %v5879
        %v5920 = vmul.f32 %v5881, %v5881
        %v5921 = vmul.f32 %v5882, %v5882
        %v5922 = vmul.f32 %v5883, %v5883
        %v5923 = vmul.f32 %v5884, %v5884
        %v5924 = vmul.f32 %v5885, %v5885
        %v5925 = vmul.f32 %v5886, %v5886
        %v5926 = vmul.f32 %v5887, %v5887
        %v5927 = vmul.f32 %v5888, %v5888
        %v5928 = vmul.f32 %v5889, %v5889
        %v5929 = vmul.f32 %v5890, %v5890
        %v5930 = vmul.f32 %v5891, %v5891
        %v5931 = vmul.f32 %v5892, %v5892
        %v5932 = vmul.f32 %v5893, %v5893
        %v5933 = vmul.f32 %v5894, %v5894
        %v5934 = vmul.f32 %v5895, %v5895
        %v5935 = vmul.f32 %v5896, %v5896
        %v5936 = vmul.f32 %v5897, %v5897
        %v5937 = vmul.f32 %v5898, %v5898
        %v5938 = vmul.f32 %v5899, %v5899
        %v5939 = vmul.f32 %v5900, %v5900
        %v5940 = vmul.f32 %v5901, %v5901
        %v5941 = vmul.f32 %v5902, %v5902
        %v5942 = vmul.f32 %v5903, %v5903
        %v5943 = vmul.f32 %v5904, %v5904
        %v5944 = vmul.f32 %v5905, %v5905
        %v5945 = vmul.f32 %v5906, %v5906
        %v5946 = vmul.f32 %v5907, %v5907
        %v5947 = vmul.f32 %v5908, %v5908
        %v5948 = vmul.f32 %v5909, %v5909
        %v5949 = vmul.f32 %v5910, %v5910
        %v5950 = vmul.f32 %v5911, %v5911
        %v5951 = vmul.f32 %v5912, %v5912
        %v5952 = vmul.f32 %v5913, %v5913
        %v5953 = vmul.f32 %v5914, %v5914
        %v5954 = vmul.f32 %v5915, %v5915
        %v5955 = vmul.f32 %v5916, %v5916
        %v5956 = vmul.f32 %v5917, %v5917
        %v5957 = vmul.f32 %v5918, %v5918
        %v5958 = vmul.f32 %v5919, %v5919
        %v5998 = vrot.slane %v5920, 1
        %v5999 = vrot.slane %v5921, 1
        %v6000 = vsel %vm850, %v5998, %v5999
        %v6001 = vrot.slane %v5922, 1
        %v6002 = vsel %vm850, %v5999, %v6001
        %v6003 = vrot.slane %v5923, 1
        %v6004 = vrot.slane %v5924, 1
        %v6005 = vsel %vm850, %v6003, %v6004
        %v6006 = vrot.slane %v5925, 1
        %v6007 = vsel %vm850, %v6004, %v6006
        %v6008 = vrot.slane %v5926, 1
        %v6009 = vrot.slane %v5927, 1
        %v6010 = vsel %vm850, %v6008, %v6009
        %v6011 = vrot.slane %v5928, 1
        %v6012 = vsel %vm850, %v6009, %v6011
        %v6013 = vrot.slane %v5929, 1
        %v6014 = vrot.slane %v5930, 1
        %v6015 = vsel %vm850, %v6013, %v6014
        %v6016 = vrot.slane %v5931, 1
        %v6017 = vsel %vm850, %v6014, %v6016
        %v6018 = vrot.slane %v5932, 1
        %v6019 = vrot.slane %v5933, 1
        %v6020 = vsel %vm850, %v6018, %v6019
        %v6021 = vrot.slane %v5934, 1
        %v6022 = vsel %vm850, %v6019, %v6021
        %v6023 = vrot.slane %v5935, 1
        %v6024 = vrot.slane %v5936, 1
        %v6025 = vsel %vm850, %v6023, %v6024
        %v6026 = vrot.slane %v5937, 1
        %v6027 = vsel %vm850, %v6024, %v6026
        %v6028 = vrot.slane %v5938, 1
        %v6029 = vrot.slane %v5939, 1
        %v6030 = vsel %vm850, %v6028, %v6029
        %v6031 = vrot.slane %v5940, 1
        %v6032 = vsel %vm850, %v6029, %v6031
        %v6033 = vrot.slane %v5941, 1
        %v6034 = vrot.slane %v5942, 1
        %v6035 = vsel %vm850, %v6033, %v6034
        %v6036 = vrot.slane %v5943, 1
        %v6037 = vsel %vm850, %v6034, %v6036
        %v6038 = vrot.slane %v5944, 1
        %v6039 = vrot.slane %v5945, 1
        %v6040 = vsel %vm850, %v6038, %v6039
        %v6041 = vrot.slane %v5946, 1
        %v6042 = vsel %vm850, %v6039, %v6041
        %v6043 = vrot.slane %v5947, 1
        %v6044 = vrot.slane %v5948, 1
        %v6045 = vsel %vm850, %v6043, %v6044
        %v6046 = vrot.slane %v5949, 1
        %v6047 = vsel %vm850, %v6044, %v6046
        %v6048 = vrot.slane %v5950, 1
        %v6049 = vrot.slane %v5951, 1
        %v6050 = vsel %vm850, %v6048, %v6049
        %v6051 = vrot.slane %v5952, 1
        %v6052 = vsel %vm850, %v6049, %v6051
        %v6053 = vrot.slane %v5953, 1
        %v6054 = vrot.slane %v5954, 1
        %v6055 = vsel %vm850, %v6053, %v6054
        %v6056 = vrot.slane %v5955, 1
        %v6057 = vsel %vm850, %v6054, %v6056
        %v6058 = vrot.slane %v5956, 1
        %v6059 = vrot.slane %v5957, 1
        %v6060 = vsel %vm850, %v6058, %v6059
        %v6061 = vrot.slane %v5958, 1
        %v6062 = vsel %vm850, %v6059, %v6061
        %v6102 = vadd.f32 %v5920, %v6000
        %v6103 = vadd.f32 %v5921, %v6002
        %v6104 = vadd.f32 %v5922, %v6001
        %v6105 = vadd.f32 %v5923, %v6005
        %v6106 = vadd.f32 %v5924, %v6007
        %v6107 = vadd.f32 %v5925, %v6006
        %v6108 = vadd.f32 %v5926, %v6010
        %v6109 = vadd.f32 %v5927, %v6012
        %v6110 = vadd.f32 %v5928, %v6011
        %v6111 = vadd.f32 %v5929, %v6015
        %v6112 = vadd.f32 %v5930, %v6017
        %v6113 = vadd.f32 %v5931, %v6016
        %v6114 = vadd.f32 %v5932, %v6020
        %v6115 = vadd.f32 %v5933, %v6022
        %v6116 = vadd.f32 %v5934, %v6021
        %v6117 = vadd.f32 %v5935, %v6025
        %v6118 = vadd.f32 %v5936, %v6027
        %v6119 = vadd.f32 %v5937, %v6026
        %v6120 = vadd.f32 %v5938, %v6030
        %v6121 = vadd.f32 %v5939, %v6032
        %v6122 = vadd.f32 %v5940, %v6031
        %v6123 = vadd.f32 %v5941, %v6035
        %v6124 = vadd.f32 %v5942, %v6037
        %v6125 = vadd.f32 %v5943, %v6036
        %v6126 = vadd.f32 %v5944, %v6040
        %v6127 = vadd.f32 %v5945, %v6042
        %v6128 = vadd.f32 %v5946, %v6041
        %v6129 = vadd.f32 %v5947, %v6045
        %v6130 = vadd.f32 %v5948, %v6047
        %v6131 = vadd.f32 %v5949, %v6046
        %v6132 = vadd.f32 %v5950, %v6050
        %v6133 = vadd.f32 %v5951, %v6052
        %v6134 = vadd.f32 %v5952, %v6051
        %v6135 = vadd.f32 %v5953, %v6055
        %v6136 = vadd.f32 %v5954, %v6057
        %v6137 = vadd.f32 %v5955, %v6056
        %v6138 = vadd.f32 %v5956, %v6060
        %v6139 = vadd.f32 %v5957, %v6062
        %v6140 = vadd.f32 %v5958, %v6061
        %v6180 = vrot.slane %v6102, 2
        %v6181 = vrot.slane %v6103, 2
        %v6182 = vsel %vm1191, %v6180, %v6181
        %v6183 = vrot.slane %v6104, 2
        %v6184 = vsel %vm1191, %v6181, %v6183
        %v6185 = vrot.slane %v6105, 2
        %v6186 = vrot.slane %v6106, 2
        %v6187 = vsel %vm1191, %v6185, %v6186
        %v6188 = vrot.slane %v6107, 2
        %v6189 = vsel %vm1191, %v6186, %v6188
        %v6190 = vrot.slane %v6108, 2
        %v6191 = vrot.slane %v6109, 2
        %v6192 = vsel %vm1191, %v6190, %v6191
        %v6193 = vrot.slane %v6110, 2
        %v6194 = vsel %vm1191, %v6191, %v6193
        %v6195 = vrot.slane %v6111, 2
        %v6196 = vrot.slane %v6112, 2
        %v6197 = vsel %vm1191, %v6195, %v6196
        %v6198 = vrot.slane %v6113, 2
        %v6199 = vsel %vm1191, %v6196, %v6198
        %v6200 = vrot.slane %v6114, 2
        %v6201 = vrot.slane %v6115, 2
        %v6202 = vsel %vm1191, %v6200, %v6201
        %v6203 = vrot.slane %v6116, 2
        %v6204 = vsel %vm1191, %v6201, %v6203
        %v6205 = vrot.slane %v6117, 2
        %v6206 = vrot.slane %v6118, 2
        %v6207 = vsel %vm1191, %v6205, %v6206
        %v6208 = vrot.slane %v6119, 2
        %v6209 = vsel %vm1191, %v6206, %v6208
        %v6210 = vrot.slane %v6120, 2
        %v6211 = vrot.slane %v6121, 2
        %v6212 = vsel %vm1191, %v6210, %v6211
        %v6213 = vrot.slane %v6122, 2
        %v6214 = vsel %vm1191, %v6211, %v6213
        %v6215 = vrot.slane %v6123, 2
        %v6216 = vrot.slane %v6124, 2
        %v6217 = vsel %vm1191, %v6215, %v6216
        %v6218 = vrot.slane %v6125, 2
        %v6219 = vsel %vm1191, %v6216, %v6218
        %v6220 = vrot.slane %v6126, 2
        %v6221 = vrot.slane %v6127, 2
        %v6222 = vsel %vm1191, %v6220, %v6221
        %v6223 = vrot.slane %v6128, 2
        %v6224 = vsel %vm1191, %v6221, %v6223
        %v6225 = vrot.slane %v6129, 2
        %v6226 = vrot.slane %v6130, 2
        %v6227 = vsel %vm1191, %v6225, %v6226
        %v6228 = vrot.slane %v6131, 2
        %v6229 = vsel %vm1191, %v6226, %v6228
        %v6230 = vrot.slane %v6132, 2
        %v6231 = vrot.slane %v6133, 2
        %v6232 = vsel %vm1191, %v6230, %v6231
        %v6233 = vrot.slane %v6134, 2
        %v6234 = vsel %vm1191, %v6231, %v6233
        %v6235 = vrot.slane %v6135, 2
        %v6236 = vrot.slane %v6136, 2
        %v6237 = vsel %vm1191, %v6235, %v6236
        %v6238 = vrot.slane %v6137, 2
        %v6239 = vsel %vm1191, %v6236, %v6238
        %v6240 = vrot.slane %v6138, 2
        %v6241 = vrot.slane %v6139, 2
        %v6242 = vsel %vm1191, %v6240, %v6241
        %v6243 = vrot.slane %v6140, 2
        %v6244 = vsel %vm1191, %v6241, %v6243
        %v6284 = vadd.f32 %v6102, %v6182
        %v6285 = vadd.f32 %v6103, %v6184
        %v6286 = vadd.f32 %v6104, %v6183
        %v6287 = vadd.f32 %v6105, %v6187
        %v6288 = vadd.f32 %v6106, %v6189
        %v6289 = vadd.f32 %v6107, %v6188
        %v6290 = vadd.f32 %v6108, %v6192
        %v6291 = vadd.f32 %v6109, %v6194
        %v6292 = vadd.f32 %v6110, %v6193
        %v6293 = vadd.f32 %v6111, %v6197
        %v6294 = vadd.f32 %v6112, %v6199
        %v6295 = vadd.f32 %v6113, %v6198
        %v6296 = vadd.f32 %v6114, %v6202
        %v6297 = vadd.f32 %v6115, %v6204
        %v6298 = vadd.f32 %v6116, %v6203
        %v6299 = vadd.f32 %v6117, %v6207
        %v6300 = vadd.f32 %v6118, %v6209
        %v6301 = vadd.f32 %v6119, %v6208
        %v6302 = vadd.f32 %v6120, %v6212
        %v6303 = vadd.f32 %v6121, %v6214
        %v6304 = vadd.f32 %v6122, %v6213
        %v6305 = vadd.f32 %v6123, %v6217
        %v6306 = vadd.f32 %v6124, %v6219
        %v6307 = vadd.f32 %v6125, %v6218
        %v6308 = vadd.f32 %v6126, %v6222
        %v6309 = vadd.f32 %v6127, %v6224
        %v6310 = vadd.f32 %v6128, %v6223
        %v6311 = vadd.f32 %v6129, %v6227
        %v6312 = vadd.f32 %v6130, %v6229
        %v6313 = vadd.f32 %v6131, %v6228
        %v6314 = vadd.f32 %v6132, %v6232
        %v6315 = vadd.f32 %v6133, %v6234
        %v6316 = vadd.f32 %v6134, %v6233
        %v6317 = vadd.f32 %v6135, %v6237
        %v6318 = vadd.f32 %v6136, %v6239
        %v6319 = vadd.f32 %v6137, %v6238
        %v6320 = vadd.f32 %v6138, %v6242
        %v6321 = vadd.f32 %v6139, %v6244
        %v6322 = vadd.f32 %v6140, %v6243
        %v6362 = vrot.slane %v6284, 4
        %v6363 = vrot.slane %v6285, 4
        %v6364 = vsel %vm1873, %v6362, %v6363
        %v6365 = vrot.slane %v6286, 4
        %v6366 = vsel %vm1873, %v6363, %v6365
        %v6367 = vrot.slane %v6287, 4
        %v6368 = vrot.slane %v6288, 4
        %v6369 = vsel %vm1873, %v6367, %v6368
        %v6370 = vrot.slane %v6289, 4
        %v6371 = vsel %vm1873, %v6368, %v6370
        %v6372 = vrot.slane %v6290, 4
        %v6373 = vrot.slane %v6291, 4
        %v6374 = vsel %vm1873, %v6372, %v6373
        %v6375 = vrot.slane %v6292, 4
        %v6376 = vsel %vm1873, %v6373, %v6375
        %v6377 = vrot.slane %v6293, 4
        %v6378 = vrot.slane %v6294, 4
        %v6379 = vsel %vm1873, %v6377, %v6378
        %v6380 = vrot.slane %v6295, 4
        %v6381 = vsel %vm1873, %v6378, %v6380
        %v6382 = vrot.slane %v6296, 4
        %v6383 = vrot.slane %v6297, 4
        %v6384 = vsel %vm1873, %v6382, %v6383
        %v6385 = vrot.slane %v6298, 4
        %v6386 = vsel %vm1873, %v6383, %v6385
        %v6387 = vrot.slane %v6299, 4
        %v6388 = vrot.slane %v6300, 4
        %v6389 = vsel %vm1873, %v6387, %v6388
        %v6390 = vrot.slane %v6301, 4
        %v6391 = vsel %vm1873, %v6388, %v6390
        %v6392 = vrot.slane %v6302, 4
        %v6393 = vrot.slane %v6303, 4
        %v6394 = vsel %vm1873, %v6392, %v6393
        %v6395 = vrot.slane %v6304, 4
        %v6396 = vsel %vm1873, %v6393, %v6395
        %v6397 = vrot.slane %v6305, 4
        %v6398 = vrot.slane %v6306, 4
        %v6399 = vsel %vm1873, %v6397, %v6398
        %v6400 = vrot.slane %v6307, 4
        %v6401 = vsel %vm1873, %v6398, %v6400
        %v6402 = vrot.slane %v6308, 4
        %v6403 = vrot.slane %v6309, 4
        %v6404 = vsel %vm1873, %v6402, %v6403
        %v6405 = vrot.slane %v6310, 4
        %v6406 = vsel %vm1873, %v6403, %v6405
        %v6407 = vrot.slane %v6311, 4
        %v6408 = vrot.slane %v6312, 4
        %v6409 = vsel %vm1873, %v6407, %v6408
        %v6410 = vrot.slane %v6313, 4
        %v6411 = vsel %vm1873, %v6408, %v6410
        %v6412 = vrot.slane %v6314, 4
        %v6413 = vrot.slane %v6315, 4
        %v6414 = vsel %vm1873, %v6412, %v6413
        %v6415 = vrot.slane %v6316, 4
        %v6416 = vsel %vm1873, %v6413, %v6415
        %v6417 = vrot.slane %v6317, 4
        %v6418 = vrot.slane %v6318, 4
        %v6419 = vsel %vm1873, %v6417, %v6418
        %v6420 = vrot.slane %v6319, 4
        %v6421 = vsel %vm1873, %v6418, %v6420
        %v6422 = vrot.slane %v6320, 4
        %v6423 = vrot.slane %v6321, 4
        %v6424 = vsel %vm1873, %v6422, %v6423
        %v6425 = vrot.slane %v6322, 4
        %v6426 = vsel %vm1873, %v6423, %v6425
        %v6453 = vadd.f32 %v6284, %v6364
        %v6454 = vadd.f32 %v6285, %v6366
        %v6455 = vadd.f32 %v6287, %v6369
        %v6456 = vadd.f32 %v6288, %v6371
        %v6457 = vadd.f32 %v6290, %v6374
        %v6458 = vadd.f32 %v6291, %v6376
        %v6459 = vadd.f32 %v6293, %v6379
        %v6460 = vadd.f32 %v6294, %v6381
        %v6461 = vadd.f32 %v6296, %v6384
        %v6462 = vadd.f32 %v6297, %v6386
        %v6463 = vadd.f32 %v6299, %v6389
        %v6464 = vadd.f32 %v6300, %v6391
        %v6465 = vadd.f32 %v6302, %v6394
        %v6466 = vadd.f32 %v6303, %v6396
        %v6467 = vadd.f32 %v6305, %v6399
        %v6468 = vadd.f32 %v6306, %v6401
        %v6469 = vadd.f32 %v6308, %v6404
        %v6470 = vadd.f32 %v6309, %v6406
        %v6471 = vadd.f32 %v6311, %v6409
        %v6472 = vadd.f32 %v6312, %v6411
        %v6473 = vadd.f32 %v6314, %v6414
        %v6474 = vadd.f32 %v6315, %v6416
        %v6475 = vadd.f32 %v6317, %v6419
        %v6476 = vadd.f32 %v6318, %v6421
        %v6477 = vadd.f32 %v6320, %v6424
        %v6478 = vadd.f32 %v6321, %v6426
        %v6479 = vadd.f32 %v6453, %v6103
        %v6480 = vadd.f32 %v6454, %v6104
        %v6481 = vadd.f32 %v6455, %v6106
        %v6482 = vadd.f32 %v6456, %v6107
        %v6483 = vadd.f32 %v6457, %v6109
        %v6484 = vadd.f32 %v6458, %v6110
        %v6485 = vadd.f32 %v6459, %v6112
        %v6486 = vadd.f32 %v6460, %v6113
        %v6487 = vadd.f32 %v6461, %v6115
        %v6488 = vadd.f32 %v6462, %v6116
        %v6489 = vadd.f32 %v6463, %v6118
        %v6490 = vadd.f32 %v6464, %v6119
        %v6491 = vadd.f32 %v6465, %v6121
        %v6492 = vadd.f32 %v6466, %v6122
        %v6493 = vadd.f32 %v6467, %v6124
        %v6494 = vadd.f32 %v6468, %v6125
        %v6495 = vadd.f32 %v6469, %v6127
        %v6496 = vadd.f32 %v6470, %v6128
        %v6497 = vadd.f32 %v6471, %v6130
        %v6498 = vadd.f32 %v6472, %v6131
        %v6499 = vadd.f32 %v6473, %v6133
        %v6500 = vadd.f32 %v6474, %v6134
        %v6501 = vadd.f32 %v6475, %v6136
        %v6502 = vadd.f32 %v6476, %v6137
        %v6503 = vadd.f32 %v6477, %v6139
        %v6504 = vadd.f32 %v6478, %v6140
        %6505 = vst.msk [vmem:[%s273] sm:$0xff] %vm4565, %v6479
        %vm6506 = vcmask 319488
        %6507 = vst.msk [vmem:[%s273 + $0x8] sm:$0x1] %vm6506, %v6480
        %6508 = vst.msk [vmem:[%s273 + $0x10] sm:$0xff] %vm4565, %v6481
        %6509 = vst.msk [vmem:[%s273 + $0x18] sm:$0x1] %vm6506, %v6482
        %6510 = vst.msk [vmem:[%s273 + $0x20] sm:$0xff] %vm4565, %v6483
        %6511 = vst.msk [vmem:[%s273 + $0x28] sm:$0x1] %vm6506, %v6484
        %6512 = vst.msk [vmem:[%s273 + $0x30] sm:$0xff] %vm4565, %v6485
        %6513 = vst.msk [vmem:[%s273 + $0x38] sm:$0x1] %vm6506, %v6486
        %6514 = vst.msk [vmem:[%s273 + $0x40] sm:$0xff] %vm4565, %v6487
        %6515 = vst.msk [vmem:[%s273 + $0x48] sm:$0x1] %vm6506, %v6488
        %6516 = vst.msk [vmem:[%s273 + $0x50] sm:$0xff] %vm4565, %v6489
        %6517 = vst.msk [vmem:[%s273 + $0x58] sm:$0x1] %vm6506, %v6490
        %6518 = vst.msk [vmem:[%s273 + $0x60] sm:$0xff] %vm4565, %v6491
        %6519 = vst.msk [vmem:[%s273 + $0x68] sm:$0x1] %vm6506, %v6492
        %6520 = vst.msk [vmem:[%s273 + $0x70] sm:$0xff] %vm4565, %v6493
        %6521 = vst.msk [vmem:[%s273 + $0x78] sm:$0x1] %vm6506, %v6494
        %6522 = vst.msk [vmem:[%s273 + $0x80] sm:$0xff] %vm4565, %v6495
        %6523 = vst.msk [vmem:[%s273 + $0x88] sm:$0x1] %vm6506, %v6496
        %6524 = vst.msk [vmem:[%s273 + $0x90] sm:$0xff] %vm4565, %v6497
        %6525 = vst.msk [vmem:[%s273 + $0x98] sm:$0x1] %vm6506, %v6498
        %6526 = vst.msk [vmem:[%s273 + $0xa0] sm:$0xff] %vm4565, %v6499
        %6527 = vst.msk [vmem:[%s273 + $0xa8] sm:$0x1] %vm6506, %v6500
        %6528 = vst.msk [vmem:[%s273 + $0xb0] sm:$0xff] %vm4565, %v6501
        %6529 = vst.msk [vmem:[%s273 + $0xb8] sm:$0x1] %vm6506, %v6502
        %6530 = vst.msk [vmem:[%s273 + $0xc0] sm:$0xff] %vm4565, %v6503
        %6531 = vst.msk [vmem:[%s273 + $0xc8] sm:$0x1] %vm6506, %v6504
        %p6532 = scmp.lt.s32.totalorder %s20, 1
        %s6533 = scalar_select %p6532, %s20, 1
        %s6534 = smul.addr %s6533, 26
        %s6535 = smul.addr %s6534, 8
        %s6536 = scalar_lea.vmem %s5, %s6535
        // Predicated region
        $region53: #{tpu_custom_call.1} parent=39 // pred_check
          %p6537 = pneg %p148
        $region54: #{tpu_custom_call.1} parent=39 // pred_check_branch
          %6539 = sbr.rel (%p6537) target = $region56
        $region55: #{tpu_custom_call.1} parent=39 // pred_region
          _
        $region56: #{tpu_custom_call.1} parent=39 // pred_fallthru
          _
      $region40: #{tpu_custom_call.1} parent=5 // pred_fallthru
        _
      %p6540 = scmp.le.s32.totalorder 2, %s15
      // Predicated region
      $region57: #{tpu_custom_call.1} parent=5 // pred_check
        %p6541 = pneg %p6540
      $region58: #{tpu_custom_call.1} parent=5 // pred_check_branch
        %6543 = sbr.rel (%p6541) target = $region60
      $region59: #{tpu_custom_call.1} parent=5 // pred_region
        %s6544 = ssub.s32 %s15, 2
        // Predicated region
        $region61: #{tpu_custom_call.1} parent=59 // pred_check
          %p6545 = pneg %p154
        $region62: #{tpu_custom_call.1} parent=59 // pred_check_branch
          %6547 = sbr.rel (%p6545) target = $region64
        $region63: #{tpu_custom_call.1} parent=59 // pred_region
          %p6548 = scmp.lt.s32.totalorder %s21, 1
          %s6549 = scalar_select %p6548, %s21, 1
          %s6550 = smul.addr %s6549, 26
          %s6551 = smul.addr %s6550, 8
          %s6552 = scalar_lea.vmem %s5, %s6551
        $region64: #{tpu_custom_call.1} parent=59 // pred_fallthru
          _
      $region60: #{tpu_custom_call.1} parent=5 // pred_fallthru
        _
    $region6: #{tpu_custom_call.1} parent=1 // loop_footer
      %s19 = sadd.s32 1, %s15
    $region7: #{tpu_custom_call.1} parent=1 // loop_footer_branch
      %14 = sbr.rel target = $region3
    $region8: #{tpu_custom_call.1} parent=1 // loop_exit
      _
    %6553 = vsyncpa [#allocation3], 1
    %s6554 = scalar_lea.sflag [#allocation3], 1
    %6555 = vsyncpa %s6554, 1
    %6556 = vsyncpa [#allocation5], 1

</llo_original>
